<compile_context>
chip_gen: v7x
topology: tpu7x:2x2x1
jax: 0.10.0
libtpu: 0.0.40
codegen_flags: <defaults>
</compile_context>

<pallas_src>
import jax
import jax.numpy as jnp
from jax import lax
from jax.experimental import pallas as pl
from jax.experimental.pallas import tpu as pltpu

LANE = 128  # TPU lane width: channel dim is padded up to this.


def _round_up(x, m):
    return (x + m - 1) // m * m


def _residual_block_kernel(xp_ref, w1_ref, s1_ref, b1_ref,
                           w2_ref, s2_ref, b2_ref, out_ref):
    """One batch element per grid step.

    xp_ref : (He+2, We+2, CP) input, spatially zero-padded; image at offset (2, 2).
    w*_ref : (9*CP, CP) im2col-flattened 3x3 conv weights (tap-major, then C_in).
    s*/b*  : (1, CP) folded inference BatchNorm scale / shift.
    out_ref: (H, W, CP).
    """
    Hp, Wp, CP = xp_ref.shape
    He, We = Hp - 2, Wp - 2          # 8-aligned extended conv1 grid
    H, W, _ = out_ref.shape

    xp = xp_ref[...].astype(jnp.float32)

    # ---- conv1 (3x3, pad=1) as ONE im2col matmul over the extended grid ----
    taps1 = [xp[dy:dy + He, dx:dx + We, :].reshape(He * We, CP)
             for dy in range(3) for dx in range(3)]
    patches1 = jnp.concatenate(taps1, axis=1)                  # (He*We, 9*CP)
    acc1 = jnp.dot(patches1, w1_ref[...],
                   preferred_element_type=jnp.float32)         # (He*We, CP)

    # ---- bn1 (folded) + ReLU ----
    y = jnp.maximum(acc1 * s1_ref[...] + b1_ref[...], 0.0)
    y = y.reshape(He, We, CP)

    # Zero everything outside the true HxW image: the 1-pixel ring that remains
    # is exactly the zero padding conv2 expects (no padded scratch round-trip).
    row = lax.broadcasted_iota(jnp.int32, (He, We, CP), 0)
    col = lax.broadcasted_iota(jnp.int32, (He, We, CP), 1)
    interior = (row >= 1) & (row <= H) & (col >= 1) & (col <= W)
    y = jnp.where(interior, y, 0.0)

    # TODO(synk): nn.Dropout(0.3) is identity at inference time; training-mode
    # stochastic masking/scaling (pltpu.prng_random_bits) is not implemented.

    # ---- conv2 (3x3, pad=1) as ONE im2col matmul over the true HxW grid ----
    taps2 = [y[dy:dy + H, dx:dx + W, :].reshape(H * W, CP)
             for dy in range(3) for dx in range(3)]
    patches2 = jnp.concatenate(taps2, axis=1)                  # (H*W, 9*CP)
    acc2 = jnp.dot(patches2, w2_ref[...],
                   preferred_element_type=jnp.float32)         # (H*W, CP)

    # ---- bn2 + residual add + ReLU ----
    z = acc2 * s2_ref[...] + b2_ref[...]
    res = xp[2:2 + H, 2:2 + W, :].reshape(H * W, CP)
    out = jnp.maximum(z + res, 0.0)
    out_ref[...] = out.reshape(H, W, CP).astype(out_ref.dtype)


def residual_block_forward(x_nchw, w1_oihw, s1, b1, w2_oihw, s2, b2):
    """x_nchw: (N, C, H, W). w*_oihw: (C, C, 3, 3) torch layout.
    s*/b*: (C,) folded inference BatchNorm scale/shift."""
    N, C, H, W = x_nchw.shape
    CP = _round_up(max(C, LANE), LANE)     # lane-dense channel dim
    He = _round_up(H + 2, 8)               # sublane-aligned extended grid
    We = _round_up(W + 2, 8)

    # NCHW -> NHWC; zero-pad channels to CP and space so the image sits at
    # offset (2, 2) inside an (He+2, We+2) slab.
    x = jnp.transpose(x_nchw, (0, 2, 3, 1))
    xp = jnp.pad(x, ((0, 0), (2, He - H), (2, We - W), (0, CP - C)))

    def pack_weight(w_oihw):
        # OIHW -> (ky, kx, C_in, C_out), pad channels, flatten taps: (9*CP, CP).
        w = jnp.transpose(w_oihw, (2, 3, 1, 0))
        w = jnp.pad(w, ((0, 0), (0, 0), (0, CP - C), (0, CP - C)))
        return w.reshape(9 * CP, CP)

    def pack_vec(v, fill):
        return jnp.pad(v, (0, CP - C), constant_values=fill).reshape(1, CP)

    w1m, w2m = pack_weight(w1_oihw), pack_weight(w2_oihw)
    s1p, b1p = pack_vec(s1, 1.0), pack_vec(b1, 0.0)
    s2p, b2p = pack_vec(s2, 1.0), pack_vec(b2, 0.0)

    const = lambda n: (0, 0)
    out_nhwc = pl.pallas_call(
        _residual_block_kernel,
        out_shape=jax.ShapeDtypeStruct((N, H, W, CP), x_nchw.dtype),
        grid=(N,),
        in_specs=[
            pl.BlockSpec((None, He + 2, We + 2, CP), lambda n: (n, 0, 0, 0)),
            pl.BlockSpec((9 * CP, CP), const),
            pl.BlockSpec((1, CP), const),
            pl.BlockSpec((1, CP), const),
            pl.BlockSpec((9 * CP, CP), const),
            pl.BlockSpec((1, CP), const),
            pl.BlockSpec((1, CP), const),
        ],
        out_specs=pl.BlockSpec((None, H, W, CP), lambda n: (n, 0, 0, 0)),
        compiler_params=pltpu.CompilerParams(
            dimension_semantics=("parallel",),
            vmem_limit_bytes=32 * 1024 * 1024,
        ),
    )(xp, w1m, s1p, b1p, w2m, s2p, b2p)

    # Strip channel padding, back to NCHW.
    return jnp.transpose(out_nhwc[..., :C], (0, 3, 1, 2))


def _fold_bn(gamma, beta, running_mean, running_var, eps=1e-5):
    scale = gamma / jnp.sqrt(running_var + eps)
    shift = beta - running_mean * scale
    return scale, shift


def _reference_forward(x_nchw, w1_oihw, s1, b1, w2_oihw, s2, b2):
    dn = lax.conv_dimension_numbers(x_nchw.shape, w1_oihw.shape,
                                    ("NCHW", "OIHW", "NCHW"))
    y = lax.conv_general_dilated(x_nchw, w1_oihw, (1, 1), "SAME",
                                 dimension_numbers=dn)
    y = jnp.maximum(y * s1[None, :, None, None] + b1[None, :, None, None], 0.0)
    z = lax.conv_general_dilated(y, w2_oihw, (1, 1), "SAME",
                                 dimension_numbers=dn)
    z = z * s2[None, :, None, None] + b2[None, :, None, None]
    return jnp.maximum(z + x_nchw, 0.0)


if __name__ == "__main__":
    N, C, H, W = 2, 4, 16, 16
    keys = jax.random.split(jax.random.PRNGKey(0), 11)

    x = jax.random.normal(keys[0], (N, C, H, W), jnp.float32)

    # conv1 (ConvBlock) parameters
    w1_oihw = 0.2 * jax.random.normal(keys[1], (C, C, 3, 3), jnp.float32)
    g1 = 1.0 + 0.1 * jax.random.normal(keys[2], (C,), jnp.float32)
    be1 = 0.1 * jax.random.normal(keys[3], (C,), jnp.float32)
    rm1 = 0.1 * jax.random.normal(keys[4], (C,), jnp.float32)
    rv1 = jax.random.uniform(keys[5], (C,), jnp.float32, 0.5, 1.5)

    # conv2 + bn parameters
    w2_oihw = 0.2 * jax.random.normal(keys[6], (C, C, 3, 3), jnp.float32)
    g2 = 1.0 + 0.1 * jax.random.normal(keys[7], (C,), jnp.float32)
    be2 = 0.1 * jax.random.normal(keys[8], (C,), jnp.float32)
    rm2 = 0.1 * jax.random.normal(keys[9], (C,), jnp.float32)
    rv2 = jax.random.uniform(keys[10], (C,), jnp.float32, 0.5, 1.5)

    s1, b1 = _fold_bn(g1, be1, rm1, rv1)
    s2, b2 = _fold_bn(g2, be2, rm2, rv2)

    out = residual_block_forward(x, w1_oihw, s1, b1, w2_oihw, s2, b2)
    out = jax.block_until_ready(out)

    ref = _reference_forward(x, w1_oihw, s1, b1, w2_oihw, s2, b2)
    assert out.shape == (N, C, H, W)
    assert jnp.allclose(out, ref, atol=1e-4, rtol=1e-4), "mismatch vs reference"

    print("KERNEL_OK")
</pallas_src>

<mosaic_0001>
module attributes {stable_mosaic.version = 11 : i64} {
  func.func @_residual_block_kernel(%arg0: i32, %arg1: memref<1x26x26x128xf32, #tpu.memory_space<vmem>>, %arg2: memref<1152x128xf32, #tpu.memory_space<vmem>>, %arg3: memref<1x128xf32, #tpu.memory_space<vmem>>, %arg4: memref<1x128xf32, #tpu.memory_space<vmem>>, %arg5: memref<1152x128xf32, #tpu.memory_space<vmem>>, %arg6: memref<1x128xf32, #tpu.memory_space<vmem>>, %arg7: memref<1x128xf32, #tpu.memory_space<vmem>>, %arg8: memref<1x16x16x128xf32, #tpu.memory_space<vmem>>) attributes {dimension_semantics = [#tpu.dimension_semantics<parallel>], iteration_bounds = array<i64: 2>, scalar_prefetch = 0 : i64, scratch_operands = 0 : i64, tpu.core_type = #tpu.core_type<tc>, window_params = [{transform_indices = @transform_0, window_bounds = array<i64: 1, 26, 26, 128>}, {pipeline_mode = #tpu.pipeline_mode<synchronous>, transform_indices = @transform_1, window_bounds = array<i64: 1152, 128>}, {pipeline_mode = #tpu.pipeline_mode<synchronous>, transform_indices = @transform_2, window_bounds = array<i64: 1, 128>}, {pipeline_mode = #tpu.pipeline_mode<synchronous>, transform_indices = @transform_3, window_bounds = array<i64: 1, 128>}, {pipeline_mode = #tpu.pipeline_mode<synchronous>, transform_indices = @transform_4, window_bounds = array<i64: 1152, 128>}, {pipeline_mode = #tpu.pipeline_mode<synchronous>, transform_indices = @transform_5, window_bounds = array<i64: 1, 128>}, {pipeline_mode = #tpu.pipeline_mode<synchronous>, transform_indices = @transform_6, window_bounds = array<i64: 1, 128>}, {transform_indices = @transform_7, window_bounds = array<i64: 1, 16, 16, 128>}]} {
    %c0 = arith.constant 0 : index
    %c0_0 = arith.constant 0 : index
    %c0_1 = arith.constant 0 : index
    %c0_2 = arith.constant 0 : index
    %0 = vector.load %arg1[%c0, %c0_0, %c0_1, %c0_2] : memref<1x26x26x128xf32, #tpu.memory_space<vmem>>, vector<1x26x26x128xf32>
    %1 = vector.shape_cast %0 : vector<1x26x26x128xf32> to vector<26x26x128xf32>
    %2 = vector.extract_strided_slice %1 {offsets = [0, 0, 0], sizes = [24, 24, 128], strides = [1, 1, 1]} : vector<26x26x128xf32> to vector<24x24x128xf32>
    %3 = vector.shape_cast %2 : vector<24x24x128xf32> to vector<576x128xf32>
    %4 = vector.extract_strided_slice %1 {offsets = [0, 1, 0], sizes = [24, 24, 128], strides = [1, 1, 1]} : vector<26x26x128xf32> to vector<24x24x128xf32>
    %5 = vector.shape_cast %4 : vector<24x24x128xf32> to vector<576x128xf32>
    %6 = vector.extract_strided_slice %1 {offsets = [0, 2, 0], sizes = [24, 24, 128], strides = [1, 1, 1]} : vector<26x26x128xf32> to vector<24x24x128xf32>
    %7 = vector.shape_cast %6 : vector<24x24x128xf32> to vector<576x128xf32>
    %8 = vector.extract_strided_slice %1 {offsets = [1, 0, 0], sizes = [24, 24, 128], strides = [1, 1, 1]} : vector<26x26x128xf32> to vector<24x24x128xf32>
    %9 = vector.shape_cast %8 : vector<24x24x128xf32> to vector<576x128xf32>
    %10 = vector.extract_strided_slice %1 {offsets = [1, 1, 0], sizes = [24, 24, 128], strides = [1, 1, 1]} : vector<26x26x128xf32> to vector<24x24x128xf32>
    %11 = vector.shape_cast %10 : vector<24x24x128xf32> to vector<576x128xf32>
    %12 = vector.extract_strided_slice %1 {offsets = [1, 2, 0], sizes = [24, 24, 128], strides = [1, 1, 1]} : vector<26x26x128xf32> to vector<24x24x128xf32>
    %13 = vector.shape_cast %12 : vector<24x24x128xf32> to vector<576x128xf32>
    %14 = vector.extract_strided_slice %1 {offsets = [2, 0, 0], sizes = [24, 24, 128], strides = [1, 1, 1]} : vector<26x26x128xf32> to vector<24x24x128xf32>
    %15 = vector.shape_cast %14 : vector<24x24x128xf32> to vector<576x128xf32>
    %16 = vector.extract_strided_slice %1 {offsets = [2, 1, 0], sizes = [24, 24, 128], strides = [1, 1, 1]} : vector<26x26x128xf32> to vector<24x24x128xf32>
    %17 = vector.shape_cast %16 : vector<24x24x128xf32> to vector<576x128xf32>
    %18 = vector.extract_strided_slice %1 {offsets = [2, 2, 0], sizes = [24, 24, 128], strides = [1, 1, 1]} : vector<26x26x128xf32> to vector<24x24x128xf32>
    %19 = vector.shape_cast %18 : vector<24x24x128xf32> to vector<576x128xf32>
    %20 = tpu.concatenate %3, %5, %7, %9, %11, %13, %15, %17, %19 in 1 : vector<576x128xf32>, vector<576x128xf32>, vector<576x128xf32>, vector<576x128xf32>, vector<576x128xf32>, vector<576x128xf32>, vector<576x128xf32>, vector<576x128xf32>, vector<576x128xf32> -> vector<576x1152xf32>
    %c0_3 = arith.constant 0 : index
    %c0_4 = arith.constant 0 : index
    %21 = vector.load %arg2[%c0_3, %c0_4] : memref<1152x128xf32, #tpu.memory_space<vmem>>, vector<1152x128xf32>
    %cst = arith.constant dense<0.000000e+00> : vector<576x128xf32>
    %22 = tpu.matmul %20, %21, %cst {dimension_numbers = #tpu.dot_dimension_numbers<[1], [0], [0], [1], [0, 0, 1, 1], [], []>} : vector<576x1152xf32>, vector<1152x128xf32>, vector<576x128xf32> -> vector<576x128xf32>
    %c0_5 = arith.constant 0 : index
    %c0_6 = arith.constant 0 : index
    %23 = vector.load %arg3[%c0_5, %c0_6] : memref<1x128xf32, #tpu.memory_space<vmem>>, vector<1x128xf32>
    %24 = vector.broadcast %23 : vector<1x128xf32> to vector<576x128xf32>
    %25 = arith.mulf %22, %24 : vector<576x128xf32>
    %c0_7 = arith.constant 0 : index
    %c0_8 = arith.constant 0 : index
    %26 = vector.load %arg4[%c0_7, %c0_8] : memref<1x128xf32, #tpu.memory_space<vmem>>, vector<1x128xf32>
    %27 = vector.broadcast %26 : vector<1x128xf32> to vector<576x128xf32>
    %28 = arith.addf %25, %27 : vector<576x128xf32>
    %cst_9 = arith.constant 0.000000e+00 : f32
    %29 = vector.broadcast %cst_9 : f32 to vector<576x128xf32>
    %30 = arith.maximumf %28, %29 : vector<576x128xf32>
    %31 = vector.shape_cast %30 : vector<576x128xf32> to vector<24x24x128xf32>
    %32 = tpu.iota {dimensions = array<i32: 0>} : vector<24x24x128xi32>
    %33 = tpu.iota {dimensions = array<i32: 1>} : vector<24x24x128xi32>
    %c1_i32 = arith.constant 1 : i32
    %34 = vector.broadcast %c1_i32 : i32 to vector<24x24x128xi32>
    %35 = arith.cmpi sge, %32, %34 : vector<24x24x128xi32>
    %c16_i32 = arith.constant 16 : i32
    %36 = vector.broadcast %c16_i32 : i32 to vector<24x24x128xi32>
    %37 = arith.cmpi sle, %32, %36 : vector<24x24x128xi32>
    %38 = arith.andi %35, %37 : vector<24x24x128xi1>
    %c1_i32_10 = arith.constant 1 : i32
    %39 = vector.broadcast %c1_i32_10 : i32 to vector<24x24x128xi32>
    %40 = arith.cmpi sge, %33, %39 : vector<24x24x128xi32>
    %41 = arith.andi %38, %40 : vector<24x24x128xi1>
    %c16_i32_11 = arith.constant 16 : i32
    %42 = vector.broadcast %c16_i32_11 : i32 to vector<24x24x128xi32>
    %43 = arith.cmpi sle, %33, %42 : vector<24x24x128xi32>
    %44 = arith.andi %41, %43 : vector<24x24x128xi1>
    %cst_12 = arith.constant 0.000000e+00 : f32
    %45 = vector.broadcast %cst_12 : f32 to vector<24x24x128xf32>
    %46 = arith.select %44, %31, %45 : vector<24x24x128xi1>, vector<24x24x128xf32>
    %47 = vector.extract_strided_slice %46 {offsets = [0, 0, 0], sizes = [16, 16, 128], strides = [1, 1, 1]} : vector<24x24x128xf32> to vector<16x16x128xf32>
    %48 = vector.shape_cast %47 : vector<16x16x128xf32> to vector<256x128xf32>
    %49 = vector.extract_strided_slice %46 {offsets = [0, 1, 0], sizes = [16, 16, 128], strides = [1, 1, 1]} : vector<24x24x128xf32> to vector<16x16x128xf32>
    %50 = vector.shape_cast %49 : vector<16x16x128xf32> to vector<256x128xf32>
    %51 = vector.extract_strided_slice %46 {offsets = [0, 2, 0], sizes = [16, 16, 128], strides = [1, 1, 1]} : vector<24x24x128xf32> to vector<16x16x128xf32>
    %52 = vector.shape_cast %51 : vector<16x16x128xf32> to vector<256x128xf32>
    %53 = vector.extract_strided_slice %46 {offsets = [1, 0, 0], sizes = [16, 16, 128], strides = [1, 1, 1]} : vector<24x24x128xf32> to vector<16x16x128xf32>
    %54 = vector.shape_cast %53 : vector<16x16x128xf32> to vector<256x128xf32>
    %55 = vector.extract_strided_slice %46 {offsets = [1, 1, 0], sizes = [16, 16, 128], strides = [1, 1, 1]} : vector<24x24x128xf32> to vector<16x16x128xf32>
    %56 = vector.shape_cast %55 : vector<16x16x128xf32> to vector<256x128xf32>
    %57 = vector.extract_strided_slice %46 {offsets = [1, 2, 0], sizes = [16, 16, 128], strides = [1, 1, 1]} : vector<24x24x128xf32> to vector<16x16x128xf32>
    %58 = vector.shape_cast %57 : vector<16x16x128xf32> to vector<256x128xf32>
    %59 = vector.extract_strided_slice %46 {offsets = [2, 0, 0], sizes = [16, 16, 128], strides = [1, 1, 1]} : vector<24x24x128xf32> to vector<16x16x128xf32>
    %60 = vector.shape_cast %59 : vector<16x16x128xf32> to vector<256x128xf32>
    %61 = vector.extract_strided_slice %46 {offsets = [2, 1, 0], sizes = [16, 16, 128], strides = [1, 1, 1]} : vector<24x24x128xf32> to vector<16x16x128xf32>
    %62 = vector.shape_cast %61 : vector<16x16x128xf32> to vector<256x128xf32>
    %63 = vector.extract_strided_slice %46 {offsets = [2, 2, 0], sizes = [16, 16, 128], strides = [1, 1, 1]} : vector<24x24x128xf32> to vector<16x16x128xf32>
    %64 = vector.shape_cast %63 : vector<16x16x128xf32> to vector<256x128xf32>
    %65 = tpu.concatenate %48, %50, %52, %54, %56, %58, %60, %62, %64 in 1 : vector<256x128xf32>, vector<256x128xf32>, vector<256x128xf32>, vector<256x128xf32>, vector<256x128xf32>, vector<256x128xf32>, vector<256x128xf32>, vector<256x128xf32>, vector<256x128xf32> -> vector<256x1152xf32>
    %c0_13 = arith.constant 0 : index
    %c0_14 = arith.constant 0 : index
    %66 = vector.load %arg5[%c0_13, %c0_14] : memref<1152x128xf32, #tpu.memory_space<vmem>>, vector<1152x128xf32>
    %cst_15 = arith.constant dense<0.000000e+00> : vector<256x128xf32>
    %67 = tpu.matmul %65, %66, %cst_15 {dimension_numbers = #tpu.dot_dimension_numbers<[1], [0], [0], [1], [0, 0, 1, 1], [], []>} : vector<256x1152xf32>, vector<1152x128xf32>, vector<256x128xf32> -> vector<256x128xf32>
    %c0_16 = arith.constant 0 : index
    %c0_17 = arith.constant 0 : index
    %68 = vector.load %arg6[%c0_16, %c0_17] : memref<1x128xf32, #tpu.memory_space<vmem>>, vector<1x128xf32>
    %69 = vector.broadcast %68 : vector<1x128xf32> to vector<256x128xf32>
    %70 = arith.mulf %67, %69 : vector<256x128xf32>
    %c0_18 = arith.constant 0 : index
    %c0_19 = arith.constant 0 : index
    %71 = vector.load %arg7[%c0_18, %c0_19] : memref<1x128xf32, #tpu.memory_space<vmem>>, vector<1x128xf32>
    %72 = vector.broadcast %71 : vector<1x128xf32> to vector<256x128xf32>
    %73 = arith.addf %70, %72 : vector<256x128xf32>
    %74 = vector.extract_strided_slice %1 {offsets = [2, 2, 0], sizes = [16, 16, 128], strides = [1, 1, 1]} : vector<26x26x128xf32> to vector<16x16x128xf32>
    %75 = vector.shape_cast %74 : vector<16x16x128xf32> to vector<256x128xf32>
    %76 = arith.addf %73, %75 : vector<256x128xf32>
    %cst_20 = arith.constant 0.000000e+00 : f32
    %77 = vector.broadcast %cst_20 : f32 to vector<256x128xf32>
    %78 = arith.maximumf %76, %77 : vector<256x128xf32>
    %79 = vector.shape_cast %78 : vector<256x128xf32> to vector<16x16x128xf32>
    %c0_21 = arith.constant 0 : index
    %c0_22 = arith.constant 0 : index
    %c0_23 = arith.constant 0 : index
    %c0_24 = arith.constant 0 : index
    %80 = vector.load %arg8[%c0_21, %c0_22, %c0_23, %c0_24] : memref<1x16x16x128xf32, #tpu.memory_space<vmem>>, vector<1x16x16x128xf32>
    %81 = vector.shape_cast %80 : vector<1x16x16x128xf32> to vector<16x16x128xf32>
    %82 = vector.shape_cast %79 : vector<16x16x128xf32> to vector<1x16x16x128xf32>
    tpu.vector_store %arg8[%c0_21, %c0_22, %c0_23, %c0_24], %82 {strides = array<i32>} : memref<1x16x16x128xf32, #tpu.memory_space<vmem>>, vector<1x16x16x128xf32>,
    return
  }
  func.func @transform_0(%arg0: i32) -> (i32, i32, i32, i32) {
    %c0_i32 = arith.constant 0 : i32
    %c0_i32_0 = arith.constant 0 : i32
    %c0_i32_1 = arith.constant 0 : i32
    %c0_i32_2 = arith.constant 0 : i32
    return %arg0, %c0_i32, %c0_i32_0, %c0_i32_1 : i32, i32, i32, i32
  }
  func.func @transform_1(%arg0: i32) -> (i32, i32) {
    %c0_i32 = arith.constant 0 : i32
    %c0_i32_0 = arith.constant 0 : i32
    %c0_i32_1 = arith.constant 0 : i32
    return %c0_i32, %c0_i32_0 : i32, i32
  }
  func.func @transform_2(%arg0: i32) -> (i32, i32) {
    %c0_i32 = arith.constant 0 : i32
    %c0_i32_0 = arith.constant 0 : i32
    %c0_i32_1 = arith.constant 0 : i32
    return %c0_i32, %c0_i32_0 : i32, i32
  }
  func.func @transform_3(%arg0: i32) -> (i32, i32) {
    %c0_i32 = arith.constant 0 : i32
    %c0_i32_0 = arith.constant 0 : i32
    %c0_i32_1 = arith.constant 0 : i32
    return %c0_i32, %c0_i32_0 : i32, i32
  }
  func.func @transform_4(%arg0: i32) -> (i32, i32) {
    %c0_i32 = arith.constant 0 : i32
    %c0_i32_0 = arith.constant 0 : i32
    %c0_i32_1 = arith.constant 0 : i32
    return %c0_i32, %c0_i32_0 : i32, i32
  }
  func.func @transform_5(%arg0: i32) -> (i32, i32) {
    %c0_i32 = arith.constant 0 : i32
    %c0_i32_0 = arith.constant 0 : i32
    %c0_i32_1 = arith.constant 0 : i32
    return %c0_i32, %c0_i32_0 : i32, i32
  }
  func.func @transform_6(%arg0: i32) -> (i32, i32) {
    %c0_i32 = arith.constant 0 : i32
    %c0_i32_0 = arith.constant 0 : i32
    %c0_i32_1 = arith.constant 0 : i32
    return %c0_i32, %c0_i32_0 : i32, i32
  }
  func.func @transform_7(%arg0: i32) -> (i32, i32, i32, i32) {
    %c0_i32 = arith.constant 0 : i32
    %c0_i32_0 = arith.constant 0 : i32
    %c0_i32_1 = arith.constant 0 : i32
    %c0_i32_2 = arith.constant 0 : i32
    return %arg0, %c0_i32, %c0_i32_0, %c0_i32_1 : i32, i32, i32, i32
  }
}

</mosaic_0001>

<llo_original>
// kernel: tpu_custom_call.1
$region0: #{tpu_custom_call.1}
  #allocation0 [shape = 'u32[]', space=smem, size = 0x4, offset = 0x4, fixed_abs, tag = 'smem constant byte address 0x4 - core index']
  #allocation1 [shape = 'u32[144,128]{1,0:T(1,128)}', space=vmem, size = 0x12000, scoped, tag = 'internal scratch']
  %s0 = inlined_call_operand.vmem [shape: f32[2,26,26,128], index: 0, kind: input, shape index: {}]
  %s1 = inlined_call_operand.vmem [shape: f32[1152,128], index: 1, kind: input, shape index: {}]
  %s2 = inlined_call_operand.vmem [shape: f32[1,128], index: 2, kind: input, shape index: {}]
  %s3 = inlined_call_operand.vmem [shape: f32[1,128], index: 3, kind: input, shape index: {}]
  %s4 = inlined_call_operand.vmem [shape: f32[1152,128], index: 4, kind: input, shape index: {}]
  %s5 = inlined_call_operand.vmem [shape: f32[1,128], index: 5, kind: input, shape index: {}]
  %s6 = inlined_call_operand.vmem [shape: f32[1,128], index: 6, kind: input, shape index: {}]
  %s7 = inlined_call_operand.hbm [shape: f32[2,16,16,128], index: 7, kind: output, shape index: {}]
  %s8 = sld [smem:[#allocation0]]
  $region61: #{tpu_custom_call.1} parent=0
    _
  %s10 = ssub.s32 1, %s8
  %s11 = scalar_select 0, %s10, %s8
  $region1: #{tpu_custom_call.1} parent=0
    #allocation2 [shape = 'u8[262144]{0}', space=vmem, size = 0x40000, scoped, tag = 'output window, operand 0']
    #allocation3 [shape = 's32[2]{0}', space=sflag, size = 0x8, scoped, tag = 'scoped memory for tpu_custom_call.1']
    %12 = vsyncpa [#allocation3], 0
    %s13 = scalar_lea.sflag [#allocation3], 1
    %14 = vsyncpa %s13, 0
    loop: start=0, step=1, limit=4
    $region2: #{tpu_custom_call.1} parent=1 // loop_pre_header
      _
    $region3: #{tpu_custom_call.1} parent=1 // loop_header
      %s16 = sphi 0, %s20
      %p17 = scmp.ge.s32.totalorder %s16, 4
      %s26 = sphi 0, %s28
      %s29 = sphi 0, %s26
      %s30 = sphi 0, %s29
      %s46 = sphi 0, %s30
      %s50 = sphi 0, %s50
      %s52 = sphi 0, %s50
      %s53 = sphi 0, %s52
      %s67 = sphi 0, %s53
      %s71 = sphi 0, %s71
      %s73 = sphi 0, %s71
      %s74 = sphi 0, %s73
      %s88 = sphi 0, %s74
      %s92 = sphi 0, %s92
      %s94 = sphi 0, %s92
      %s95 = sphi 0, %s94
      %s109 = sphi 0, %s95
      %s113 = sphi 0, %s113
      %s115 = sphi 0, %s113
      %s116 = sphi 0, %s115
      %s130 = sphi 0, %s116
      %s134 = sphi 0, %s134
      %s136 = sphi 0, %s134
      %s137 = sphi 0, %s136
      %s151 = sphi 0, %s137
      %s155 = sphi 0, %s155
      %s157 = sphi 0, %s155
      %s158 = sphi 0, %s157
      %s172 = sphi 0, %s158
      %s178 = sphi 0, %s180
      %s181 = sphi 0, %s178
      %s182 = sphi 0, %s181
      %s198 = sphi 0, %s182
    $region4: #{tpu_custom_call.1} parent=1 // loop_header_branch
      %19 = sbr.rel (%p17) target = $region8
    $region5: #{tpu_custom_call.1} parent=1 // loop_body
      %s21 = ssub.s32 %s16, 1
      %s22 = ssub.s32 %s16, 2
      %s23 = sadd.s32 %s16, 1
      %s24 = ssub.s32 %s16, %s23
      %p25 = scmp.eq.s32.totalorder %s24, 0
      %s27 = sadd.s32 %s26, 1
      %s28 = scalar_select %p25, %s26, %s27
      %p31 = pneg %p25
      %p32 = scmp.eq.s32.totalorder %s16, 1
      %p33 = por %p31, %p32
      %p34 = scmp.ne.s32.totalorder %s26, %s29
      %p35 = scmp.eq.s32.totalorder %s16, 0
      %p36 = por %p34, %p35
      %p37 = scmp.ne.s32.totalorder %s26, %s29
      %p38 = scmp.eq.s32.totalorder %s21, 1
      %p39 = por %p37, %p38
      %p40 = scmp.ne.s32.totalorder %s29, %s30
      %p41 = scmp.eq.s32.totalorder %s21, 0
      %p42 = por %p40, %p41
      %p43 = scmp.ne.s32.totalorder %s29, %s30
      %p44 = scmp.eq.s32.totalorder %s22, 1
      %p45 = por %p43, %p44
      %p47 = scmp.ne.s32.totalorder %s30, %s46
      %p48 = scmp.eq.s32.totalorder %s22, 0
      %p49 = por %p47, %p48
      %s51 = sadd.s32 %s50, 1
      %p54 = scmp.eq.s32.totalorder %s16, 1
      %p55 = scmp.ne.s32.totalorder %s50, %s52
      %p56 = scmp.eq.s32.totalorder %s16, 0
      %p57 = por %p55, %p56
      %p58 = scmp.ne.s32.totalorder %s50, %s52
      %p59 = scmp.eq.s32.totalorder %s21, 1
      %p60 = por %p58, %p59
      %p61 = scmp.ne.s32.totalorder %s52, %s53
      %p62 = scmp.eq.s32.totalorder %s21, 0
      %p63 = por %p61, %p62
      %p64 = scmp.ne.s32.totalorder %s52, %s53
      %p65 = scmp.eq.s32.totalorder %s22, 1
      %p66 = por %p64, %p65
      %p68 = scmp.ne.s32.totalorder %s53, %s67
      %p69 = scmp.eq.s32.totalorder %s22, 0
      %p70 = por %p68, %p69
      %s72 = sadd.s32 %s71, 1
      %p75 = scmp.eq.s32.totalorder %s16, 1
      %p76 = scmp.ne.s32.totalorder %s71, %s73
      %p77 = scmp.eq.s32.totalorder %s16, 0
      %p78 = por %p76, %p77
      %p79 = scmp.ne.s32.totalorder %s71, %s73
      %p80 = scmp.eq.s32.totalorder %s21, 1
      %p81 = por %p79, %p80
      %p82 = scmp.ne.s32.totalorder %s73, %s74
      %p83 = scmp.eq.s32.totalorder %s21, 0
      %p84 = por %p82, %p83
      %p85 = scmp.ne.s32.totalorder %s73, %s74
      %p86 = scmp.eq.s32.totalorder %s22, 1
      %p87 = por %p85, %p86
      %p89 = scmp.ne.s32.totalorder %s74, %s88
      %p90 = scmp.eq.s32.totalorder %s22, 0
      %p91 = por %p89, %p90
      %s93 = sadd.s32 %s92, 1
      %p96 = scmp.eq.s32.totalorder %s16, 1
      %p97 = scmp.ne.s32.totalorder %s92, %s94
      %p98 = scmp.eq.s32.totalorder %s16, 0
      %p99 = por %p97, %p98
      %p100 = scmp.ne.s32.totalorder %s92, %s94
      %p101 = scmp.eq.s32.totalorder %s21, 1
      %p102 = por %p100, %p101
      %p103 = scmp.ne.s32.totalorder %s94, %s95
      %p104 = scmp.eq.s32.totalorder %s21, 0
      %p105 = por %p103, %p104
      %p106 = scmp.ne.s32.totalorder %s94, %s95
      %p107 = scmp.eq.s32.totalorder %s22, 1
      %p108 = por %p106, %p107
      %p110 = scmp.ne.s32.totalorder %s95, %s109
      %p111 = scmp.eq.s32.totalorder %s22, 0
      %p112 = por %p110, %p111
      %s114 = sadd.s32 %s113, 1
      %p117 = scmp.eq.s32.totalorder %s16, 1
      %p118 = scmp.ne.s32.totalorder %s113, %s115
      %p119 = scmp.eq.s32.totalorder %s16, 0
      %p120 = por %p118, %p119
      %p121 = scmp.ne.s32.totalorder %s113, %s115
      %p122 = scmp.eq.s32.totalorder %s21, 1
      %p123 = por %p121, %p122
      %p124 = scmp.ne.s32.totalorder %s115, %s116
      %p125 = scmp.eq.s32.totalorder %s21, 0
      %p126 = por %p124, %p125
      %p127 = scmp.ne.s32.totalorder %s115, %s116
      %p128 = scmp.eq.s32.totalorder %s22, 1
      %p129 = por %p127, %p128
      %p131 = scmp.ne.s32.totalorder %s116, %s130
      %p132 = scmp.eq.s32.totalorder %s22, 0
      %p133 = por %p131, %p132
      %s135 = sadd.s32 %s134, 1
      %p138 = scmp.eq.s32.totalorder %s16, 1
      %p139 = scmp.ne.s32.totalorder %s134, %s136
      %p140 = scmp.eq.s32.totalorder %s16, 0
      %p141 = por %p139, %p140
      %p142 = scmp.ne.s32.totalorder %s134, %s136
      %p143 = scmp.eq.s32.totalorder %s21, 1
      %p144 = por %p142, %p143
      %p145 = scmp.ne.s32.totalorder %s136, %s137
      %p146 = scmp.eq.s32.totalorder %s21, 0
      %p147 = por %p145, %p146
      %p148 = scmp.ne.s32.totalorder %s136, %s137
      %p149 = scmp.eq.s32.totalorder %s22, 1
      %p150 = por %p148, %p149
      %p152 = scmp.ne.s32.totalorder %s137, %s151
      %p153 = scmp.eq.s32.totalorder %s22, 0
      %p154 = por %p152, %p153
      %s156 = sadd.s32 %s155, 1
      %p159 = scmp.eq.s32.totalorder %s16, 1
      %p160 = scmp.ne.s32.totalorder %s155, %s157
      %p161 = scmp.eq.s32.totalorder %s16, 0
      %p162 = por %p160, %p161
      %p163 = scmp.ne.s32.totalorder %s155, %s157
      %p164 = scmp.eq.s32.totalorder %s21, 1
      %p165 = por %p163, %p164
      %p166 = scmp.ne.s32.totalorder %s157, %s158
      %p167 = scmp.eq.s32.totalorder %s21, 0
      %p168 = por %p166, %p167
      %p169 = scmp.ne.s32.totalorder %s157, %s158
      %p170 = scmp.eq.s32.totalorder %s22, 1
      %p171 = por %p169, %p170
      %p173 = scmp.ne.s32.totalorder %s158, %s172
      %p174 = scmp.eq.s32.totalorder %s22, 0
      %p175 = por %p173, %p174
      %s176 = ssub.s32 %s16, %s23
      %p177 = scmp.eq.s32.totalorder %s176, 0
      %s179 = sadd.s32 %s178, 1
      %s180 = scalar_select %p177, %s178, %s179
      %p183 = pneg %p177
      %p184 = scmp.eq.s32.totalorder %s16, 1
      %p185 = por %p183, %p184
      %p186 = scmp.ne.s32.totalorder %s178, %s181
      %p187 = scmp.eq.s32.totalorder %s16, 0
      %p188 = por %p186, %p187
      %p189 = scmp.ne.s32.totalorder %s178, %s181
      %p190 = scmp.eq.s32.totalorder %s21, 1
      %p191 = por %p189, %p190
      %p192 = scmp.ne.s32.totalorder %s181, %s182
      %p193 = scmp.eq.s32.totalorder %s21, 0
      %p194 = por %p192, %p193
      %p195 = scmp.ne.s32.totalorder %s181, %s182
      %p196 = scmp.eq.s32.totalorder %s22, 1
      %p197 = por %p195, %p196
      %p199 = scmp.ne.s32.totalorder %s182, %s198
      %p200 = scmp.eq.s32.totalorder %s22, 0
      %p201 = por %p199, %p200
      %p202 = scmp.le.s32.totalorder 1, %s16
      %p203 = scmp.lt.s32.totalorder %s16, 3
      %p204 = pnand %p202, %p203
      %p205 = pneg %p204
      // Predicated region
      $region9: #{tpu_custom_call.1} parent=5 // pred_check
        _
      $region10: #{tpu_custom_call.1} parent=5 // pred_check_branch
        %207 = sbr.rel (%p204) target = $region12
      $region11: #{tpu_custom_call.1} parent=5 // pred_region
        %s208 = ssub.s32 %s16, 1
        // Predicated region
        $region13: #{tpu_custom_call.1} parent=11 // pred_check
          %p209 = pneg %p63
        $region14: #{tpu_custom_call.1} parent=11 // pred_check_branch
          %211 = sbr.rel (%p209) target = $region16
        $region15: #{tpu_custom_call.1} parent=11 // pred_region
          _
        $region16: #{tpu_custom_call.1} parent=11 // pred_fallthru
          _
        // Predicated region
        $region17: #{tpu_custom_call.1} parent=11 // pred_check
          %p212 = pneg %p84
        $region18: #{tpu_custom_call.1} parent=11 // pred_check_branch
          %214 = sbr.rel (%p212) target = $region20
        $region19: #{tpu_custom_call.1} parent=11 // pred_region
          _
        $region20: #{tpu_custom_call.1} parent=11 // pred_fallthru
          _
        // Predicated region
        $region21: #{tpu_custom_call.1} parent=11 // pred_check
          %p215 = pneg %p105
        $region22: #{tpu_custom_call.1} parent=11 // pred_check_branch
          %217 = sbr.rel (%p215) target = $region24
        $region23: #{tpu_custom_call.1} parent=11 // pred_region
          _
        $region24: #{tpu_custom_call.1} parent=11 // pred_fallthru
          _
        // Predicated region
        $region25: #{tpu_custom_call.1} parent=11 // pred_check
          %p218 = pneg %p126
        $region26: #{tpu_custom_call.1} parent=11 // pred_check_branch
          %220 = sbr.rel (%p218) target = $region28
        $region27: #{tpu_custom_call.1} parent=11 // pred_region
          _
        $region28: #{tpu_custom_call.1} parent=11 // pred_fallthru
          _
        // Predicated region
        $region29: #{tpu_custom_call.1} parent=11 // pred_check
          %p221 = pneg %p147
        $region30: #{tpu_custom_call.1} parent=11 // pred_check_branch
          %223 = sbr.rel (%p221) target = $region32
        $region31: #{tpu_custom_call.1} parent=11 // pred_region
          _
        $region32: #{tpu_custom_call.1} parent=11 // pred_fallthru
          _
        // Predicated region
        $region33: #{tpu_custom_call.1} parent=11 // pred_check
          %p224 = pneg %p168
        $region34: #{tpu_custom_call.1} parent=11 // pred_check_branch
          %226 = sbr.rel (%p224) target = $region36
        $region35: #{tpu_custom_call.1} parent=11 // pred_region
          _
        $region36: #{tpu_custom_call.1} parent=11 // pred_fallthru
          _
      $region12: #{tpu_custom_call.1} parent=5 // pred_fallthru
        _
      %p227 = scmp.lt.s32.totalorder %s16, 2
      // Predicated region
      $region37: #{tpu_custom_call.1} parent=5 // pred_check
        %p228 = pneg %p227
      $region38: #{tpu_custom_call.1} parent=5 // pred_check_branch
        %230 = sbr.rel (%p228) target = $region40
      $region39: #{tpu_custom_call.1} parent=5 // pred_region
        // Predicated region
        $region41: #{tpu_custom_call.1} parent=39 // pred_check
          %p231 = pneg %p36
        $region42: #{tpu_custom_call.1} parent=39 // pred_check_branch
          %233 = sbr.rel (%p231) target = $region44
        $region43: #{tpu_custom_call.1} parent=39 // pred_region
          %p234 = scmp.lt.s32.totalorder %s16, 1
          %s235 = scalar_select %p234, %s16, 1
          %s236 = smul.addr %s235, 104
          %s237 = smul.addr %s236, 8
          %s238 = scalar_lea.vmem %s0, %s237
        $region44: #{tpu_custom_call.1} parent=39 // pred_fallthru
          _
      $region40: #{tpu_custom_call.1} parent=5 // pred_fallthru
        _
      %p239 = scmp.le.s32.totalorder 1, %s16
      %p240 = scmp.lt.s32.totalorder %s16, 3
      %p241 = pnand %p239, %p240
      %p242 = pneg %p241
      // Predicated region
      $region45: #{tpu_custom_call.1} parent=5 // pred_check
        _
      $region46: #{tpu_custom_call.1} parent=5 // pred_check_branch
        %244 = sbr.rel (%p241) target = $region48
      $region47: #{tpu_custom_call.1} parent=5 // pred_region
        %s245 = ssub.s32 %s16, 1
        %p246 = scmp.lt.s32.totalorder %s21, 1
        %s247 = scalar_select %p246, %s21, 1
        %s248 = smul.addr %s247, 104
        %s249 = smul.addr %s248, 8
        %s250 = scalar_lea.vmem %s0, %s249
        %p251 = pneg %p42
        %p252 = pneg %p39
        %p253 = pneg %p63
        %p254 = pneg %p60
        %p255 = pneg %p84
        %p256 = pneg %p81
        %p257 = pneg %p105
        %p258 = pneg %p102
        %p259 = pneg %p126
        %p260 = pneg %p123
        %p261 = pneg %p147
        %p262 = pneg %p144
        %p263 = pneg %p168
        %p264 = pneg %p165
        %p265 = pneg %p194
        %p266 = pneg %p191
        %s267 = sand.u32 %s181, 1
        %s268 = scalar_lea.sflag [#allocation3], %s267
        %s269 = sand.u32 %s181, 1
        %s270 = smul.addr %s269, 256
        %s271 = scalar_lea.vmem [#allocation2], %s270
        %p272 = scmp.lt.s32.totalorder %s21, 1
        %s273 = scalar_select %p272, %s21, 1
        %s274 = smul.addr %s273, 104
        %s275 = smul.addr %s274, 8
        %s276 = scalar_lea.vmem %s0, %s275
        %v277 = vld [vmem:[%s276] sm:$0xff]
        %v278 = vld [vmem:[%s276 + $0x8] sm:$0xff]
        %v279 = vld [vmem:[%s276 + $0x10] sm:$0xff]
        %v280 = vld [vmem:[%s276 + $0x18] sm:$0x3]
        %v281 = vld [vmem:[%s276 + $0x20] sm:$0xff]
        %v282 = vld [vmem:[%s276 + $0x28] sm:$0xff]
        %v283 = vld [vmem:[%s276 + $0x30] sm:$0xff]
        %v284 = vld [vmem:[%s276 + $0x38] sm:$0x3]
        %v285 = vld [vmem:[%s276 + $0x40] sm:$0xff]
        %v286 = vld [vmem:[%s276 + $0x48] sm:$0xff]
        %v287 = vld [vmem:[%s276 + $0x50] sm:$0xff]
        %v288 = vld [vmem:[%s276 + $0x58] sm:$0x3]
        %v289 = vld [vmem:[%s276 + $0x60] sm:$0xff]
        %v290 = vld [vmem:[%s276 + $0x68] sm:$0xff]
        %v291 = vld [vmem:[%s276 + $0x70] sm:$0xff]
        %v292 = vld [vmem:[%s276 + $0x78] sm:$0x3]
        %v293 = vld [vmem:[%s276 + $0x80] sm:$0xff]
        %v294 = vld [vmem:[%s276 + $0x88] sm:$0xff]
        %v295 = vld [vmem:[%s276 + $0x90] sm:$0xff]
        %v296 = vld [vmem:[%s276 + $0x98] sm:$0x3]
        %v297 = vld [vmem:[%s276 + $0xa0] sm:$0xff]
        %v298 = vld [vmem:[%s276 + $0xa8] sm:$0xff]
        %v299 = vld [vmem:[%s276 + $0xb0] sm:$0xff]
        %v300 = vld [vmem:[%s276 + $0xb8] sm:$0x3]
        %v301 = vld [vmem:[%s276 + $0xc0] sm:$0xff]
        %v302 = vld [vmem:[%s276 + $0xc8] sm:$0xff]
        %v303 = vld [vmem:[%s276 + $0xd0] sm:$0xff]
        %v304 = vld [vmem:[%s276 + $0xd8] sm:$0x3]
        %v305 = vld [vmem:[%s276 + $0xe0] sm:$0xff]
        %v306 = vld [vmem:[%s276 + $0xe8] sm:$0xff]
        %v307 = vld [vmem:[%s276 + $0xf0] sm:$0xff]
        %v308 = vld [vmem:[%s276 + $0xf8] sm:$0x3]
        %v309 = vld [vmem:[%s276 + $0x100] sm:$0xff]
        %v310 = vld [vmem:[%s276 + $0x108] sm:$0xff]
        %v311 = vld [vmem:[%s276 + $0x110] sm:$0xff]
        %v312 = vld [vmem:[%s276 + $0x118] sm:$0x3]
        %v313 = vld [vmem:[%s276 + $0x120] sm:$0xff]
        %v314 = vld [vmem:[%s276 + $0x128] sm:$0xff]
        %v315 = vld [vmem:[%s276 + $0x130] sm:$0xff]
        %v316 = vld [vmem:[%s276 + $0x138] sm:$0x3]
        %v317 = vld [vmem:[%s276 + $0x140] sm:$0xff]
        %v318 = vld [vmem:[%s276 + $0x148] sm:$0xff]
        %v319 = vld [vmem:[%s276 + $0x150] sm:$0xff]
        %v320 = vld [vmem:[%s276 + $0x158] sm:$0x3]
        %v321 = vld [vmem:[%s276 + $0x160] sm:$0xff]
        %v322 = vld [vmem:[%s276 + $0x168] sm:$0xff]
        %v323 = vld [vmem:[%s276 + $0x170] sm:$0xff]
        %v324 = vld [vmem:[%s276 + $0x178] sm:$0x3]
        %v325 = vld [vmem:[%s276 + $0x180] sm:$0xff]
        %v326 = vld [vmem:[%s276 + $0x188] sm:$0xff]
        %v327 = vld [vmem:[%s276 + $0x190] sm:$0xff]
        %v328 = vld [vmem:[%s276 + $0x198] sm:$0x3]
        %v329 = vld [vmem:[%s276 + $0x1a0] sm:$0xff]
        %v330 = vld [vmem:[%s276 + $0x1a8] sm:$0xff]
        %v331 = vld [vmem:[%s276 + $0x1b0] sm:$0xff]
        %v332 = vld [vmem:[%s276 + $0x1b8] sm:$0x3]
        %v333 = vld [vmem:[%s276 + $0x1c0] sm:$0xff]
        %v334 = vld [vmem:[%s276 + $0x1c8] sm:$0xff]
        %v335 = vld [vmem:[%s276 + $0x1d0] sm:$0xff]
        %v336 = vld [vmem:[%s276 + $0x1d8] sm:$0x3]
        %v337 = vld [vmem:[%s276 + $0x1e0] sm:$0xff]
        %v338 = vld [vmem:[%s276 + $0x1e8] sm:$0xff]
        %v339 = vld [vmem:[%s276 + $0x1f0] sm:$0xff]
        %v340 = vld [vmem:[%s276 + $0x1f8] sm:$0x3]
        %v341 = vld [vmem:[%s276 + $0x200] sm:$0xff]
        %v342 = vld [vmem:[%s276 + $0x208] sm:$0xff]
        %v343 = vld [vmem:[%s276 + $0x210] sm:$0xff]
        %v344 = vld [vmem:[%s276 + $0x218] sm:$0x3]
        %v345 = vld [vmem:[%s276 + $0x220] sm:$0xff]
        %v346 = vld [vmem:[%s276 + $0x228] sm:$0xff]
        %v347 = vld [vmem:[%s276 + $0x230] sm:$0xff]
        %v348 = vld [vmem:[%s276 + $0x238] sm:$0x3]
        %v349 = vld [vmem:[%s276 + $0x240] sm:$0xff]
        %v350 = vld [vmem:[%s276 + $0x248] sm:$0xff]
        %v351 = vld [vmem:[%s276 + $0x250] sm:$0xff]
        %v352 = vld [vmem:[%s276 + $0x258] sm:$0x3]
        %v353 = vld [vmem:[%s276 + $0x260] sm:$0xff]
        %v354 = vld [vmem:[%s276 + $0x268] sm:$0xff]
        %v355 = vld [vmem:[%s276 + $0x270] sm:$0xff]
        %v356 = vld [vmem:[%s276 + $0x278] sm:$0x3]
        %v357 = vld [vmem:[%s276 + $0x280] sm:$0xff]
        %v358 = vld [vmem:[%s276 + $0x288] sm:$0xff]
        %v359 = vld [vmem:[%s276 + $0x290] sm:$0xff]
        %v360 = vld [vmem:[%s276 + $0x298] sm:$0x3]
        %v361 = vld [vmem:[%s276 + $0x2a0] sm:$0xff]
        %v362 = vld [vmem:[%s276 + $0x2a8] sm:$0xff]
        %v363 = vld [vmem:[%s276 + $0x2b0] sm:$0xff]
        %v364 = vld [vmem:[%s276 + $0x2b8] sm:$0x3]
        %v365 = vld [vmem:[%s276 + $0x2c0] sm:$0xff]
        %v366 = vld [vmem:[%s276 + $0x2c8] sm:$0xff]
        %v367 = vld [vmem:[%s276 + $0x2d0] sm:$0xff]
        %v368 = vld [vmem:[%s276 + $0x2d8] sm:$0x3]
        %v369 = vld [vmem:[%s276 + $0x2e0] sm:$0xff]
        %v370 = vld [vmem:[%s276 + $0x2e8] sm:$0xff]
        %v371 = vld [vmem:[%s276 + $0x2f0] sm:$0xff]
        %v372 = vld [vmem:[%s276 + $0x2f8] sm:$0x3]
        %v373 = vld [vmem:[%s276 + $0x300] sm:$0xff]
        %v374 = vld [vmem:[%s276 + $0x308] sm:$0xff]
        %v375 = vld [vmem:[%s276 + $0x310] sm:$0xff]
        %v376 = vld [vmem:[%s276 + $0x318] sm:$0x3]
        %v377 = vld [vmem:[%s276 + $0x320] sm:$0xff]
        %v378 = vld [vmem:[%s276 + $0x328] sm:$0xff]
        %v379 = vld [vmem:[%s276 + $0x330] sm:$0xff]
        %v380 = vld [vmem:[%s276 + $0x338] sm:$0x3]
        %vm477 = vcmask 1046528
        %v478 = vrot.slane %v277, 1
        %v479 = vrot.slane %v278, 1
        %v480 = vsel %vm477, %v478, %v479
        %v481 = vrot.slane %v279, 1
        %v482 = vsel %vm477, %v479, %v481
        %v483 = vrot.slane %v280, 1
        %v484 = vsel %vm477, %v481, %v483
        %v485 = vrot.slane %v281, 1
        %v486 = vrot.slane %v282, 1
        %v487 = vsel %vm477, %v485, %v486
        %v488 = vrot.slane %v283, 1
        %v489 = vsel %vm477, %v486, %v488
        %v490 = vrot.slane %v284, 1
        %v491 = vsel %vm477, %v488, %v490
        %v492 = vrot.slane %v285, 1
        %v493 = vrot.slane %v286, 1
        %v494 = vsel %vm477, %v492, %v493
        %v495 = vrot.slane %v287, 1
        %v496 = vsel %vm477, %v493, %v495
        %v497 = vrot.slane %v288, 1
        %v498 = vsel %vm477, %v495, %v497
        %v499 = vrot.slane %v289, 1
        %v500 = vrot.slane %v290, 1
        %v501 = vsel %vm477, %v499, %v500
        %v502 = vrot.slane %v291, 1
        %v503 = vsel %vm477, %v500, %v502
        %v504 = vrot.slane %v292, 1
        %v505 = vsel %vm477, %v502, %v504
        %v506 = vrot.slane %v293, 1
        %v507 = vrot.slane %v294, 1
        %v508 = vsel %vm477, %v506, %v507
        %v509 = vrot.slane %v295, 1
        %v510 = vsel %vm477, %v507, %v509
        %v511 = vrot.slane %v296, 1
        %v512 = vsel %vm477, %v509, %v511
        %v513 = vrot.slane %v297, 1
        %v514 = vrot.slane %v298, 1
        %v515 = vsel %vm477, %v513, %v514
        %v516 = vrot.slane %v299, 1
        %v517 = vsel %vm477, %v514, %v516
        %v518 = vrot.slane %v300, 1
        %v519 = vsel %vm477, %v516, %v518
        %v520 = vrot.slane %v301, 1
        %v521 = vrot.slane %v302, 1
        %v522 = vsel %vm477, %v520, %v521
        %v523 = vrot.slane %v303, 1
        %v524 = vsel %vm477, %v521, %v523
        %v525 = vrot.slane %v304, 1
        %v526 = vsel %vm477, %v523, %v525
        %v527 = vrot.slane %v305, 1
        %v528 = vrot.slane %v306, 1
        %v529 = vsel %vm477, %v527, %v528
        %v530 = vrot.slane %v307, 1
        %v531 = vsel %vm477, %v528, %v530
        %v532 = vrot.slane %v308, 1
        %v533 = vsel %vm477, %v530, %v532
        %v534 = vrot.slane %v309, 1
        %v535 = vrot.slane %v310, 1
        %v536 = vsel %vm477, %v534, %v535
        %v537 = vrot.slane %v311, 1
        %v538 = vsel %vm477, %v535, %v537
        %v539 = vrot.slane %v312, 1
        %v540 = vsel %vm477, %v537, %v539
        %v541 = vrot.slane %v313, 1
        %v542 = vrot.slane %v314, 1
        %v543 = vsel %vm477, %v541, %v542
        %v544 = vrot.slane %v315, 1
        %v545 = vsel %vm477, %v542, %v544
        %v546 = vrot.slane %v316, 1
        %v547 = vsel %vm477, %v544, %v546
        %v548 = vrot.slane %v317, 1
        %v549 = vrot.slane %v318, 1
        %v550 = vsel %vm477, %v548, %v549
        %v551 = vrot.slane %v319, 1
        %v552 = vsel %vm477, %v549, %v551
        %v553 = vrot.slane %v320, 1
        %v554 = vsel %vm477, %v551, %v553
        %v555 = vrot.slane %v321, 1
        %v556 = vrot.slane %v322, 1
        %v557 = vsel %vm477, %v555, %v556
        %v558 = vrot.slane %v323, 1
        %v559 = vsel %vm477, %v556, %v558
        %v560 = vrot.slane %v324, 1
        %v561 = vsel %vm477, %v558, %v560
        %v562 = vrot.slane %v325, 1
        %v563 = vrot.slane %v326, 1
        %v564 = vsel %vm477, %v562, %v563
        %v565 = vrot.slane %v327, 1
        %v566 = vsel %vm477, %v563, %v565
        %v567 = vrot.slane %v328, 1
        %v568 = vsel %vm477, %v565, %v567
        %v569 = vrot.slane %v329, 1
        %v570 = vrot.slane %v330, 1
        %v571 = vsel %vm477, %v569, %v570
        %v572 = vrot.slane %v331, 1
        %v573 = vsel %vm477, %v570, %v572
        %v574 = vrot.slane %v332, 1
        %v575 = vsel %vm477, %v572, %v574
        %v576 = vrot.slane %v333, 1
        %v577 = vrot.slane %v334, 1
        %v578 = vsel %vm477, %v576, %v577
        %v579 = vrot.slane %v335, 1
        %v580 = vsel %vm477, %v577, %v579
        %v581 = vrot.slane %v336, 1
        %v582 = vsel %vm477, %v579, %v581
        %v583 = vrot.slane %v337, 1
        %v584 = vrot.slane %v338, 1
        %v585 = vsel %vm477, %v583, %v584
        %v586 = vrot.slane %v339, 1
        %v587 = vsel %vm477, %v584, %v586
        %v588 = vrot.slane %v340, 1
        %v589 = vsel %vm477, %v586, %v588
        %v590 = vrot.slane %v341, 1
        %v591 = vrot.slane %v342, 1
        %v592 = vsel %vm477, %v590, %v591
        %v593 = vrot.slane %v343, 1
        %v594 = vsel %vm477, %v591, %v593
        %v595 = vrot.slane %v344, 1
        %v596 = vsel %vm477, %v593, %v595
        %v597 = vrot.slane %v345, 1
        %v598 = vrot.slane %v346, 1
        %v599 = vsel %vm477, %v597, %v598
        %v600 = vrot.slane %v347, 1
        %v601 = vsel %vm477, %v598, %v600
        %v602 = vrot.slane %v348, 1
        %v603 = vsel %vm477, %v600, %v602
        %v604 = vrot.slane %v349, 1
        %v605 = vrot.slane %v350, 1
        %v606 = vsel %vm477, %v604, %v605
        %v607 = vrot.slane %v351, 1
        %v608 = vsel %vm477, %v605, %v607
        %v609 = vrot.slane %v352, 1
        %v610 = vsel %vm477, %v607, %v609
        %v611 = vrot.slane %v353, 1
        %v612 = vrot.slane %v354, 1
        %v613 = vsel %vm477, %v611, %v612
        %v614 = vrot.slane %v355, 1
        %v615 = vsel %vm477, %v612, %v614
        %v616 = vrot.slane %v356, 1
        %v617 = vsel %vm477, %v614, %v616
        %v618 = vrot.slane %v357, 1
        %v619 = vrot.slane %v358, 1
        %v620 = vsel %vm477, %v618, %v619
        %v621 = vrot.slane %v359, 1
        %v622 = vsel %vm477, %v619, %v621
        %v623 = vrot.slane %v360, 1
        %v624 = vsel %vm477, %v621, %v623
        %v625 = vrot.slane %v361, 1
        %v626 = vrot.slane %v362, 1
        %v627 = vsel %vm477, %v625, %v626
        %v628 = vrot.slane %v363, 1
        %v629 = vsel %vm477, %v626, %v628
        %v630 = vrot.slane %v364, 1
        %v631 = vsel %vm477, %v628, %v630
        %v632 = vrot.slane %v365, 1
        %v633 = vrot.slane %v366, 1
        %v634 = vsel %vm477, %v632, %v633
        %v635 = vrot.slane %v367, 1
        %v636 = vsel %vm477, %v633, %v635
        %v637 = vrot.slane %v368, 1
        %v638 = vsel %vm477, %v635, %v637
        %v639 = vrot.slane %v369, 1
        %v640 = vrot.slane %v370, 1
        %v641 = vsel %vm477, %v639, %v640
        %v642 = vrot.slane %v371, 1
        %v643 = vsel %vm477, %v640, %v642
        %v644 = vrot.slane %v372, 1
        %v645 = vsel %vm477, %v642, %v644
        %vm718 = vcmask 1045504
        %v719 = vrot.slane %v277, 2
        %v720 = vrot.slane %v278, 2
        %v721 = vsel %vm718, %v719, %v720
        %v722 = vrot.slane %v279, 2
        %v723 = vsel %vm718, %v720, %v722
        %v724 = vrot.slane %v280, 2
        %v725 = vsel %vm718, %v722, %v724
        %v726 = vrot.slane %v281, 2
        %v727 = vrot.slane %v282, 2
        %v728 = vsel %vm718, %v726, %v727
        %v729 = vrot.slane %v283, 2
        %v730 = vsel %vm718, %v727, %v729
        %v731 = vrot.slane %v284, 2
        %v732 = vsel %vm718, %v729, %v731
        %v733 = vrot.slane %v285, 2
        %v734 = vrot.slane %v286, 2
        %v735 = vsel %vm718, %v733, %v734
        %v736 = vrot.slane %v287, 2
        %v737 = vsel %vm718, %v734, %v736
        %v738 = vrot.slane %v288, 2
        %v739 = vsel %vm718, %v736, %v738
        %v740 = vrot.slane %v289, 2
        %v741 = vrot.slane %v290, 2
        %v742 = vsel %vm718, %v740, %v741
        %v743 = vrot.slane %v291, 2
        %v744 = vsel %vm718, %v741, %v743
        %v745 = vrot.slane %v292, 2
        %v746 = vsel %vm718, %v743, %v745
        %v747 = vrot.slane %v293, 2
        %v748 = vrot.slane %v294, 2
        %v749 = vsel %vm718, %v747, %v748
        %v750 = vrot.slane %v295, 2
        %v751 = vsel %vm718, %v748, %v750
        %v752 = vrot.slane %v296, 2
        %v753 = vsel %vm718, %v750, %v752
        %v754 = vrot.slane %v297, 2
        %v755 = vrot.slane %v298, 2
        %v756 = vsel %vm718, %v754, %v755
        %v757 = vrot.slane %v299, 2
        %v758 = vsel %vm718, %v755, %v757
        %v759 = vrot.slane %v300, 2
        %v760 = vsel %vm718, %v757, %v759
        %v761 = vrot.slane %v301, 2
        %v762 = vrot.slane %v302, 2
        %v763 = vsel %vm718, %v761, %v762
        %v764 = vrot.slane %v303, 2
        %v765 = vsel %vm718, %v762, %v764
        %v766 = vrot.slane %v304, 2
        %v767 = vsel %vm718, %v764, %v766
        %v768 = vrot.slane %v305, 2
        %v769 = vrot.slane %v306, 2
        %v770 = vsel %vm718, %v768, %v769
        %v771 = vrot.slane %v307, 2
        %v772 = vsel %vm718, %v769, %v771
        %v773 = vrot.slane %v308, 2
        %v774 = vsel %vm718, %v771, %v773
        %v775 = vrot.slane %v309, 2
        %v776 = vrot.slane %v310, 2
        %v777 = vsel %vm718, %v775, %v776
        %v778 = vrot.slane %v311, 2
        %v779 = vsel %vm718, %v776, %v778
        %v780 = vrot.slane %v312, 2
        %v781 = vsel %vm718, %v778, %v780
        %v782 = vrot.slane %v313, 2
        %v783 = vrot.slane %v314, 2
        %v784 = vsel %vm718, %v782, %v783
        %v785 = vrot.slane %v315, 2
        %v786 = vsel %vm718, %v783, %v785
        %v787 = vrot.slane %v316, 2
        %v788 = vsel %vm718, %v785, %v787
        %v789 = vrot.slane %v317, 2
        %v790 = vrot.slane %v318, 2
        %v791 = vsel %vm718, %v789, %v790
        %v792 = vrot.slane %v319, 2
        %v793 = vsel %vm718, %v790, %v792
        %v794 = vrot.slane %v320, 2
        %v795 = vsel %vm718, %v792, %v794
        %v796 = vrot.slane %v321, 2
        %v797 = vrot.slane %v322, 2
        %v798 = vsel %vm718, %v796, %v797
        %v799 = vrot.slane %v323, 2
        %v800 = vsel %vm718, %v797, %v799
        %v801 = vrot.slane %v324, 2
        %v802 = vsel %vm718, %v799, %v801
        %v803 = vrot.slane %v325, 2
        %v804 = vrot.slane %v326, 2
        %v805 = vsel %vm718, %v803, %v804
        %v806 = vrot.slane %v327, 2
        %v807 = vsel %vm718, %v804, %v806
        %v808 = vrot.slane %v328, 2
        %v809 = vsel %vm718, %v806, %v808
        %v810 = vrot.slane %v329, 2
        %v811 = vrot.slane %v330, 2
        %v812 = vsel %vm718, %v810, %v811
        %v813 = vrot.slane %v331, 2
        %v814 = vsel %vm718, %v811, %v813
        %v815 = vrot.slane %v332, 2
        %v816 = vsel %vm718, %v813, %v815
        %v817 = vrot.slane %v333, 2
        %v818 = vrot.slane %v334, 2
        %v819 = vsel %vm718, %v817, %v818
        %v820 = vrot.slane %v335, 2
        %v821 = vsel %vm718, %v818, %v820
        %v822 = vrot.slane %v336, 2
        %v823 = vsel %vm718, %v820, %v822
        %v824 = vrot.slane %v337, 2
        %v825 = vrot.slane %v338, 2
        %v826 = vsel %vm718, %v824, %v825
        %v827 = vrot.slane %v339, 2
        %v828 = vsel %vm718, %v825, %v827
        %v829 = vrot.slane %v340, 2
        %v830 = vsel %vm718, %v827, %v829
        %v831 = vrot.slane %v341, 2
        %v832 = vrot.slane %v342, 2
        %v833 = vsel %vm718, %v831, %v832
        %v834 = vrot.slane %v343, 2
        %v835 = vsel %vm718, %v832, %v834
        %v836 = vrot.slane %v344, 2
        %v837 = vsel %vm718, %v834, %v836
        %v838 = vrot.slane %v345, 2
        %v839 = vrot.slane %v346, 2
        %v840 = vsel %vm718, %v838, %v839
        %v841 = vrot.slane %v347, 2
        %v842 = vsel %vm718, %v839, %v841
        %v843 = vrot.slane %v348, 2
        %v844 = vsel %vm718, %v841, %v843
        %v845 = vrot.slane %v349, 2
        %v846 = vrot.slane %v350, 2
        %v847 = vsel %vm718, %v845, %v846
        %v848 = vrot.slane %v351, 2
        %v849 = vsel %vm718, %v846, %v848
        %v850 = vrot.slane %v352, 2
        %v851 = vsel %vm718, %v848, %v850
        %v852 = vrot.slane %v353, 2
        %v853 = vrot.slane %v354, 2
        %v854 = vsel %vm718, %v852, %v853
        %v855 = vrot.slane %v355, 2
        %v856 = vsel %vm718, %v853, %v855
        %v857 = vrot.slane %v356, 2
        %v858 = vsel %vm718, %v855, %v857
        %v859 = vrot.slane %v357, 2
        %v860 = vrot.slane %v358, 2
        %v861 = vsel %vm718, %v859, %v860
        %v862 = vrot.slane %v359, 2
        %v863 = vsel %vm718, %v860, %v862
        %v864 = vrot.slane %v360, 2
        %v865 = vsel %vm718, %v862, %v864
        %v866 = vrot.slane %v361, 2
        %v867 = vrot.slane %v362, 2
        %v868 = vsel %vm718, %v866, %v867
        %v869 = vrot.slane %v363, 2
        %v870 = vsel %vm718, %v867, %v869
        %v871 = vrot.slane %v364, 2
        %v872 = vsel %vm718, %v869, %v871
        %v873 = vrot.slane %v365, 2
        %v874 = vrot.slane %v366, 2
        %v875 = vsel %vm718, %v873, %v874
        %v876 = vrot.slane %v367, 2
        %v877 = vsel %vm718, %v874, %v876
        %v878 = vrot.slane %v368, 2
        %v879 = vsel %vm718, %v876, %v878
        %v880 = vrot.slane %v369, 2
        %v881 = vrot.slane %v370, 2
        %v882 = vsel %vm718, %v880, %v881
        %v883 = vrot.slane %v371, 2
        %v884 = vsel %vm718, %v881, %v883
        %v885 = vrot.slane %v372, 2
        %v886 = vsel %vm718, %v883, %v885
        %v963 = vrot.slane %v373, 1
        %v964 = vrot.slane %v374, 1
        %v965 = vsel %vm477, %v963, %v964
        %v966 = vrot.slane %v375, 1
        %v967 = vsel %vm477, %v964, %v966
        %v968 = vrot.slane %v376, 1
        %v969 = vsel %vm477, %v966, %v968
        %v973 = vrot.slane %v373, 2
        %v974 = vrot.slane %v374, 2
        %v975 = vsel %vm718, %v973, %v974
        %v976 = vrot.slane %v375, 2
        %v977 = vsel %vm718, %v974, %v976
        %v978 = vrot.slane %v376, 2
        %v979 = vsel %vm718, %v976, %v978
        %v987 = vrot.slane %v377, 1
        %v988 = vrot.slane %v378, 1
        %v989 = vsel %vm477, %v987, %v988
        %v990 = vrot.slane %v379, 1
        %v991 = vsel %vm477, %v988, %v990
        %v992 = vrot.slane %v380, 1
        %v993 = vsel %vm477, %v990, %v992
        %v997 = vrot.slane %v377, 2
        %v998 = vrot.slane %v378, 2
        %v999 = vsel %vm718, %v997, %v998
        %v1000 = vrot.slane %v379, 2
        %v1001 = vsel %vm718, %v998, %v1000
        %v1002 = vrot.slane %v380, 2
        %v1003 = vsel %vm718, %v1000, %v1002
        %v1007 = vld [vmem:[%s1] sm:$0xff]
        %v1008 = vld [vmem:[%s1 + $0x8] sm:$0xff]
        %v1009 = vld [vmem:[%s1 + $0x10] sm:$0xff]
        %v1010 = vld [vmem:[%s1 + $0x18] sm:$0xff]
        %v1011 = vld [vmem:[%s1 + $0x20] sm:$0xff]
        %v1012 = vld [vmem:[%s1 + $0x28] sm:$0xff]
        %v1013 = vld [vmem:[%s1 + $0x30] sm:$0xff]
        %v1014 = vld [vmem:[%s1 + $0x38] sm:$0xff]
        %v1015 = vld [vmem:[%s1 + $0x40] sm:$0xff]
        %v1016 = vld [vmem:[%s1 + $0x48] sm:$0xff]
        %v1017 = vld [vmem:[%s1 + $0x50] sm:$0xff]
        %v1018 = vld [vmem:[%s1 + $0x58] sm:$0xff]
        %v1019 = vld [vmem:[%s1 + $0x60] sm:$0xff]
        %v1020 = vld [vmem:[%s1 + $0x68] sm:$0xff]
        %v1021 = vld [vmem:[%s1 + $0x70] sm:$0xff]
        %v1022 = vld [vmem:[%s1 + $0x78] sm:$0xff]
        %v1023 = vld [vmem:[%s1 + $0x80] sm:$0xff]
        %v1024 = vld [vmem:[%s1 + $0x88] sm:$0xff]
        %v1025 = vld [vmem:[%s1 + $0x90] sm:$0xff]
        %v1026 = vld [vmem:[%s1 + $0x98] sm:$0xff]
        %v1027 = vld [vmem:[%s1 + $0xa0] sm:$0xff]
        %v1028 = vld [vmem:[%s1 + $0xa8] sm:$0xff]
        %v1029 = vld [vmem:[%s1 + $0xb0] sm:$0xff]
        %v1030 = vld [vmem:[%s1 + $0xb8] sm:$0xff]
        %v1031 = vld [vmem:[%s1 + $0xc0] sm:$0xff]
        %v1032 = vld [vmem:[%s1 + $0xc8] sm:$0xff]
        %v1033 = vld [vmem:[%s1 + $0xd0] sm:$0xff]
        %v1034 = vld [vmem:[%s1 + $0xd8] sm:$0xff]
        %v1035 = vld [vmem:[%s1 + $0xe0] sm:$0xff]
        %v1036 = vld [vmem:[%s1 + $0xe8] sm:$0xff]
        %v1037 = vld [vmem:[%s1 + $0xf0] sm:$0xff]
        %v1038 = vld [vmem:[%s1 + $0xf8] sm:$0xff]
        %v1039 = vld [vmem:[%s1 + $0x100] sm:$0xff]
        %v1040 = vld [vmem:[%s1 + $0x108] sm:$0xff]
        %v1041 = vld [vmem:[%s1 + $0x110] sm:$0xff]
        %v1042 = vld [vmem:[%s1 + $0x118] sm:$0xff]
        %v1043 = vld [vmem:[%s1 + $0x120] sm:$0xff]
        %v1044 = vld [vmem:[%s1 + $0x128] sm:$0xff]
        %v1045 = vld [vmem:[%s1 + $0x130] sm:$0xff]
        %v1046 = vld [vmem:[%s1 + $0x138] sm:$0xff]
        %v1047 = vld [vmem:[%s1 + $0x140] sm:$0xff]
        %v1048 = vld [vmem:[%s1 + $0x148] sm:$0xff]
        %v1049 = vld [vmem:[%s1 + $0x150] sm:$0xff]
        %v1050 = vld [vmem:[%s1 + $0x158] sm:$0xff]
        %v1051 = vld [vmem:[%s1 + $0x160] sm:$0xff]
        %v1052 = vld [vmem:[%s1 + $0x168] sm:$0xff]
        %v1053 = vld [vmem:[%s1 + $0x170] sm:$0xff]
        %v1054 = vld [vmem:[%s1 + $0x178] sm:$0xff]
        %v1055 = vld [vmem:[%s1 + $0x180] sm:$0xff]
        %v1056 = vld [vmem:[%s1 + $0x188] sm:$0xff]
        %v1057 = vld [vmem:[%s1 + $0x190] sm:$0xff]
        %v1058 = vld [vmem:[%s1 + $0x198] sm:$0xff]
        %v1059 = vld [vmem:[%s1 + $0x1a0] sm:$0xff]
        %v1060 = vld [vmem:[%s1 + $0x1a8] sm:$0xff]
        %v1061 = vld [vmem:[%s1 + $0x1b0] sm:$0xff]
        %v1062 = vld [vmem:[%s1 + $0x1b8] sm:$0xff]
        %v1063 = vld [vmem:[%s1 + $0x1c0] sm:$0xff]
        %v1064 = vld [vmem:[%s1 + $0x1c8] sm:$0xff]
        %v1065 = vld [vmem:[%s1 + $0x1d0] sm:$0xff]
        %v1066 = vld [vmem:[%s1 + $0x1d8] sm:$0xff]
        %v1067 = vld [vmem:[%s1 + $0x1e0] sm:$0xff]
        %v1068 = vld [vmem:[%s1 + $0x1e8] sm:$0xff]
        %v1069 = vld [vmem:[%s1 + $0x1f0] sm:$0xff]
        %v1070 = vld [vmem:[%s1 + $0x1f8] sm:$0xff]
        %v1071 = vld [vmem:[%s1 + $0x200] sm:$0xff]
        %v1072 = vld [vmem:[%s1 + $0x208] sm:$0xff]
        %v1073 = vld [vmem:[%s1 + $0x210] sm:$0xff]
        %v1074 = vld [vmem:[%s1 + $0x218] sm:$0xff]
        %v1075 = vld [vmem:[%s1 + $0x220] sm:$0xff]
        %v1076 = vld [vmem:[%s1 + $0x228] sm:$0xff]
        %v1077 = vld [vmem:[%s1 + $0x230] sm:$0xff]
        %v1078 = vld [vmem:[%s1 + $0x238] sm:$0xff]
        %v1079 = vld [vmem:[%s1 + $0x240] sm:$0xff]
        %v1080 = vld [vmem:[%s1 + $0x248] sm:$0xff]
        %v1081 = vld [vmem:[%s1 + $0x250] sm:$0xff]
        %v1082 = vld [vmem:[%s1 + $0x258] sm:$0xff]
        %v1083 = vld [vmem:[%s1 + $0x260] sm:$0xff]
        %v1084 = vld [vmem:[%s1 + $0x268] sm:$0xff]
        %v1085 = vld [vmem:[%s1 + $0x270] sm:$0xff]
        %v1086 = vld [vmem:[%s1 + $0x278] sm:$0xff]
        %v1087 = vld [vmem:[%s1 + $0x280] sm:$0xff]
        %v1088 = vld [vmem:[%s1 + $0x288] sm:$0xff]
        %v1089 = vld [vmem:[%s1 + $0x290] sm:$0xff]
        %v1090 = vld [vmem:[%s1 + $0x298] sm:$0xff]
        %v1091 = vld [vmem:[%s1 + $0x2a0] sm:$0xff]
        %v1092 = vld [vmem:[%s1 + $0x2a8] sm:$0xff]
        %v1093 = vld [vmem:[%s1 + $0x2b0] sm:$0xff]
        %v1094 = vld [vmem:[%s1 + $0x2b8] sm:$0xff]
        %v1095 = vld [vmem:[%s1 + $0x2c0] sm:$0xff]
        %v1096 = vld [vmem:[%s1 + $0x2c8] sm:$0xff]
        %v1097 = vld [vmem:[%s1 + $0x2d0] sm:$0xff]
        %v1098 = vld [vmem:[%s1 + $0x2d8] sm:$0xff]
        %v1099 = vld [vmem:[%s1 + $0x2e0] sm:$0xff]
        %v1100 = vld [vmem:[%s1 + $0x2e8] sm:$0xff]
        %v1101 = vld [vmem:[%s1 + $0x2f0] sm:$0xff]
        %v1102 = vld [vmem:[%s1 + $0x2f8] sm:$0xff]
        %v1103 = vld [vmem:[%s1 + $0x300] sm:$0xff]
        %v1104 = vld [vmem:[%s1 + $0x308] sm:$0xff]
        %v1105 = vld [vmem:[%s1 + $0x310] sm:$0xff]
        %v1106 = vld [vmem:[%s1 + $0x318] sm:$0xff]
        %v1107 = vld [vmem:[%s1 + $0x320] sm:$0xff]
        %v1108 = vld [vmem:[%s1 + $0x328] sm:$0xff]
        %v1109 = vld [vmem:[%s1 + $0x330] sm:$0xff]
        %v1110 = vld [vmem:[%s1 + $0x338] sm:$0xff]
        %v1111 = vld [vmem:[%s1 + $0x340] sm:$0xff]
        %v1112 = vld [vmem:[%s1 + $0x348] sm:$0xff]
        %v1113 = vld [vmem:[%s1 + $0x350] sm:$0xff]
        %v1114 = vld [vmem:[%s1 + $0x358] sm:$0xff]
        %v1115 = vld [vmem:[%s1 + $0x360] sm:$0xff]
        %v1116 = vld [vmem:[%s1 + $0x368] sm:$0xff]
        %v1117 = vld [vmem:[%s1 + $0x370] sm:$0xff]
        %v1118 = vld [vmem:[%s1 + $0x378] sm:$0xff]
        %v1119 = vld [vmem:[%s1 + $0x380] sm:$0xff]
        %v1120 = vld [vmem:[%s1 + $0x388] sm:$0xff]
        %v1121 = vld [vmem:[%s1 + $0x390] sm:$0xff]
        %v1122 = vld [vmem:[%s1 + $0x398] sm:$0xff]
        %v1123 = vld [vmem:[%s1 + $0x3a0] sm:$0xff]
        %v1124 = vld [vmem:[%s1 + $0x3a8] sm:$0xff]
        %v1125 = vld [vmem:[%s1 + $0x3b0] sm:$0xff]
        %v1126 = vld [vmem:[%s1 + $0x3b8] sm:$0xff]
        %v1127 = vld [vmem:[%s1 + $0x3c0] sm:$0xff]
        %v1128 = vld [vmem:[%s1 + $0x3c8] sm:$0xff]
        %v1129 = vld [vmem:[%s1 + $0x3d0] sm:$0xff]
        %v1130 = vld [vmem:[%s1 + $0x3d8] sm:$0xff]
        %v1131 = vld [vmem:[%s1 + $0x3e0] sm:$0xff]
        %v1132 = vld [vmem:[%s1 + $0x3e8] sm:$0xff]
        %v1133 = vld [vmem:[%s1 + $0x3f0] sm:$0xff]
        %v1134 = vld [vmem:[%s1 + $0x3f8] sm:$0xff]
        %v1135 = vld [vmem:[%s1 + $0x400] sm:$0xff]
        %v1136 = vld [vmem:[%s1 + $0x408] sm:$0xff]
        %v1137 = vld [vmem:[%s1 + $0x410] sm:$0xff]
        %v1138 = vld [vmem:[%s1 + $0x418] sm:$0xff]
        %v1139 = vld [vmem:[%s1 + $0x420] sm:$0xff]
        %v1140 = vld [vmem:[%s1 + $0x428] sm:$0xff]
        %v1141 = vld [vmem:[%s1 + $0x430] sm:$0xff]
        %v1142 = vld [vmem:[%s1 + $0x438] sm:$0xff]
        %v1143 = vld [vmem:[%s1 + $0x440] sm:$0xff]
        %v1144 = vld [vmem:[%s1 + $0x448] sm:$0xff]
        %v1145 = vld [vmem:[%s1 + $0x450] sm:$0xff]
        %v1146 = vld [vmem:[%s1 + $0x458] sm:$0xff]
        %v1147 = vld [vmem:[%s1 + $0x460] sm:$0xff]
        %v1148 = vld [vmem:[%s1 + $0x468] sm:$0xff]
        %v1149 = vld [vmem:[%s1 + $0x470] sm:$0xff]
        %v1150 = vld [vmem:[%s1 + $0x478] sm:$0xff]
        %1151 = vmatprep.subr.mxu0 0.0
        %1152 = vmatpush1.msra.mxu0 %v1007
        %1153 = vmatprep.subr.mxu0 0.0
        %1154 = vmatpush1.msra.mxu0 %v1008
        %1155 = vmatprep.subr.mxu0 0.0
        %1156 = vmatpush1.msra.mxu0 %v1009
        %1157 = vmatprep.subr.mxu0 0.0
        %1158 = vmatpush1.msra.mxu0 %v1010
        %1159 = vmatprep.subr.mxu0 0.0
        %1160 = vmatpush1.msra.mxu0 %v1011
        %1161 = vmatprep.subr.mxu0 0.0
        %1162 = vmatpush1.msra.mxu0 %v1012
        %1163 = vmatprep.subr.mxu0 0.0
        %1164 = vmatpush1.msra.mxu0 %v1013
        %1165 = vmatprep.subr.mxu0 0.0
        %1166 = vmatpush1.msra.mxu0 %v1014
        %1167 = vmatprep.subr.mxu0 0.0
        %1168 = vmatpush1.msra.mxu0 %v1015
        %1169 = vmatprep.subr.mxu0 0.0
        %1170 = vmatpush1.msra.mxu0 %v1016
        %1171 = vmatprep.subr.mxu0 0.0
        %1172 = vmatpush1.msra.mxu0 %v1017
        %1173 = vmatprep.subr.mxu0 0.0
        %1174 = vmatpush1.msra.mxu0 %v1018
        %1175 = vmatprep.subr.mxu0 0.0
        %1176 = vmatpush1.msra.mxu0 %v1019
        %1177 = vmatprep.subr.mxu0 0.0
        %1178 = vmatpush1.msra.mxu0 %v1020
        %1179 = vmatprep.subr.mxu0 0.0
        %1180 = vmatpush1.msra.mxu0 %v1021
        %1181 = vmatprep.subr.mxu0 0.0
        %1182 = vmatpush1.msra.mxu0 %v1022
        %1183 = vmatprep.subr.mxu0 0.0
        %1184 = vmatpush1.msra.mxu0 %v1023
        %1185 = vmatprep.subr.mxu0 0.0
        %1186 = vmatpush1.msra.mxu0 %v1024
        %1187 = vmatprep.subr.mxu0 0.0
        %1188 = vmatpush1.msra.mxu0 %v1025
        %1189 = vmatprep.subr.mxu0 0.0
        %1190 = vmatpush1.msra.mxu0 %v1026
        %1191 = vmatprep.subr.mxu0 0.0
        %1192 = vmatpush1.msra.mxu0 %v1027
        %1193 = vmatprep.subr.mxu0 0.0
        %1194 = vmatpush1.msra.mxu0 %v1028
        %1195 = vmatprep.subr.mxu0 0.0
        %1196 = vmatpush1.msra.mxu0 %v1029
        %1197 = vmatprep.subr.mxu0 0.0
        %1198 = vmatpush1.msra.mxu0 %v1030
        %1199 = vmatprep.subr.mxu0 0.0
        %1200 = vmatpush1.msra.mxu0 %v1031
        %1201 = vmatprep.subr.mxu0 0.0
        %1202 = vmatpush1.msra.mxu0 %v1032
        %1203 = vmatprep.subr.mxu0 0.0
        %1204 = vmatpush1.msra.mxu0 %v1033
        %1205 = vmatprep.subr.mxu0 0.0
        %1206 = vmatpush1.msra.mxu0 %v1034
        %1207 = vmatprep.subr.mxu0 0.0
        %1208 = vmatpush1.msra.mxu0 %v1035
        %1209 = vmatprep.subr.mxu0 0.0
        %1210 = vmatpush1.msra.mxu0 %v1036
        %1211 = vmatprep.subr.mxu0 0.0
        %1212 = vmatpush1.msra.mxu0 %v1037
        %1213 = vmatprep.subr.mxu0 0.0
        %1214 = vmatpush1.msra.mxu0 %v1038
        %1215 = vmatprep.mubr.f32.mxu0 %v480
        %1216 = vmatmul.mubr.f32.gmra.mrb[0].mxu0 %v277
        %v1217 = vpop.f32.mrb[0].mxu0
        %v1218 = vadd.f32 0.0, %v1217
        %v1219 = vpop.f32.mrb[0].mxu0
        %1220 = vmatprep.mubr.f32.mxu0 %v482
        %1221 = vmatmul.mubr.f32.gmra.mrb[0].mxu0 %v278
        %v1222 = vpop.f32.mrb[0].mxu0
        %v1223 = vadd.f32 0.0, %v1222
        %v1224 = vpop.f32.mrb[0].mxu0
        %1225 = vmatprep.mubr.f32.mxu0 %v484
        %1226 = vmatmul.mubr.f32.gmra.mrb[0].mxu0 %v279
        %v1227 = vpop.f32.mrb[0].mxu0
        %v1228 = vadd.f32 0.0, %v1227
        %v1229 = vpop.f32.mrb[0].mxu0
        %1230 = vmatprep.mubr.f32.mxu0 %v487
        %1231 = vmatmul.mubr.f32.gmra.mrb[0].mxu0 %v281
        %v1232 = vpop.f32.mrb[0].mxu0
        %v1233 = vadd.f32 0.0, %v1232
        %v1234 = vpop.f32.mrb[0].mxu0
        %1235 = vmatprep.mubr.f32.mxu0 %v489
        %1236 = vmatmul.mubr.f32.gmra.mrb[0].mxu0 %v282
        %v1237 = vpop.f32.mrb[0].mxu0
        %v1238 = vadd.f32 0.0, %v1237
        %v1239 = vpop.f32.mrb[0].mxu0
        %1240 = vmatprep.mubr.f32.mxu0 %v491
        %1241 = vmatmul.mubr.f32.gmra.mrb[0].mxu0 %v283
        %v1242 = vpop.f32.mrb[0].mxu0
        %v1243 = vadd.f32 0.0, %v1242
        %v1244 = vpop.f32.mrb[0].mxu0
        %1245 = vmatprep.mubr.f32.mxu0 %v494
        %1246 = vmatmul.mubr.f32.gmra.mrb[0].mxu0 %v285
        %v1247 = vpop.f32.mrb[0].mxu0
        %v1248 = vadd.f32 0.0, %v1247
        %v1249 = vpop.f32.mrb[0].mxu0
        %1250 = vmatprep.mubr.f32.mxu0 %v496
        %1251 = vmatmul.mubr.f32.gmra.mrb[0].mxu0 %v286
        %v1252 = vpop.f32.mrb[0].mxu0
        %v1253 = vadd.f32 0.0, %v1252
        %v1254 = vpop.f32.mrb[0].mxu0
        %1255 = vmatprep.mubr.f32.mxu0 %v498
        %1256 = vmatmul.mubr.f32.gmra.mrb[0].mxu0 %v287
        %v1257 = vpop.f32.mrb[0].mxu0
        %v1258 = vadd.f32 0.0, %v1257
        %v1259 = vpop.f32.mrb[0].mxu0
        %1260 = vmatprep.mubr.f32.mxu0 %v501
        %1261 = vmatmul.mubr.f32.gmra.mrb[0].mxu0 %v289
        %v1262 = vpop.f32.mrb[0].mxu0
        %v1263 = vadd.f32 0.0, %v1262
        %v1264 = vpop.f32.mrb[0].mxu0
        %1265 = vmatprep.mubr.f32.mxu0 %v503
        %1266 = vmatmul.mubr.f32.gmra.mrb[0].mxu0 %v290
        %v1267 = vpop.f32.mrb[0].mxu0
        %v1268 = vadd.f32 0.0, %v1267
        %v1269 = vpop.f32.mrb[0].mxu0
        %1270 = vmatprep.mubr.f32.mxu0 %v505
        %1271 = vmatmul.mubr.f32.gmra.mrb[0].mxu0 %v291
        %v1272 = vpop.f32.mrb[0].mxu0
        %v1273 = vadd.f32 0.0, %v1272
        %v1274 = vpop.f32.mrb[0].mxu0
        %1275 = vmatprep.mubr.f32.mxu0 %v508
        %1276 = vmatmul.mubr.f32.gmra.mrb[0].mxu0 %v293
        %v1277 = vpop.f32.mrb[0].mxu0
        %v1278 = vadd.f32 0.0, %v1277
        %v1279 = vpop.f32.mrb[0].mxu0
        %1280 = vmatprep.mubr.f32.mxu0 %v510
        %1281 = vmatmul.mubr.f32.gmra.mrb[0].mxu0 %v294
        %v1282 = vpop.f32.mrb[0].mxu0
        %v1283 = vadd.f32 0.0, %v1282
        %v1284 = vpop.f32.mrb[0].mxu0
        %1285 = vmatprep.mubr.f32.mxu0 %v512
        %1286 = vmatmul.mubr.f32.gmra.mrb[0].mxu0 %v295
        %v1287 = vpop.f32.mrb[0].mxu0
        %v1288 = vadd.f32 0.0, %v1287
        %v1289 = vpop.f32.mrb[0].mxu0
        %1290 = vmatprep.mubr.f32.mxu0 %v515
        %1291 = vmatmul.mubr.f32.gmra.mrb[0].mxu0 %v297
        %v1292 = vpop.f32.mrb[0].mxu0
        %v1293 = vadd.f32 0.0, %v1292
        %v1294 = vpop.f32.mrb[0].mxu0
        %1295 = vmatprep.mubr.f32.mxu0 %v517
        %1296 = vmatmul.mubr.f32.gmra.mrb[0].mxu0 %v298
        %v1297 = vpop.f32.mrb[0].mxu0
        %v1298 = vadd.f32 0.0, %v1297
        %v1299 = vpop.f32.mrb[0].mxu0
        %1300 = vmatprep.mubr.f32.mxu0 %v519
        %1301 = vmatmul.mubr.f32.gmra.mrb[0].mxu0 %v299
        %v1302 = vpop.f32.mrb[0].mxu0
        %v1303 = vadd.f32 0.0, %v1302
        %v1304 = vpop.f32.mrb[0].mxu0
        %1305 = vmatprep.mubr.f32.mxu0 %v522
        %1306 = vmatmul.mubr.f32.gmra.mrb[0].mxu0 %v301
        %v1307 = vpop.f32.mrb[0].mxu0
        %v1308 = vadd.f32 0.0, %v1307
        %v1309 = vpop.f32.mrb[0].mxu0
        %1310 = vmatprep.mubr.f32.mxu0 %v524
        %1311 = vmatmul.mubr.f32.gmra.mrb[0].mxu0 %v302
        %v1312 = vpop.f32.mrb[0].mxu0
        %v1313 = vadd.f32 0.0, %v1312
        %v1314 = vpop.f32.mrb[0].mxu0
        %1315 = vmatprep.mubr.f32.mxu0 %v526
        %1316 = vmatmul.mubr.f32.gmra.mrb[0].mxu0 %v303
        %v1317 = vpop.f32.mrb[0].mxu0
        %v1318 = vadd.f32 0.0, %v1317
        %v1319 = vpop.f32.mrb[0].mxu0
        %1320 = vmatprep.mubr.f32.mxu0 %v529
        %1321 = vmatmul.mubr.f32.gmra.mrb[0].mxu0 %v305
        %v1322 = vpop.f32.mrb[0].mxu0
        %v1323 = vadd.f32 0.0, %v1322
        %v1324 = vpop.f32.mrb[0].mxu0
        %1325 = vmatprep.mubr.f32.mxu0 %v531
        %1326 = vmatmul.mubr.f32.gmra.mrb[0].mxu0 %v306
        %v1327 = vpop.f32.mrb[0].mxu0
        %v1328 = vadd.f32 0.0, %v1327
        %v1329 = vpop.f32.mrb[0].mxu0
        %1330 = vmatprep.mubr.f32.mxu0 %v533
        %1331 = vmatmul.mubr.f32.gmra.mrb[0].mxu0 %v307
        %v1332 = vpop.f32.mrb[0].mxu0
        %v1333 = vadd.f32 0.0, %v1332
        %v1334 = vpop.f32.mrb[0].mxu0
        %1335 = vmatprep.mubr.f32.mxu0 %v536
        %1336 = vmatmul.mubr.f32.gmra.mrb[0].mxu0 %v309
        %v1337 = vpop.f32.mrb[0].mxu0
        %v1338 = vadd.f32 0.0, %v1337
        %v1339 = vpop.f32.mrb[0].mxu0
        %1340 = vmatprep.mubr.f32.mxu0 %v538
        %1341 = vmatmul.mubr.f32.gmra.mrb[0].mxu0 %v310
        %v1342 = vpop.f32.mrb[0].mxu0
        %v1343 = vadd.f32 0.0, %v1342
        %v1344 = vpop.f32.mrb[0].mxu0
        %1345 = vmatprep.mubr.f32.mxu0 %v540
        %1346 = vmatmul.mubr.f32.gmra.mrb[0].mxu0 %v311
        %v1347 = vpop.f32.mrb[0].mxu0
        %v1348 = vadd.f32 0.0, %v1347
        %v1349 = vpop.f32.mrb[0].mxu0
        %1350 = vmatprep.mubr.f32.mxu0 %v543
        %1351 = vmatmul.mubr.f32.gmra.mrb[0].mxu0 %v313
        %v1352 = vpop.f32.mrb[0].mxu0
        %v1353 = vadd.f32 0.0, %v1352
        %v1354 = vpop.f32.mrb[0].mxu0
        %1355 = vmatprep.mubr.f32.mxu0 %v545
        %1356 = vmatmul.mubr.f32.gmra.mrb[0].mxu0 %v314
        %v1357 = vpop.f32.mrb[0].mxu0
        %v1358 = vadd.f32 0.0, %v1357
        %v1359 = vpop.f32.mrb[0].mxu0
        %1360 = vmatprep.mubr.f32.mxu0 %v547
        %1361 = vmatmul.mubr.f32.gmra.mrb[0].mxu0 %v315
        %v1362 = vpop.f32.mrb[0].mxu0
        %v1363 = vadd.f32 0.0, %v1362
        %v1364 = vpop.f32.mrb[0].mxu0
        %1365 = vmatprep.mubr.f32.mxu0 %v550
        %1366 = vmatmul.mubr.f32.gmra.mrb[0].mxu0 %v317
        %v1367 = vpop.f32.mrb[0].mxu0
        %v1368 = vadd.f32 0.0, %v1367
        %v1369 = vpop.f32.mrb[0].mxu0
        %1370 = vmatprep.mubr.f32.mxu0 %v552
        %1371 = vmatmul.mubr.f32.gmra.mrb[0].mxu0 %v318
        %v1372 = vpop.f32.mrb[0].mxu0
        %v1373 = vadd.f32 0.0, %v1372
        %v1374 = vpop.f32.mrb[0].mxu0
        %1375 = vmatprep.mubr.f32.mxu0 %v554
        %1376 = vmatmul.mubr.f32.gmra.mrb[0].mxu0 %v319
        %v1377 = vpop.f32.mrb[0].mxu0
        %v1378 = vadd.f32 0.0, %v1377
        %v1379 = vpop.f32.mrb[0].mxu0
        %1380 = vmatprep.mubr.f32.mxu0 %v557
        %1381 = vmatmul.mubr.f32.gmra.mrb[0].mxu0 %v321
        %v1382 = vpop.f32.mrb[0].mxu0
        %v1383 = vadd.f32 0.0, %v1382
        %v1384 = vpop.f32.mrb[0].mxu0
        %1385 = vmatprep.mubr.f32.mxu0 %v559
        %1386 = vmatmul.mubr.f32.gmra.mrb[0].mxu0 %v322
        %v1387 = vpop.f32.mrb[0].mxu0
        %v1388 = vadd.f32 0.0, %v1387
        %v1389 = vpop.f32.mrb[0].mxu0
        %1390 = vmatprep.mubr.f32.mxu0 %v561
        %1391 = vmatmul.mubr.f32.gmra.mrb[0].mxu0 %v323
        %v1392 = vpop.f32.mrb[0].mxu0
        %v1393 = vadd.f32 0.0, %v1392
        %v1394 = vpop.f32.mrb[0].mxu0
        %1395 = vmatprep.mubr.f32.mxu0 %v564
        %1396 = vmatmul.mubr.f32.gmra.mrb[0].mxu0 %v325
        %v1397 = vpop.f32.mrb[0].mxu0
        %v1398 = vadd.f32 0.0, %v1397
        %v1399 = vpop.f32.mrb[0].mxu0
        %1400 = vmatprep.mubr.f32.mxu0 %v566
        %1401 = vmatmul.mubr.f32.gmra.mrb[0].mxu0 %v326
        %v1402 = vpop.f32.mrb[0].mxu0
        %v1403 = vadd.f32 0.0, %v1402
        %v1404 = vpop.f32.mrb[0].mxu0
        %1405 = vmatprep.mubr.f32.mxu0 %v568
        %1406 = vmatmul.mubr.f32.gmra.mrb[0].mxu0 %v327
        %v1407 = vpop.f32.mrb[0].mxu0
        %v1408 = vadd.f32 0.0, %v1407
        %v1409 = vpop.f32.mrb[0].mxu0
        %1410 = vmatprep.mubr.f32.mxu0 %v571
        %1411 = vmatmul.mubr.f32.gmra.mrb[0].mxu0 %v329
        %v1412 = vpop.f32.mrb[0].mxu0
        %v1413 = vadd.f32 0.0, %v1412
        %v1414 = vpop.f32.mrb[0].mxu0
        %1415 = vmatprep.mubr.f32.mxu0 %v573
        %1416 = vmatmul.mubr.f32.gmra.mrb[0].mxu0 %v330
        %v1417 = vpop.f32.mrb[0].mxu0
        %v1418 = vadd.f32 0.0, %v1417
        %v1419 = vpop.f32.mrb[0].mxu0
        %1420 = vmatprep.mubr.f32.mxu0 %v575
        %1421 = vmatmul.mubr.f32.gmra.mrb[0].mxu0 %v331
        %v1422 = vpop.f32.mrb[0].mxu0
        %v1423 = vadd.f32 0.0, %v1422
        %v1424 = vpop.f32.mrb[0].mxu0
        %1425 = vmatprep.mubr.f32.mxu0 %v578
        %1426 = vmatmul.mubr.f32.gmra.mrb[0].mxu0 %v333
        %v1427 = vpop.f32.mrb[0].mxu0
        %v1428 = vadd.f32 0.0, %v1427
        %v1429 = vpop.f32.mrb[0].mxu0
        %1430 = vmatprep.mubr.f32.mxu0 %v580
        %1431 = vmatmul.mubr.f32.gmra.mrb[0].mxu0 %v334
        %v1432 = vpop.f32.mrb[0].mxu0
        %v1433 = vadd.f32 0.0, %v1432
        %v1434 = vpop.f32.mrb[0].mxu0
        %1435 = vmatprep.mubr.f32.mxu0 %v582
        %1436 = vmatmul.mubr.f32.gmra.mrb[0].mxu0 %v335
        %v1437 = vpop.f32.mrb[0].mxu0
        %v1438 = vadd.f32 0.0, %v1437
        %v1439 = vpop.f32.mrb[0].mxu0
        %1440 = vmatprep.mubr.f32.mxu0 %v585
        %1441 = vmatmul.mubr.f32.gmra.mrb[0].mxu0 %v337
        %v1442 = vpop.f32.mrb[0].mxu0
        %v1443 = vadd.f32 0.0, %v1442
        %v1444 = vpop.f32.mrb[0].mxu0
        %1445 = vmatprep.mubr.f32.mxu0 %v587
        %1446 = vmatmul.mubr.f32.gmra.mrb[0].mxu0 %v338
        %v1447 = vpop.f32.mrb[0].mxu0
        %v1448 = vadd.f32 0.0, %v1447
        %v1449 = vpop.f32.mrb[0].mxu0
        %1450 = vmatprep.mubr.f32.mxu0 %v589
        %1451 = vmatmul.mubr.f32.gmra.mrb[0].mxu0 %v339
        %v1452 = vpop.f32.mrb[0].mxu0
        %v1453 = vadd.f32 0.0, %v1452
        %v1454 = vpop.f32.mrb[0].mxu0
        %1455 = vmatprep.mubr.f32.mxu0 %v592
        %1456 = vmatmul.mubr.f32.gmra.mrb[0].mxu0 %v341
        %v1457 = vpop.f32.mrb[0].mxu0
        %v1458 = vadd.f32 0.0, %v1457
        %v1459 = vpop.f32.mrb[0].mxu0
        %1460 = vmatprep.mubr.f32.mxu0 %v594
        %1461 = vmatmul.mubr.f32.gmra.mrb[0].mxu0 %v342
        %v1462 = vpop.f32.mrb[0].mxu0
        %v1463 = vadd.f32 0.0, %v1462
        %v1464 = vpop.f32.mrb[0].mxu0
        %1465 = vmatprep.mubr.f32.mxu0 %v596
        %1466 = vmatmul.mubr.f32.gmra.mrb[0].mxu0 %v343
        %v1467 = vpop.f32.mrb[0].mxu0
        %v1468 = vadd.f32 0.0, %v1467
        %v1469 = vpop.f32.mrb[0].mxu0
        %1470 = vmatprep.mubr.f32.mxu0 %v599
        %1471 = vmatmul.mubr.f32.gmra.mrb[0].mxu0 %v345
        %v1472 = vpop.f32.mrb[0].mxu0
        %v1473 = vadd.f32 0.0, %v1472
        %v1474 = vpop.f32.mrb[0].mxu0
        %1475 = vmatprep.mubr.f32.mxu0 %v601
        %1476 = vmatmul.mubr.f32.gmra.mrb[0].mxu0 %v346
        %v1477 = vpop.f32.mrb[0].mxu0
        %v1478 = vadd.f32 0.0, %v1477
        %v1479 = vpop.f32.mrb[0].mxu0
        %1480 = vmatprep.mubr.f32.mxu0 %v603
        %1481 = vmatmul.mubr.f32.gmra.mrb[0].mxu0 %v347
        %v1482 = vpop.f32.mrb[0].mxu0
        %v1483 = vadd.f32 0.0, %v1482
        %v1484 = vpop.f32.mrb[0].mxu0
        %1485 = vmatprep.mubr.f32.mxu0 %v606
        %1486 = vmatmul.mubr.f32.gmra.mrb[0].mxu0 %v349
        %v1487 = vpop.f32.mrb[0].mxu0
        %v1488 = vpop.f32.mrb[0].mxu0
        %1489 = vmatprep.mubr.f32.mxu0 %v608
        %1490 = vmatmul.mubr.f32.gmra.mrb[0].mxu0 %v350
        %v1491 = vpop.f32.mrb[0].mxu0
        %v1492 = vpop.f32.mrb[0].mxu0
        %1493 = vmatprep.mubr.f32.mxu0 %v610
        %1494 = vmatmul.mubr.f32.gmra.mrb[0].mxu0 %v351
        %v1495 = vpop.f32.mrb[0].mxu0
        %v1496 = vpop.f32.mrb[0].mxu0
        %1497 = vmatprep.mubr.f32.mxu0 %v613
        %1498 = vmatmul.mubr.f32.gmra.mrb[0].mxu0 %v353
        %v1499 = vpop.f32.mrb[0].mxu0
        %v1500 = vpop.f32.mrb[0].mxu0
        %1501 = vmatprep.mubr.f32.mxu0 %v615
        %1502 = vmatmul.mubr.f32.gmra.mrb[0].mxu0 %v354
        %v1503 = vpop.f32.mrb[0].mxu0
        %v1504 = vpop.f32.mrb[0].mxu0
        %1505 = vmatprep.mubr.f32.mxu0 %v617
        %1506 = vmatmul.mubr.f32.gmra.mrb[0].mxu0 %v355
        %v1507 = vpop.f32.mrb[0].mxu0
        %v1508 = vpop.f32.mrb[0].mxu0
        %1509 = vmatprep.mubr.f32.mxu0 %v620
        %1510 = vmatmul.mubr.f32.gmra.mrb[0].mxu0 %v357
        %v1511 = vpop.f32.mrb[0].mxu0
        %v1512 = vpop.f32.mrb[0].mxu0
        %1513 = vmatprep.mubr.f32.mxu0 %v622
        %1514 = vmatmul.mubr.f32.gmra.mrb[0].mxu0 %v358
        %v1515 = vpop.f32.mrb[0].mxu0
        %v1516 = vpop.f32.mrb[0].mxu0
        %1517 = vmatprep.mubr.f32.mxu0 %v624
        %1518 = vmatmul.mubr.f32.gmra.mrb[0].mxu0 %v359
        %v1519 = vpop.f32.mrb[0].mxu0
        %v1520 = vpop.f32.mrb[0].mxu0
        %1521 = vmatprep.mubr.f32.mxu0 %v627
        %1522 = vmatmul.mubr.f32.gmra.mrb[0].mxu0 %v361
        %v1523 = vpop.f32.mrb[0].mxu0
        %v1524 = vpop.f32.mrb[0].mxu0
        %1525 = vmatprep.mubr.f32.mxu0 %v629
        %1526 = vmatmul.mubr.f32.gmra.mrb[0].mxu0 %v362
        %v1527 = vpop.f32.mrb[0].mxu0
        %v1528 = vpop.f32.mrb[0].mxu0
        %1529 = vmatprep.mubr.f32.mxu0 %v631
        %1530 = vmatmul.mubr.f32.gmra.mrb[0].mxu0 %v363
        %v1531 = vpop.f32.mrb[0].mxu0
        %v1532 = vpop.f32.mrb[0].mxu0
        %1533 = vmatprep.mubr.f32.mxu0 %v634
        %1534 = vmatmul.mubr.f32.gmra.mrb[0].mxu0 %v365
        %v1535 = vpop.f32.mrb[0].mxu0
        %v1536 = vpop.f32.mrb[0].mxu0
        %1537 = vmatprep.mubr.f32.mxu0 %v636
        %1538 = vmatmul.mubr.f32.gmra.mrb[0].mxu0 %v366
        %v1539 = vpop.f32.mrb[0].mxu0
        %v1540 = vpop.f32.mrb[0].mxu0
        %1541 = vmatprep.mubr.f32.mxu0 %v638
        %1542 = vmatmul.mubr.f32.gmra.mrb[0].mxu0 %v367
        %v1543 = vpop.f32.mrb[0].mxu0
        %v1544 = vpop.f32.mrb[0].mxu0
        %1545 = vmatprep.mubr.f32.mxu0 %v641
        %1546 = vmatmul.mubr.f32.gmra.mrb[0].mxu0 %v369
        %v1547 = vpop.f32.mrb[0].mxu0
        %v1548 = vpop.f32.mrb[0].mxu0
        %1549 = vmatprep.mubr.f32.mxu0 %v643
        %1550 = vmatmul.mubr.f32.gmra.mrb[0].mxu0 %v370
        %v1551 = vpop.f32.mrb[0].mxu0
        %v1552 = vpop.f32.mrb[0].mxu0
        %1553 = vmatprep.mubr.f32.mxu0 %v645
        %1554 = vmatmul.mubr.f32.gmra.mrb[0].mxu0 %v371
        %v1555 = vpop.f32.mrb[0].mxu0
        %v1556 = vpop.f32.mrb[0].mxu0
        %1557 = vdwg.mxu0
        %1558 = vmatprep.subr.mxu0 0.0
        %1559 = vmatpush1.msra.mxu0 %v1039
        %1560 = vmatprep.subr.mxu0 0.0
        %1561 = vmatpush1.msra.mxu0 %v1040
        %1562 = vmatprep.subr.mxu0 0.0
        %1563 = vmatpush1.msra.mxu0 %v1041
        %1564 = vmatprep.subr.mxu0 0.0
        %1565 = vmatpush1.msra.mxu0 %v1042
        %1566 = vmatprep.subr.mxu0 0.0
        %1567 = vmatpush1.msra.mxu0 %v1043
        %1568 = vmatprep.subr.mxu0 0.0
        %1569 = vmatpush1.msra.mxu0 %v1044
        %1570 = vmatprep.subr.mxu0 0.0
        %1571 = vmatpush1.msra.mxu0 %v1045
        %1572 = vmatprep.subr.mxu0 0.0
        %1573 = vmatpush1.msra.mxu0 %v1046
        %1574 = vmatprep.subr.mxu0 0.0
        %1575 = vmatpush1.msra.mxu0 %v1047
        %1576 = vmatprep.subr.mxu0 0.0
        %1577 = vmatpush1.msra.mxu0 %v1048
        %1578 = vmatprep.subr.mxu0 0.0
        %1579 = vmatpush1.msra.mxu0 %v1049
        %1580 = vmatprep.subr.mxu0 0.0
        %1581 = vmatpush1.msra.mxu0 %v1050
        %1582 = vmatprep.subr.mxu0 0.0
        %1583 = vmatpush1.msra.mxu0 %v1051
        %1584 = vmatprep.subr.mxu0 0.0
        %1585 = vmatpush1.msra.mxu0 %v1052
        %1586 = vmatprep.subr.mxu0 0.0
        %1587 = vmatpush1.msra.mxu0 %v1053
        %1588 = vmatprep.subr.mxu0 0.0
        %1589 = vmatpush1.msra.mxu0 %v1054
        %1590 = vmatprep.subr.mxu0 0.0
        %1591 = vmatpush1.msra.mxu0 %v1055
        %1592 = vmatprep.subr.mxu0 0.0
        %1593 = vmatpush1.msra.mxu0 %v1056
        %1594 = vmatprep.subr.mxu0 0.0
        %1595 = vmatpush1.msra.mxu0 %v1057
        %1596 = vmatprep.subr.mxu0 0.0
        %1597 = vmatpush1.msra.mxu0 %v1058
        %1598 = vmatprep.subr.mxu0 0.0
        %1599 = vmatpush1.msra.mxu0 %v1059
        %1600 = vmatprep.subr.mxu0 0.0
        %1601 = vmatpush1.msra.mxu0 %v1060
        %1602 = vmatprep.subr.mxu0 0.0
        %1603 = vmatpush1.msra.mxu0 %v1061
        %1604 = vmatprep.subr.mxu0 0.0
        %1605 = vmatpush1.msra.mxu0 %v1062
        %1606 = vmatprep.subr.mxu0 0.0
        %1607 = vmatpush1.msra.mxu0 %v1063
        %1608 = vmatprep.subr.mxu0 0.0
        %1609 = vmatpush1.msra.mxu0 %v1064
        %1610 = vmatprep.subr.mxu0 0.0
        %1611 = vmatpush1.msra.mxu0 %v1065
        %1612 = vmatprep.subr.mxu0 0.0
        %1613 = vmatpush1.msra.mxu0 %v1066
        %1614 = vmatprep.subr.mxu0 0.0
        %1615 = vmatpush1.msra.mxu0 %v1067
        %1616 = vmatprep.subr.mxu0 0.0
        %1617 = vmatpush1.msra.mxu0 %v1068
        %1618 = vmatprep.subr.mxu0 0.0
        %1619 = vmatpush1.msra.mxu0 %v1069
        %1620 = vmatprep.subr.mxu0 0.0
        %1621 = vmatpush1.msra.mxu0 %v1070
        %1622 = vmatprep.mubr.f32.mxu0 %v281
        %1623 = vmatmul.mubr.f32.gmra.mrb[0].mxu0 %v721
        %v1624 = vpop.f32.mrb[0].mxu0
        %v1625 = vadd.f32 %v1218, %v1624
        %v1626 = vpop.f32.mrb[0].mxu0
        %1627 = vmatprep.mubr.f32.mxu0 %v282
        %1628 = vmatmul.mubr.f32.gmra.mrb[0].mxu0 %v723
        %v1629 = vpop.f32.mrb[0].mxu0
        %v1630 = vadd.f32 %v1223, %v1629
        %v1631 = vpop.f32.mrb[0].mxu0
        %1632 = vmatprep.mubr.f32.mxu0 %v283
        %1633 = vmatmul.mubr.f32.gmra.mrb[0].mxu0 %v725
        %v1634 = vpop.f32.mrb[0].mxu0
        %v1635 = vadd.f32 %v1228, %v1634
        %v1636 = vpop.f32.mrb[0].mxu0
        %1637 = vmatprep.mubr.f32.mxu0 %v285
        %1638 = vmatmul.mubr.f32.gmra.mrb[0].mxu0 %v728
        %v1639 = vpop.f32.mrb[0].mxu0
        %v1640 = vadd.f32 %v1233, %v1639
        %v1641 = vpop.f32.mrb[0].mxu0
        %1642 = vmatprep.mubr.f32.mxu0 %v286
        %1643 = vmatmul.mubr.f32.gmra.mrb[0].mxu0 %v730
        %v1644 = vpop.f32.mrb[0].mxu0
        %v1645 = vadd.f32 %v1238, %v1644
        %v1646 = vpop.f32.mrb[0].mxu0
        %1647 = vmatprep.mubr.f32.mxu0 %v287
        %1648 = vmatmul.mubr.f32.gmra.mrb[0].mxu0 %v732
        %v1649 = vpop.f32.mrb[0].mxu0
        %v1650 = vadd.f32 %v1243, %v1649
        %v1651 = vpop.f32.mrb[0].mxu0
        %1652 = vmatprep.mubr.f32.mxu0 %v289
        %1653 = vmatmul.mubr.f32.gmra.mrb[0].mxu0 %v735
        %v1654 = vpop.f32.mrb[0].mxu0
        %v1655 = vadd.f32 %v1248, %v1654
        %v1656 = vpop.f32.mrb[0].mxu0
        %1657 = vmatprep.mubr.f32.mxu0 %v290
        %1658 = vmatmul.mubr.f32.gmra.mrb[0].mxu0 %v737
        %v1659 = vpop.f32.mrb[0].mxu0
        %v1660 = vadd.f32 %v1253, %v1659
        %v1661 = vpop.f32.mrb[0].mxu0
        %1662 = vmatprep.mubr.f32.mxu0 %v291
        %1663 = vmatmul.mubr.f32.gmra.mrb[0].mxu0 %v739
        %v1664 = vpop.f32.mrb[0].mxu0
        %v1665 = vadd.f32 %v1258, %v1664
        %v1666 = vpop.f32.mrb[0].mxu0
        %1667 = vmatprep.mubr.f32.mxu0 %v293
        %1668 = vmatmul.mubr.f32.gmra.mrb[0].mxu0 %v742
        %v1669 = vpop.f32.mrb[0].mxu0
        %v1670 = vadd.f32 %v1263, %v1669
        %v1671 = vpop.f32.mrb[0].mxu0
        %1672 = vmatprep.mubr.f32.mxu0 %v294
        %1673 = vmatmul.mubr.f32.gmra.mrb[0].mxu0 %v744
        %v1674 = vpop.f32.mrb[0].mxu0
        %v1675 = vadd.f32 %v1268, %v1674
        %v1676 = vpop.f32.mrb[0].mxu0
        %1677 = vmatprep.mubr.f32.mxu0 %v295
        %1678 = vmatmul.mubr.f32.gmra.mrb[0].mxu0 %v746
        %v1679 = vpop.f32.mrb[0].mxu0
        %v1680 = vadd.f32 %v1273, %v1679
        %v1681 = vpop.f32.mrb[0].mxu0
        %1682 = vmatprep.mubr.f32.mxu0 %v297
        %1683 = vmatmul.mubr.f32.gmra.mrb[0].mxu0 %v749
        %v1684 = vpop.f32.mrb[0].mxu0
        %v1685 = vadd.f32 %v1278, %v1684
        %v1686 = vpop.f32.mrb[0].mxu0
        %1687 = vmatprep.mubr.f32.mxu0 %v298
        %1688 = vmatmul.mubr.f32.gmra.mrb[0].mxu0 %v751
        %v1689 = vpop.f32.mrb[0].mxu0
        %v1690 = vadd.f32 %v1283, %v1689
        %v1691 = vpop.f32.mrb[0].mxu0
        %1692 = vmatprep.mubr.f32.mxu0 %v299
        %1693 = vmatmul.mubr.f32.gmra.mrb[0].mxu0 %v753
        %v1694 = vpop.f32.mrb[0].mxu0
        %v1695 = vadd.f32 %v1288, %v1694
        %v1696 = vpop.f32.mrb[0].mxu0
        %1697 = vmatprep.mubr.f32.mxu0 %v301
        %1698 = vmatmul.mubr.f32.gmra.mrb[0].mxu0 %v756
        %v1699 = vpop.f32.mrb[0].mxu0
        %v1700 = vadd.f32 %v1293, %v1699
        %v1701 = vpop.f32.mrb[0].mxu0
        %1702 = vmatprep.mubr.f32.mxu0 %v302
        %1703 = vmatmul.mubr.f32.gmra.mrb[0].mxu0 %v758
        %v1704 = vpop.f32.mrb[0].mxu0
        %v1705 = vadd.f32 %v1298, %v1704
        %v1706 = vpop.f32.mrb[0].mxu0
        %1707 = vmatprep.mubr.f32.mxu0 %v303
        %1708 = vmatmul.mubr.f32.gmra.mrb[0].mxu0 %v760
        %v1709 = vpop.f32.mrb[0].mxu0
        %v1710 = vadd.f32 %v1303, %v1709
        %v1711 = vpop.f32.mrb[0].mxu0
        %1712 = vmatprep.mubr.f32.mxu0 %v305
        %1713 = vmatmul.mubr.f32.gmra.mrb[0].mxu0 %v763
        %v1714 = vpop.f32.mrb[0].mxu0
        %v1715 = vadd.f32 %v1308, %v1714
        %v1716 = vpop.f32.mrb[0].mxu0
        %1717 = vmatprep.mubr.f32.mxu0 %v306
        %1718 = vmatmul.mubr.f32.gmra.mrb[0].mxu0 %v765
        %v1719 = vpop.f32.mrb[0].mxu0
        %v1720 = vadd.f32 %v1313, %v1719
        %v1721 = vpop.f32.mrb[0].mxu0
        %1722 = vmatprep.mubr.f32.mxu0 %v307
        %1723 = vmatmul.mubr.f32.gmra.mrb[0].mxu0 %v767
        %v1724 = vpop.f32.mrb[0].mxu0
        %v1725 = vadd.f32 %v1318, %v1724
        %v1726 = vpop.f32.mrb[0].mxu0
        %1727 = vmatprep.mubr.f32.mxu0 %v309
        %1728 = vmatmul.mubr.f32.gmra.mrb[0].mxu0 %v770
        %v1729 = vpop.f32.mrb[0].mxu0
        %v1730 = vadd.f32 %v1323, %v1729
        %v1731 = vpop.f32.mrb[0].mxu0
        %1732 = vmatprep.mubr.f32.mxu0 %v310
        %1733 = vmatmul.mubr.f32.gmra.mrb[0].mxu0 %v772
        %v1734 = vpop.f32.mrb[0].mxu0
        %v1735 = vadd.f32 %v1328, %v1734
        %v1736 = vpop.f32.mrb[0].mxu0
        %1737 = vmatprep.mubr.f32.mxu0 %v311
        %1738 = vmatmul.mubr.f32.gmra.mrb[0].mxu0 %v774
        %v1739 = vpop.f32.mrb[0].mxu0
        %v1740 = vadd.f32 %v1333, %v1739
        %v1741 = vpop.f32.mrb[0].mxu0
        %1742 = vmatprep.mubr.f32.mxu0 %v313
        %1743 = vmatmul.mubr.f32.gmra.mrb[0].mxu0 %v777
        %v1744 = vpop.f32.mrb[0].mxu0
        %v1745 = vadd.f32 %v1338, %v1744
        %v1746 = vpop.f32.mrb[0].mxu0
        %1747 = vmatprep.mubr.f32.mxu0 %v314
        %1748 = vmatmul.mubr.f32.gmra.mrb[0].mxu0 %v779
        %v1749 = vpop.f32.mrb[0].mxu0
        %v1750 = vadd.f32 %v1343, %v1749
        %v1751 = vpop.f32.mrb[0].mxu0
        %1752 = vmatprep.mubr.f32.mxu0 %v315
        %1753 = vmatmul.mubr.f32.gmra.mrb[0].mxu0 %v781
        %v1754 = vpop.f32.mrb[0].mxu0
        %v1755 = vadd.f32 %v1348, %v1754
        %v1756 = vpop.f32.mrb[0].mxu0
        %1757 = vmatprep.mubr.f32.mxu0 %v317
        %1758 = vmatmul.mubr.f32.gmra.mrb[0].mxu0 %v784
        %v1759 = vpop.f32.mrb[0].mxu0
        %v1760 = vadd.f32 %v1353, %v1759
        %v1761 = vpop.f32.mrb[0].mxu0
        %1762 = vmatprep.mubr.f32.mxu0 %v318
        %1763 = vmatmul.mubr.f32.gmra.mrb[0].mxu0 %v786
        %v1764 = vpop.f32.mrb[0].mxu0
        %v1765 = vadd.f32 %v1358, %v1764
        %v1766 = vpop.f32.mrb[0].mxu0
        %1767 = vmatprep.mubr.f32.mxu0 %v319
        %1768 = vmatmul.mubr.f32.gmra.mrb[0].mxu0 %v788
        %v1769 = vpop.f32.mrb[0].mxu0
        %v1770 = vadd.f32 %v1363, %v1769
        %v1771 = vpop.f32.mrb[0].mxu0
        %1772 = vmatprep.mubr.f32.mxu0 %v321
        %1773 = vmatmul.mubr.f32.gmra.mrb[0].mxu0 %v791
        %v1774 = vpop.f32.mrb[0].mxu0
        %v1775 = vadd.f32 %v1368, %v1774
        %v1776 = vpop.f32.mrb[0].mxu0
        %1777 = vmatprep.mubr.f32.mxu0 %v322
        %1778 = vmatmul.mubr.f32.gmra.mrb[0].mxu0 %v793
        %v1779 = vpop.f32.mrb[0].mxu0
        %v1780 = vadd.f32 %v1373, %v1779
        %v1781 = vpop.f32.mrb[0].mxu0
        %1782 = vmatprep.mubr.f32.mxu0 %v323
        %1783 = vmatmul.mubr.f32.gmra.mrb[0].mxu0 %v795
        %v1784 = vpop.f32.mrb[0].mxu0
        %v1785 = vadd.f32 %v1378, %v1784
        %v1786 = vpop.f32.mrb[0].mxu0
        %1787 = vmatprep.mubr.f32.mxu0 %v325
        %1788 = vmatmul.mubr.f32.gmra.mrb[0].mxu0 %v798
        %v1789 = vpop.f32.mrb[0].mxu0
        %v1790 = vadd.f32 %v1383, %v1789
        %v1791 = vpop.f32.mrb[0].mxu0
        %1792 = vmatprep.mubr.f32.mxu0 %v326
        %1793 = vmatmul.mubr.f32.gmra.mrb[0].mxu0 %v800
        %v1794 = vpop.f32.mrb[0].mxu0
        %v1795 = vadd.f32 %v1388, %v1794
        %v1796 = vpop.f32.mrb[0].mxu0
        %1797 = vmatprep.mubr.f32.mxu0 %v327
        %1798 = vmatmul.mubr.f32.gmra.mrb[0].mxu0 %v802
        %v1799 = vpop.f32.mrb[0].mxu0
        %v1800 = vadd.f32 %v1393, %v1799
        %v1801 = vpop.f32.mrb[0].mxu0
        %1802 = vmatprep.mubr.f32.mxu0 %v329
        %1803 = vmatmul.mubr.f32.gmra.mrb[0].mxu0 %v805
        %v1804 = vpop.f32.mrb[0].mxu0
        %v1805 = vadd.f32 %v1398, %v1804
        %v1806 = vpop.f32.mrb[0].mxu0
        %1807 = vmatprep.mubr.f32.mxu0 %v330
        %1808 = vmatmul.mubr.f32.gmra.mrb[0].mxu0 %v807
        %v1809 = vpop.f32.mrb[0].mxu0
        %v1810 = vadd.f32 %v1403, %v1809
        %v1811 = vpop.f32.mrb[0].mxu0
        %1812 = vmatprep.mubr.f32.mxu0 %v331
        %1813 = vmatmul.mubr.f32.gmra.mrb[0].mxu0 %v809
        %v1814 = vpop.f32.mrb[0].mxu0
        %v1815 = vadd.f32 %v1408, %v1814
        %v1816 = vpop.f32.mrb[0].mxu0
        %1817 = vmatprep.mubr.f32.mxu0 %v333
        %1818 = vmatmul.mubr.f32.gmra.mrb[0].mxu0 %v812
        %v1819 = vpop.f32.mrb[0].mxu0
        %v1820 = vadd.f32 %v1413, %v1819
        %v1821 = vpop.f32.mrb[0].mxu0
        %1822 = vmatprep.mubr.f32.mxu0 %v334
        %1823 = vmatmul.mubr.f32.gmra.mrb[0].mxu0 %v814
        %v1824 = vpop.f32.mrb[0].mxu0
        %v1825 = vadd.f32 %v1418, %v1824
        %v1826 = vpop.f32.mrb[0].mxu0
        %1827 = vmatprep.mubr.f32.mxu0 %v335
        %1828 = vmatmul.mubr.f32.gmra.mrb[0].mxu0 %v816
        %v1829 = vpop.f32.mrb[0].mxu0
        %v1830 = vadd.f32 %v1423, %v1829
        %v1831 = vpop.f32.mrb[0].mxu0
        %1832 = vmatprep.mubr.f32.mxu0 %v337
        %1833 = vmatmul.mubr.f32.gmra.mrb[0].mxu0 %v819
        %v1834 = vpop.f32.mrb[0].mxu0
        %v1835 = vadd.f32 %v1428, %v1834
        %v1836 = vpop.f32.mrb[0].mxu0
        %1837 = vmatprep.mubr.f32.mxu0 %v338
        %1838 = vmatmul.mubr.f32.gmra.mrb[0].mxu0 %v821
        %v1839 = vpop.f32.mrb[0].mxu0
        %v1840 = vadd.f32 %v1433, %v1839
        %v1841 = vpop.f32.mrb[0].mxu0
        %1842 = vmatprep.mubr.f32.mxu0 %v339
        %1843 = vmatmul.mubr.f32.gmra.mrb[0].mxu0 %v823
        %v1844 = vpop.f32.mrb[0].mxu0
        %v1845 = vadd.f32 %v1438, %v1844
        %v1846 = vpop.f32.mrb[0].mxu0
        %1847 = vmatprep.mubr.f32.mxu0 %v341
        %1848 = vmatmul.mubr.f32.gmra.mrb[0].mxu0 %v826
        %v1849 = vpop.f32.mrb[0].mxu0
        %v1850 = vadd.f32 %v1443, %v1849
        %v1851 = vpop.f32.mrb[0].mxu0
        %1852 = vmatprep.mubr.f32.mxu0 %v342
        %1853 = vmatmul.mubr.f32.gmra.mrb[0].mxu0 %v828
        %v1854 = vpop.f32.mrb[0].mxu0
        %v1855 = vadd.f32 %v1448, %v1854
        %v1856 = vpop.f32.mrb[0].mxu0
        %1857 = vmatprep.mubr.f32.mxu0 %v343
        %1858 = vmatmul.mubr.f32.gmra.mrb[0].mxu0 %v830
        %v1859 = vpop.f32.mrb[0].mxu0
        %v1860 = vadd.f32 %v1453, %v1859
        %v1861 = vpop.f32.mrb[0].mxu0
        %1862 = vmatprep.mubr.f32.mxu0 %v345
        %1863 = vmatmul.mubr.f32.gmra.mrb[0].mxu0 %v833
        %v1864 = vpop.f32.mrb[0].mxu0
        %v1865 = vadd.f32 %v1458, %v1864
        %v1866 = vpop.f32.mrb[0].mxu0
        %1867 = vmatprep.mubr.f32.mxu0 %v346
        %1868 = vmatmul.mubr.f32.gmra.mrb[0].mxu0 %v835
        %v1869 = vpop.f32.mrb[0].mxu0
        %v1870 = vadd.f32 %v1463, %v1869
        %v1871 = vpop.f32.mrb[0].mxu0
        %1872 = vmatprep.mubr.f32.mxu0 %v347
        %1873 = vmatmul.mubr.f32.gmra.mrb[0].mxu0 %v837
        %v1874 = vpop.f32.mrb[0].mxu0
        %v1875 = vadd.f32 %v1468, %v1874
        %v1876 = vpop.f32.mrb[0].mxu0
        %1877 = vmatprep.mubr.f32.mxu0 %v349
        %1878 = vmatmul.mubr.f32.gmra.mrb[0].mxu0 %v840
        %v1879 = vpop.f32.mrb[0].mxu0
        %v1880 = vadd.f32 %v1473, %v1879
        %v1881 = vpop.f32.mrb[0].mxu0
        %1882 = vmatprep.mubr.f32.mxu0 %v350
        %1883 = vmatmul.mubr.f32.gmra.mrb[0].mxu0 %v842
        %v1884 = vpop.f32.mrb[0].mxu0
        %v1885 = vadd.f32 %v1478, %v1884
        %v1886 = vpop.f32.mrb[0].mxu0
        %1887 = vmatprep.mubr.f32.mxu0 %v351
        %1888 = vmatmul.mubr.f32.gmra.mrb[0].mxu0 %v844
        %v1889 = vpop.f32.mrb[0].mxu0
        %v1890 = vadd.f32 %v1483, %v1889
        %v1891 = vpop.f32.mrb[0].mxu0
        %1892 = vmatprep.mubr.f32.mxu0 %v353
        %1893 = vmatmul.mubr.f32.gmra.mrb[0].mxu0 %v847
        %v1894 = vpop.f32.mrb[0].mxu0
        %v1895 = vpop.f32.mrb[0].mxu0
        %1896 = vmatprep.mubr.f32.mxu0 %v354
        %1897 = vmatmul.mubr.f32.gmra.mrb[0].mxu0 %v849
        %v1898 = vpop.f32.mrb[0].mxu0
        %v1899 = vpop.f32.mrb[0].mxu0
        %1900 = vmatprep.mubr.f32.mxu0 %v355
        %1901 = vmatmul.mubr.f32.gmra.mrb[0].mxu0 %v851
        %v1902 = vpop.f32.mrb[0].mxu0
        %v1903 = vpop.f32.mrb[0].mxu0
        %1904 = vmatprep.mubr.f32.mxu0 %v357
        %1905 = vmatmul.mubr.f32.gmra.mrb[0].mxu0 %v854
        %v1906 = vpop.f32.mrb[0].mxu0
        %v1907 = vpop.f32.mrb[0].mxu0
        %1908 = vmatprep.mubr.f32.mxu0 %v358
        %1909 = vmatmul.mubr.f32.gmra.mrb[0].mxu0 %v856
        %v1910 = vpop.f32.mrb[0].mxu0
        %v1911 = vpop.f32.mrb[0].mxu0
        %1912 = vmatprep.mubr.f32.mxu0 %v359
        %1913 = vmatmul.mubr.f32.gmra.mrb[0].mxu0 %v858
        %v1914 = vpop.f32.mrb[0].mxu0
        %v1915 = vpop.f32.mrb[0].mxu0
        %1916 = vmatprep.mubr.f32.mxu0 %v361
        %1917 = vmatmul.mubr.f32.gmra.mrb[0].mxu0 %v861
        %v1918 = vpop.f32.mrb[0].mxu0
        %v1919 = vpop.f32.mrb[0].mxu0
        %1920 = vmatprep.mubr.f32.mxu0 %v362
        %1921 = vmatmul.mubr.f32.gmra.mrb[0].mxu0 %v863
        %v1922 = vpop.f32.mrb[0].mxu0
        %v1923 = vpop.f32.mrb[0].mxu0
        %1924 = vmatprep.mubr.f32.mxu0 %v363
        %1925 = vmatmul.mubr.f32.gmra.mrb[0].mxu0 %v865
        %v1926 = vpop.f32.mrb[0].mxu0
        %v1927 = vpop.f32.mrb[0].mxu0
        %1928 = vmatprep.mubr.f32.mxu0 %v365
        %1929 = vmatmul.mubr.f32.gmra.mrb[0].mxu0 %v868
        %v1930 = vpop.f32.mrb[0].mxu0
        %v1931 = vpop.f32.mrb[0].mxu0
        %1932 = vmatprep.mubr.f32.mxu0 %v366
        %1933 = vmatmul.mubr.f32.gmra.mrb[0].mxu0 %v870
        %v1934 = vpop.f32.mrb[0].mxu0
        %v1935 = vpop.f32.mrb[0].mxu0
        %1936 = vmatprep.mubr.f32.mxu0 %v367
        %1937 = vmatmul.mubr.f32.gmra.mrb[0].mxu0 %v872
        %v1938 = vpop.f32.mrb[0].mxu0
        %v1939 = vpop.f32.mrb[0].mxu0
        %1940 = vmatprep.mubr.f32.mxu0 %v369
        %1941 = vmatmul.mubr.f32.gmra.mrb[0].mxu0 %v875
        %v1942 = vpop.f32.mrb[0].mxu0
        %v1943 = vpop.f32.mrb[0].mxu0
        %1944 = vmatprep.mubr.f32.mxu0 %v370
        %1945 = vmatmul.mubr.f32.gmra.mrb[0].mxu0 %v877
        %v1946 = vpop.f32.mrb[0].mxu0
        %v1947 = vpop.f32.mrb[0].mxu0
        %1948 = vmatprep.mubr.f32.mxu0 %v371
        %1949 = vmatmul.mubr.f32.gmra.mrb[0].mxu0 %v879
        %v1950 = vpop.f32.mrb[0].mxu0
        %v1951 = vpop.f32.mrb[0].mxu0
        %1952 = vmatprep.mubr.f32.mxu0 %v373
        %1953 = vmatmul.mubr.f32.gmra.mrb[0].mxu0 %v882
        %v1954 = vpop.f32.mrb[0].mxu0
        %v1955 = vpop.f32.mrb[0].mxu0
        %1956 = vmatprep.mubr.f32.mxu0 %v374
        %1957 = vmatmul.mubr.f32.gmra.mrb[0].mxu0 %v884
        %v1958 = vpop.f32.mrb[0].mxu0
        %v1959 = vpop.f32.mrb[0].mxu0
        %1960 = vmatprep.mubr.f32.mxu0 %v375
        %1961 = vmatmul.mubr.f32.gmra.mrb[0].mxu0 %v886
        %v1962 = vpop.f32.mrb[0].mxu0
        %v1963 = vpop.f32.mrb[0].mxu0
        %1964 = vdwg.mxu0
        %1965 = vmatprep.subr.mxu0 0.0
        %1966 = vmatpush1.msra.mxu0 %v1071
        %1967 = vmatprep.subr.mxu0 0.0
        %1968 = vmatpush1.msra.mxu0 %v1072
        %1969 = vmatprep.subr.mxu0 0.0
        %1970 = vmatpush1.msra.mxu0 %v1073
        %1971 = vmatprep.subr.mxu0 0.0
        %1972 = vmatpush1.msra.mxu0 %v1074
        %1973 = vmatprep.subr.mxu0 0.0
        %1974 = vmatpush1.msra.mxu0 %v1075
        %1975 = vmatprep.subr.mxu0 0.0
        %1976 = vmatpush1.msra.mxu0 %v1076
        %1977 = vmatprep.subr.mxu0 0.0
        %1978 = vmatpush1.msra.mxu0 %v1077
        %1979 = vmatprep.subr.mxu0 0.0
        %1980 = vmatpush1.msra.mxu0 %v1078
        %1981 = vmatprep.subr.mxu0 0.0
        %1982 = vmatpush1.msra.mxu0 %v1079
        %1983 = vmatprep.subr.mxu0 0.0
        %1984 = vmatpush1.msra.mxu0 %v1080
        %1985 = vmatprep.subr.mxu0 0.0
        %1986 = vmatpush1.msra.mxu0 %v1081
        %1987 = vmatprep.subr.mxu0 0.0
        %1988 = vmatpush1.msra.mxu0 %v1082
        %1989 = vmatprep.subr.mxu0 0.0
        %1990 = vmatpush1.msra.mxu0 %v1083
        %1991 = vmatprep.subr.mxu0 0.0
        %1992 = vmatpush1.msra.mxu0 %v1084
        %1993 = vmatprep.subr.mxu0 0.0
        %1994 = vmatpush1.msra.mxu0 %v1085
        %1995 = vmatprep.subr.mxu0 0.0
        %1996 = vmatpush1.msra.mxu0 %v1086
        %1997 = vmatprep.subr.mxu0 0.0
        %1998 = vmatpush1.msra.mxu0 %v1087
        %1999 = vmatprep.subr.mxu0 0.0
        %2000 = vmatpush1.msra.mxu0 %v1088
        %2001 = vmatprep.subr.mxu0 0.0
        %2002 = vmatpush1.msra.mxu0 %v1089
        %2003 = vmatprep.subr.mxu0 0.0
        %2004 = vmatpush1.msra.mxu0 %v1090
        %2005 = vmatprep.subr.mxu0 0.0
        %2006 = vmatpush1.msra.mxu0 %v1091
        %2007 = vmatprep.subr.mxu0 0.0
        %2008 = vmatpush1.msra.mxu0 %v1092
        %2009 = vmatprep.subr.mxu0 0.0
        %2010 = vmatpush1.msra.mxu0 %v1093
        %2011 = vmatprep.subr.mxu0 0.0
        %2012 = vmatpush1.msra.mxu0 %v1094
        %2013 = vmatprep.subr.mxu0 0.0
        %2014 = vmatpush1.msra.mxu0 %v1095
        %2015 = vmatprep.subr.mxu0 0.0
        %2016 = vmatpush1.msra.mxu0 %v1096
        %2017 = vmatprep.subr.mxu0 0.0
        %2018 = vmatpush1.msra.mxu0 %v1097
        %2019 = vmatprep.subr.mxu0 0.0
        %2020 = vmatpush1.msra.mxu0 %v1098
        %2021 = vmatprep.subr.mxu0 0.0
        %2022 = vmatpush1.msra.mxu0 %v1099
        %2023 = vmatprep.subr.mxu0 0.0
        %2024 = vmatpush1.msra.mxu0 %v1100
        %2025 = vmatprep.subr.mxu0 0.0
        %2026 = vmatpush1.msra.mxu0 %v1101
        %2027 = vmatprep.subr.mxu0 0.0
        %2028 = vmatpush1.msra.mxu0 %v1102
        %2029 = vmatprep.mubr.f32.mxu0 %v728
        %2030 = vmatmul.mubr.f32.gmra.mrb[0].mxu0 %v487
        %v2031 = vpop.f32.mrb[0].mxu0
        %v2032 = vadd.f32 %v1625, %v2031
        %v2033 = vpop.f32.mrb[0].mxu0
        %2034 = vmatprep.mubr.f32.mxu0 %v730
        %2035 = vmatmul.mubr.f32.gmra.mrb[0].mxu0 %v489
        %v2036 = vpop.f32.mrb[0].mxu0
        %v2037 = vadd.f32 %v1630, %v2036
        %v2038 = vpop.f32.mrb[0].mxu0
        %2039 = vmatprep.mubr.f32.mxu0 %v732
        %2040 = vmatmul.mubr.f32.gmra.mrb[0].mxu0 %v491
        %v2041 = vpop.f32.mrb[0].mxu0
        %v2042 = vadd.f32 %v1635, %v2041
        %v2043 = vpop.f32.mrb[0].mxu0
        %2044 = vmatprep.mubr.f32.mxu0 %v735
        %2045 = vmatmul.mubr.f32.gmra.mrb[0].mxu0 %v494
        %v2046 = vpop.f32.mrb[0].mxu0
        %v2047 = vadd.f32 %v1640, %v2046
        %v2048 = vpop.f32.mrb[0].mxu0
        %2049 = vmatprep.mubr.f32.mxu0 %v737
        %2050 = vmatmul.mubr.f32.gmra.mrb[0].mxu0 %v496
        %v2051 = vpop.f32.mrb[0].mxu0
        %v2052 = vadd.f32 %v1645, %v2051
        %v2053 = vpop.f32.mrb[0].mxu0
        %2054 = vmatprep.mubr.f32.mxu0 %v739
        %2055 = vmatmul.mubr.f32.gmra.mrb[0].mxu0 %v498
        %v2056 = vpop.f32.mrb[0].mxu0
        %v2057 = vadd.f32 %v1650, %v2056
        %v2058 = vpop.f32.mrb[0].mxu0
        %2059 = vmatprep.mubr.f32.mxu0 %v742
        %2060 = vmatmul.mubr.f32.gmra.mrb[0].mxu0 %v501
        %v2061 = vpop.f32.mrb[0].mxu0
        %v2062 = vadd.f32 %v1655, %v2061
        %v2063 = vpop.f32.mrb[0].mxu0
        %2064 = vmatprep.mubr.f32.mxu0 %v744
        %2065 = vmatmul.mubr.f32.gmra.mrb[0].mxu0 %v503
        %v2066 = vpop.f32.mrb[0].mxu0
        %v2067 = vadd.f32 %v1660, %v2066
        %v2068 = vpop.f32.mrb[0].mxu0
        %2069 = vmatprep.mubr.f32.mxu0 %v746
        %2070 = vmatmul.mubr.f32.gmra.mrb[0].mxu0 %v505
        %v2071 = vpop.f32.mrb[0].mxu0
        %v2072 = vadd.f32 %v1665, %v2071
        %v2073 = vpop.f32.mrb[0].mxu0
        %2074 = vmatprep.mubr.f32.mxu0 %v749
        %2075 = vmatmul.mubr.f32.gmra.mrb[0].mxu0 %v508
        %v2076 = vpop.f32.mrb[0].mxu0
        %v2077 = vadd.f32 %v1670, %v2076
        %v2078 = vpop.f32.mrb[0].mxu0
        %2079 = vmatprep.mubr.f32.mxu0 %v751
        %2080 = vmatmul.mubr.f32.gmra.mrb[0].mxu0 %v510
        %v2081 = vpop.f32.mrb[0].mxu0
        %v2082 = vadd.f32 %v1675, %v2081
        %v2083 = vpop.f32.mrb[0].mxu0
        %2084 = vmatprep.mubr.f32.mxu0 %v753
        %2085 = vmatmul.mubr.f32.gmra.mrb[0].mxu0 %v512
        %v2086 = vpop.f32.mrb[0].mxu0
        %v2087 = vadd.f32 %v1680, %v2086
        %v2088 = vpop.f32.mrb[0].mxu0
        %2089 = vmatprep.mubr.f32.mxu0 %v756
        %2090 = vmatmul.mubr.f32.gmra.mrb[0].mxu0 %v515
        %v2091 = vpop.f32.mrb[0].mxu0
        %v2092 = vadd.f32 %v1685, %v2091
        %v2093 = vpop.f32.mrb[0].mxu0
        %2094 = vmatprep.mubr.f32.mxu0 %v758
        %2095 = vmatmul.mubr.f32.gmra.mrb[0].mxu0 %v517
        %v2096 = vpop.f32.mrb[0].mxu0
        %v2097 = vadd.f32 %v1690, %v2096
        %v2098 = vpop.f32.mrb[0].mxu0
        %2099 = vmatprep.mubr.f32.mxu0 %v760
        %2100 = vmatmul.mubr.f32.gmra.mrb[0].mxu0 %v519
        %v2101 = vpop.f32.mrb[0].mxu0
        %v2102 = vadd.f32 %v1695, %v2101
        %v2103 = vpop.f32.mrb[0].mxu0
        %2104 = vmatprep.mubr.f32.mxu0 %v763
        %2105 = vmatmul.mubr.f32.gmra.mrb[0].mxu0 %v522
        %v2106 = vpop.f32.mrb[0].mxu0
        %v2107 = vadd.f32 %v1700, %v2106
        %v2108 = vpop.f32.mrb[0].mxu0
        %2109 = vmatprep.mubr.f32.mxu0 %v765
        %2110 = vmatmul.mubr.f32.gmra.mrb[0].mxu0 %v524
        %v2111 = vpop.f32.mrb[0].mxu0
        %v2112 = vadd.f32 %v1705, %v2111
        %v2113 = vpop.f32.mrb[0].mxu0
        %2114 = vmatprep.mubr.f32.mxu0 %v767
        %2115 = vmatmul.mubr.f32.gmra.mrb[0].mxu0 %v526
        %v2116 = vpop.f32.mrb[0].mxu0
        %v2117 = vadd.f32 %v1710, %v2116
        %v2118 = vpop.f32.mrb[0].mxu0
        %2119 = vmatprep.mubr.f32.mxu0 %v770
        %2120 = vmatmul.mubr.f32.gmra.mrb[0].mxu0 %v529
        %v2121 = vpop.f32.mrb[0].mxu0
        %v2122 = vadd.f32 %v1715, %v2121
        %v2123 = vpop.f32.mrb[0].mxu0
        %2124 = vmatprep.mubr.f32.mxu0 %v772
        %2125 = vmatmul.mubr.f32.gmra.mrb[0].mxu0 %v531
        %v2126 = vpop.f32.mrb[0].mxu0
        %v2127 = vadd.f32 %v1720, %v2126
        %v2128 = vpop.f32.mrb[0].mxu0
        %2129 = vmatprep.mubr.f32.mxu0 %v774
        %2130 = vmatmul.mubr.f32.gmra.mrb[0].mxu0 %v533
        %v2131 = vpop.f32.mrb[0].mxu0
        %v2132 = vadd.f32 %v1725, %v2131
        %v2133 = vpop.f32.mrb[0].mxu0
        %2134 = vmatprep.mubr.f32.mxu0 %v777
        %2135 = vmatmul.mubr.f32.gmra.mrb[0].mxu0 %v536
        %v2136 = vpop.f32.mrb[0].mxu0
        %v2137 = vadd.f32 %v1730, %v2136
        %v2138 = vpop.f32.mrb[0].mxu0
        %2139 = vmatprep.mubr.f32.mxu0 %v779
        %2140 = vmatmul.mubr.f32.gmra.mrb[0].mxu0 %v538
        %v2141 = vpop.f32.mrb[0].mxu0
        %v2142 = vadd.f32 %v1735, %v2141
        %v2143 = vpop.f32.mrb[0].mxu0
        %2144 = vmatprep.mubr.f32.mxu0 %v781
        %2145 = vmatmul.mubr.f32.gmra.mrb[0].mxu0 %v540
        %v2146 = vpop.f32.mrb[0].mxu0
        %v2147 = vadd.f32 %v1740, %v2146
        %v2148 = vpop.f32.mrb[0].mxu0
        %2149 = vmatprep.mubr.f32.mxu0 %v784
        %2150 = vmatmul.mubr.f32.gmra.mrb[0].mxu0 %v543
        %v2151 = vpop.f32.mrb[0].mxu0
        %v2152 = vadd.f32 %v1745, %v2151
        %v2153 = vpop.f32.mrb[0].mxu0
        %2154 = vmatprep.mubr.f32.mxu0 %v786
        %2155 = vmatmul.mubr.f32.gmra.mrb[0].mxu0 %v545
        %v2156 = vpop.f32.mrb[0].mxu0
        %v2157 = vadd.f32 %v1750, %v2156
        %v2158 = vpop.f32.mrb[0].mxu0
        %2159 = vmatprep.mubr.f32.mxu0 %v788
        %2160 = vmatmul.mubr.f32.gmra.mrb[0].mxu0 %v547
        %v2161 = vpop.f32.mrb[0].mxu0
        %v2162 = vadd.f32 %v1755, %v2161
        %v2163 = vpop.f32.mrb[0].mxu0
        %2164 = vmatprep.mubr.f32.mxu0 %v791
        %2165 = vmatmul.mubr.f32.gmra.mrb[0].mxu0 %v550
        %v2166 = vpop.f32.mrb[0].mxu0
        %v2167 = vadd.f32 %v1760, %v2166
        %v2168 = vpop.f32.mrb[0].mxu0
        %2169 = vmatprep.mubr.f32.mxu0 %v793
        %2170 = vmatmul.mubr.f32.gmra.mrb[0].mxu0 %v552
        %v2171 = vpop.f32.mrb[0].mxu0
        %v2172 = vadd.f32 %v1765, %v2171
        %v2173 = vpop.f32.mrb[0].mxu0
        %2174 = vmatprep.mubr.f32.mxu0 %v795
        %2175 = vmatmul.mubr.f32.gmra.mrb[0].mxu0 %v554
        %v2176 = vpop.f32.mrb[0].mxu0
        %v2177 = vadd.f32 %v1770, %v2176
        %v2178 = vpop.f32.mrb[0].mxu0
        %2179 = vmatprep.mubr.f32.mxu0 %v798
        %2180 = vmatmul.mubr.f32.gmra.mrb[0].mxu0 %v557
        %v2181 = vpop.f32.mrb[0].mxu0
        %v2182 = vadd.f32 %v1775, %v2181
        %v2183 = vpop.f32.mrb[0].mxu0
        %2184 = vmatprep.mubr.f32.mxu0 %v800
        %2185 = vmatmul.mubr.f32.gmra.mrb[0].mxu0 %v559
        %v2186 = vpop.f32.mrb[0].mxu0
        %v2187 = vadd.f32 %v1780, %v2186
        %v2188 = vpop.f32.mrb[0].mxu0
        %2189 = vmatprep.mubr.f32.mxu0 %v802
        %2190 = vmatmul.mubr.f32.gmra.mrb[0].mxu0 %v561
        %v2191 = vpop.f32.mrb[0].mxu0
        %v2192 = vadd.f32 %v1785, %v2191
        %v2193 = vpop.f32.mrb[0].mxu0
        %2194 = vmatprep.mubr.f32.mxu0 %v805
        %2195 = vmatmul.mubr.f32.gmra.mrb[0].mxu0 %v564
        %v2196 = vpop.f32.mrb[0].mxu0
        %v2197 = vadd.f32 %v1790, %v2196
        %v2198 = vpop.f32.mrb[0].mxu0
        %2199 = vmatprep.mubr.f32.mxu0 %v807
        %2200 = vmatmul.mubr.f32.gmra.mrb[0].mxu0 %v566
        %v2201 = vpop.f32.mrb[0].mxu0
        %v2202 = vadd.f32 %v1795, %v2201
        %v2203 = vpop.f32.mrb[0].mxu0
        %2204 = vmatprep.mubr.f32.mxu0 %v809
        %2205 = vmatmul.mubr.f32.gmra.mrb[0].mxu0 %v568
        %v2206 = vpop.f32.mrb[0].mxu0
        %v2207 = vadd.f32 %v1800, %v2206
        %v2208 = vpop.f32.mrb[0].mxu0
        %2209 = vmatprep.mubr.f32.mxu0 %v812
        %2210 = vmatmul.mubr.f32.gmra.mrb[0].mxu0 %v571
        %v2211 = vpop.f32.mrb[0].mxu0
        %v2212 = vadd.f32 %v1805, %v2211
        %v2213 = vpop.f32.mrb[0].mxu0
        %2214 = vmatprep.mubr.f32.mxu0 %v814
        %2215 = vmatmul.mubr.f32.gmra.mrb[0].mxu0 %v573
        %v2216 = vpop.f32.mrb[0].mxu0
        %v2217 = vadd.f32 %v1810, %v2216
        %v2218 = vpop.f32.mrb[0].mxu0
        %2219 = vmatprep.mubr.f32.mxu0 %v816
        %2220 = vmatmul.mubr.f32.gmra.mrb[0].mxu0 %v575
        %v2221 = vpop.f32.mrb[0].mxu0
        %v2222 = vadd.f32 %v1815, %v2221
        %v2223 = vpop.f32.mrb[0].mxu0
        %2224 = vmatprep.mubr.f32.mxu0 %v819
        %2225 = vmatmul.mubr.f32.gmra.mrb[0].mxu0 %v578
        %v2226 = vpop.f32.mrb[0].mxu0
        %v2227 = vadd.f32 %v1820, %v2226
        %v2228 = vpop.f32.mrb[0].mxu0
        %2229 = vmatprep.mubr.f32.mxu0 %v821
        %2230 = vmatmul.mubr.f32.gmra.mrb[0].mxu0 %v580
        %v2231 = vpop.f32.mrb[0].mxu0
        %v2232 = vadd.f32 %v1825, %v2231
        %v2233 = vpop.f32.mrb[0].mxu0
        %2234 = vmatprep.mubr.f32.mxu0 %v823
        %2235 = vmatmul.mubr.f32.gmra.mrb[0].mxu0 %v582
        %v2236 = vpop.f32.mrb[0].mxu0
        %v2237 = vadd.f32 %v1830, %v2236
        %v2238 = vpop.f32.mrb[0].mxu0
        %2239 = vmatprep.mubr.f32.mxu0 %v826
        %2240 = vmatmul.mubr.f32.gmra.mrb[0].mxu0 %v585
        %v2241 = vpop.f32.mrb[0].mxu0
        %v2242 = vadd.f32 %v1835, %v2241
        %v2243 = vpop.f32.mrb[0].mxu0
        %2244 = vmatprep.mubr.f32.mxu0 %v828
        %2245 = vmatmul.mubr.f32.gmra.mrb[0].mxu0 %v587
        %v2246 = vpop.f32.mrb[0].mxu0
        %v2247 = vadd.f32 %v1840, %v2246
        %v2248 = vpop.f32.mrb[0].mxu0
        %2249 = vmatprep.mubr.f32.mxu0 %v830
        %2250 = vmatmul.mubr.f32.gmra.mrb[0].mxu0 %v589
        %v2251 = vpop.f32.mrb[0].mxu0
        %v2252 = vadd.f32 %v1845, %v2251
        %v2253 = vpop.f32.mrb[0].mxu0
        %2254 = vmatprep.mubr.f32.mxu0 %v833
        %2255 = vmatmul.mubr.f32.gmra.mrb[0].mxu0 %v592
        %v2256 = vpop.f32.mrb[0].mxu0
        %v2257 = vadd.f32 %v1850, %v2256
        %v2258 = vpop.f32.mrb[0].mxu0
        %2259 = vmatprep.mubr.f32.mxu0 %v835
        %2260 = vmatmul.mubr.f32.gmra.mrb[0].mxu0 %v594
        %v2261 = vpop.f32.mrb[0].mxu0
        %v2262 = vadd.f32 %v1855, %v2261
        %v2263 = vpop.f32.mrb[0].mxu0
        %2264 = vmatprep.mubr.f32.mxu0 %v837
        %2265 = vmatmul.mubr.f32.gmra.mrb[0].mxu0 %v596
        %v2266 = vpop.f32.mrb[0].mxu0
        %v2267 = vadd.f32 %v1860, %v2266
        %v2268 = vpop.f32.mrb[0].mxu0
        %2269 = vmatprep.mubr.f32.mxu0 %v840
        %2270 = vmatmul.mubr.f32.gmra.mrb[0].mxu0 %v599
        %v2271 = vpop.f32.mrb[0].mxu0
        %v2272 = vadd.f32 %v1865, %v2271
        %v2273 = vpop.f32.mrb[0].mxu0
        %2274 = vmatprep.mubr.f32.mxu0 %v842
        %2275 = vmatmul.mubr.f32.gmra.mrb[0].mxu0 %v601
        %v2276 = vpop.f32.mrb[0].mxu0
        %v2277 = vadd.f32 %v1870, %v2276
        %v2278 = vpop.f32.mrb[0].mxu0
        %2279 = vmatprep.mubr.f32.mxu0 %v844
        %2280 = vmatmul.mubr.f32.gmra.mrb[0].mxu0 %v603
        %v2281 = vpop.f32.mrb[0].mxu0
        %v2282 = vadd.f32 %v1875, %v2281
        %v2283 = vpop.f32.mrb[0].mxu0
        %2284 = vmatprep.mubr.f32.mxu0 %v847
        %2285 = vmatmul.mubr.f32.gmra.mrb[0].mxu0 %v606
        %v2286 = vpop.f32.mrb[0].mxu0
        %v2287 = vadd.f32 %v1880, %v2286
        %v2288 = vpop.f32.mrb[0].mxu0
        %2289 = vmatprep.mubr.f32.mxu0 %v849
        %2290 = vmatmul.mubr.f32.gmra.mrb[0].mxu0 %v608
        %v2291 = vpop.f32.mrb[0].mxu0
        %v2292 = vadd.f32 %v1885, %v2291
        %v2293 = vpop.f32.mrb[0].mxu0
        %2294 = vmatprep.mubr.f32.mxu0 %v851
        %2295 = vmatmul.mubr.f32.gmra.mrb[0].mxu0 %v610
        %v2296 = vpop.f32.mrb[0].mxu0
        %v2297 = vadd.f32 %v1890, %v2296
        %v2298 = vpop.f32.mrb[0].mxu0
        %2299 = vmatprep.mubr.f32.mxu0 %v854
        %2300 = vmatmul.mubr.f32.gmra.mrb[0].mxu0 %v613
        %v2301 = vpop.f32.mrb[0].mxu0
        %v2302 = vpop.f32.mrb[0].mxu0
        %2303 = vmatprep.mubr.f32.mxu0 %v856
        %2304 = vmatmul.mubr.f32.gmra.mrb[0].mxu0 %v615
        %v2305 = vpop.f32.mrb[0].mxu0
        %v2306 = vpop.f32.mrb[0].mxu0
        %2307 = vmatprep.mubr.f32.mxu0 %v858
        %2308 = vmatmul.mubr.f32.gmra.mrb[0].mxu0 %v617
        %v2309 = vpop.f32.mrb[0].mxu0
        %v2310 = vpop.f32.mrb[0].mxu0
        %2311 = vmatprep.mubr.f32.mxu0 %v861
        %2312 = vmatmul.mubr.f32.gmra.mrb[0].mxu0 %v620
        %v2313 = vpop.f32.mrb[0].mxu0
        %v2314 = vpop.f32.mrb[0].mxu0
        %2315 = vmatprep.mubr.f32.mxu0 %v863
        %2316 = vmatmul.mubr.f32.gmra.mrb[0].mxu0 %v622
        %v2317 = vpop.f32.mrb[0].mxu0
        %v2318 = vpop.f32.mrb[0].mxu0
        %2319 = vmatprep.mubr.f32.mxu0 %v865
        %2320 = vmatmul.mubr.f32.gmra.mrb[0].mxu0 %v624
        %v2321 = vpop.f32.mrb[0].mxu0
        %v2322 = vpop.f32.mrb[0].mxu0
        %2323 = vmatprep.mubr.f32.mxu0 %v868
        %2324 = vmatmul.mubr.f32.gmra.mrb[0].mxu0 %v627
        %v2325 = vpop.f32.mrb[0].mxu0
        %v2326 = vpop.f32.mrb[0].mxu0
        %2327 = vmatprep.mubr.f32.mxu0 %v870
        %2328 = vmatmul.mubr.f32.gmra.mrb[0].mxu0 %v629
        %v2329 = vpop.f32.mrb[0].mxu0
        %v2330 = vpop.f32.mrb[0].mxu0
        %2331 = vmatprep.mubr.f32.mxu0 %v872
        %2332 = vmatmul.mubr.f32.gmra.mrb[0].mxu0 %v631
        %v2333 = vpop.f32.mrb[0].mxu0
        %v2334 = vpop.f32.mrb[0].mxu0
        %2335 = vmatprep.mubr.f32.mxu0 %v875
        %2336 = vmatmul.mubr.f32.gmra.mrb[0].mxu0 %v634
        %v2337 = vpop.f32.mrb[0].mxu0
        %v2338 = vpop.f32.mrb[0].mxu0
        %2339 = vmatprep.mubr.f32.mxu0 %v877
        %2340 = vmatmul.mubr.f32.gmra.mrb[0].mxu0 %v636
        %v2341 = vpop.f32.mrb[0].mxu0
        %v2342 = vpop.f32.mrb[0].mxu0
        %2343 = vmatprep.mubr.f32.mxu0 %v879
        %2344 = vmatmul.mubr.f32.gmra.mrb[0].mxu0 %v638
        %v2345 = vpop.f32.mrb[0].mxu0
        %v2346 = vpop.f32.mrb[0].mxu0
        %2347 = vmatprep.mubr.f32.mxu0 %v882
        %2348 = vmatmul.mubr.f32.gmra.mrb[0].mxu0 %v641
        %v2349 = vpop.f32.mrb[0].mxu0
        %v2350 = vpop.f32.mrb[0].mxu0
        %2351 = vmatprep.mubr.f32.mxu0 %v884
        %2352 = vmatmul.mubr.f32.gmra.mrb[0].mxu0 %v643
        %v2353 = vpop.f32.mrb[0].mxu0
        %v2354 = vpop.f32.mrb[0].mxu0
        %2355 = vmatprep.mubr.f32.mxu0 %v886
        %2356 = vmatmul.mubr.f32.gmra.mrb[0].mxu0 %v645
        %v2357 = vpop.f32.mrb[0].mxu0
        %v2358 = vpop.f32.mrb[0].mxu0
        %2359 = vmatprep.mubr.f32.mxu0 %v975
        %2360 = vmatmul.mubr.f32.gmra.mrb[0].mxu0 %v965
        %v2361 = vpop.f32.mrb[0].mxu0
        %v2362 = vpop.f32.mrb[0].mxu0
        %2363 = vmatprep.mubr.f32.mxu0 %v977
        %2364 = vmatmul.mubr.f32.gmra.mrb[0].mxu0 %v967
        %v2365 = vpop.f32.mrb[0].mxu0
        %v2366 = vpop.f32.mrb[0].mxu0
        %2367 = vmatprep.mubr.f32.mxu0 %v979
        %2368 = vmatmul.mubr.f32.gmra.mrb[0].mxu0 %v969
        %v2369 = vpop.f32.mrb[0].mxu0
        %v2370 = vpop.f32.mrb[0].mxu0
        %2371 = vdwg.mxu0
        %2372 = vmatprep.subr.mxu0 0.0
        %2373 = vmatpush1.msra.mxu0 %v1103
        %2374 = vmatprep.subr.mxu0 0.0
        %2375 = vmatpush1.msra.mxu0 %v1104
        %2376 = vmatprep.subr.mxu0 0.0
        %2377 = vmatpush1.msra.mxu0 %v1105
        %2378 = vmatprep.subr.mxu0 0.0
        %2379 = vmatpush1.msra.mxu0 %v1106
        %2380 = vmatprep.subr.mxu0 0.0
        %2381 = vmatpush1.msra.mxu0 %v1107
        %2382 = vmatprep.subr.mxu0 0.0
        %2383 = vmatpush1.msra.mxu0 %v1108
        %2384 = vmatprep.subr.mxu0 0.0
        %2385 = vmatpush1.msra.mxu0 %v1109
        %2386 = vmatprep.subr.mxu0 0.0
        %2387 = vmatpush1.msra.mxu0 %v1110
        %2388 = vmatprep.subr.mxu0 0.0
        %2389 = vmatpush1.msra.mxu0 %v1111
        %2390 = vmatprep.subr.mxu0 0.0
        %2391 = vmatpush1.msra.mxu0 %v1112
        %2392 = vmatprep.subr.mxu0 0.0
        %2393 = vmatpush1.msra.mxu0 %v1113
        %2394 = vmatprep.subr.mxu0 0.0
        %2395 = vmatpush1.msra.mxu0 %v1114
        %2396 = vmatprep.subr.mxu0 0.0
        %2397 = vmatpush1.msra.mxu0 %v1115
        %2398 = vmatprep.subr.mxu0 0.0
        %2399 = vmatpush1.msra.mxu0 %v1116
        %2400 = vmatprep.subr.mxu0 0.0
        %2401 = vmatpush1.msra.mxu0 %v1117
        %2402 = vmatprep.subr.mxu0 0.0
        %2403 = vmatpush1.msra.mxu0 %v1118
        %2404 = vmatprep.subr.mxu0 0.0
        %2405 = vmatpush1.msra.mxu0 %v1119
        %2406 = vmatprep.subr.mxu0 0.0
        %2407 = vmatpush1.msra.mxu0 %v1120
        %2408 = vmatprep.subr.mxu0 0.0
        %2409 = vmatpush1.msra.mxu0 %v1121
        %2410 = vmatprep.subr.mxu0 0.0
        %2411 = vmatpush1.msra.mxu0 %v1122
        %2412 = vmatprep.subr.mxu0 0.0
        %2413 = vmatpush1.msra.mxu0 %v1123
        %2414 = vmatprep.subr.mxu0 0.0
        %2415 = vmatpush1.msra.mxu0 %v1124
        %2416 = vmatprep.subr.mxu0 0.0
        %2417 = vmatpush1.msra.mxu0 %v1125
        %2418 = vmatprep.subr.mxu0 0.0
        %2419 = vmatpush1.msra.mxu0 %v1126
        %2420 = vmatprep.subr.mxu0 0.0
        %2421 = vmatpush1.msra.mxu0 %v1127
        %2422 = vmatprep.subr.mxu0 0.0
        %2423 = vmatpush1.msra.mxu0 %v1128
        %2424 = vmatprep.subr.mxu0 0.0
        %2425 = vmatpush1.msra.mxu0 %v1129
        %2426 = vmatprep.subr.mxu0 0.0
        %2427 = vmatpush1.msra.mxu0 %v1130
        %2428 = vmatprep.subr.mxu0 0.0
        %2429 = vmatpush1.msra.mxu0 %v1131
        %2430 = vmatprep.subr.mxu0 0.0
        %2431 = vmatpush1.msra.mxu0 %v1132
        %2432 = vmatprep.subr.mxu0 0.0
        %2433 = vmatpush1.msra.mxu0 %v1133
        %2434 = vmatprep.subr.mxu0 0.0
        %2435 = vmatpush1.msra.mxu0 %v1134
        %2436 = vmatprep.mubr.f32.mxu0 %v494
        %2437 = vmatmul.mubr.f32.gmra.mrb[0].mxu0 %v285
        %v2438 = vpop.f32.mrb[0].mxu0
        %v2439 = vadd.f32 %v2032, %v2438
        %v2440 = vpop.f32.mrb[0].mxu0
        %2441 = vmatprep.mubr.f32.mxu0 %v496
        %2442 = vmatmul.mubr.f32.gmra.mrb[0].mxu0 %v286
        %v2443 = vpop.f32.mrb[0].mxu0
        %v2444 = vadd.f32 %v2037, %v2443
        %v2445 = vpop.f32.mrb[0].mxu0
        %2446 = vmatprep.mubr.f32.mxu0 %v498
        %2447 = vmatmul.mubr.f32.gmra.mrb[0].mxu0 %v287
        %v2448 = vpop.f32.mrb[0].mxu0
        %v2449 = vadd.f32 %v2042, %v2448
        %v2450 = vpop.f32.mrb[0].mxu0
        %2451 = vmatprep.mubr.f32.mxu0 %v501
        %2452 = vmatmul.mubr.f32.gmra.mrb[0].mxu0 %v289
        %v2453 = vpop.f32.mrb[0].mxu0
        %v2454 = vadd.f32 %v2047, %v2453
        %v2455 = vpop.f32.mrb[0].mxu0
        %2456 = vmatprep.mubr.f32.mxu0 %v503
        %2457 = vmatmul.mubr.f32.gmra.mrb[0].mxu0 %v290
        %v2458 = vpop.f32.mrb[0].mxu0
        %v2459 = vadd.f32 %v2052, %v2458
        %v2460 = vpop.f32.mrb[0].mxu0
        %2461 = vmatprep.mubr.f32.mxu0 %v505
        %2462 = vmatmul.mubr.f32.gmra.mrb[0].mxu0 %v291
        %v2463 = vpop.f32.mrb[0].mxu0
        %v2464 = vadd.f32 %v2057, %v2463
        %v2465 = vpop.f32.mrb[0].mxu0
        %2466 = vmatprep.mubr.f32.mxu0 %v508
        %2467 = vmatmul.mubr.f32.gmra.mrb[0].mxu0 %v293
        %v2468 = vpop.f32.mrb[0].mxu0
        %v2469 = vadd.f32 %v2062, %v2468
        %v2470 = vpop.f32.mrb[0].mxu0
        %2471 = vmatprep.mubr.f32.mxu0 %v510
        %2472 = vmatmul.mubr.f32.gmra.mrb[0].mxu0 %v294
        %v2473 = vpop.f32.mrb[0].mxu0
        %v2474 = vadd.f32 %v2067, %v2473
        %v2475 = vpop.f32.mrb[0].mxu0
        %2476 = vmatprep.mubr.f32.mxu0 %v512
        %2477 = vmatmul.mubr.f32.gmra.mrb[0].mxu0 %v295
        %v2478 = vpop.f32.mrb[0].mxu0
        %v2479 = vadd.f32 %v2072, %v2478
        %v2480 = vpop.f32.mrb[0].mxu0
        %2481 = vmatprep.mubr.f32.mxu0 %v515
        %2482 = vmatmul.mubr.f32.gmra.mrb[0].mxu0 %v297
        %v2483 = vpop.f32.mrb[0].mxu0
        %v2484 = vadd.f32 %v2077, %v2483
        %v2485 = vpop.f32.mrb[0].mxu0
        %2486 = vmatprep.mubr.f32.mxu0 %v517
        %2487 = vmatmul.mubr.f32.gmra.mrb[0].mxu0 %v298
        %v2488 = vpop.f32.mrb[0].mxu0
        %v2489 = vadd.f32 %v2082, %v2488
        %v2490 = vpop.f32.mrb[0].mxu0
        %2491 = vmatprep.mubr.f32.mxu0 %v519
        %2492 = vmatmul.mubr.f32.gmra.mrb[0].mxu0 %v299
        %v2493 = vpop.f32.mrb[0].mxu0
        %v2494 = vadd.f32 %v2087, %v2493
        %v2495 = vpop.f32.mrb[0].mxu0
        %2496 = vmatprep.mubr.f32.mxu0 %v522
        %2497 = vmatmul.mubr.f32.gmra.mrb[0].mxu0 %v301
        %v2498 = vpop.f32.mrb[0].mxu0
        %v2499 = vadd.f32 %v2092, %v2498
        %v2500 = vpop.f32.mrb[0].mxu0
        %2501 = vmatprep.mubr.f32.mxu0 %v524
        %2502 = vmatmul.mubr.f32.gmra.mrb[0].mxu0 %v302
        %v2503 = vpop.f32.mrb[0].mxu0
        %v2504 = vadd.f32 %v2097, %v2503
        %v2505 = vpop.f32.mrb[0].mxu0
        %2506 = vmatprep.mubr.f32.mxu0 %v526
        %2507 = vmatmul.mubr.f32.gmra.mrb[0].mxu0 %v303
        %v2508 = vpop.f32.mrb[0].mxu0
        %v2509 = vadd.f32 %v2102, %v2508
        %v2510 = vpop.f32.mrb[0].mxu0
        %2511 = vmatprep.mubr.f32.mxu0 %v529
        %2512 = vmatmul.mubr.f32.gmra.mrb[0].mxu0 %v305
        %v2513 = vpop.f32.mrb[0].mxu0
        %v2514 = vadd.f32 %v2107, %v2513
        %v2515 = vpop.f32.mrb[0].mxu0
        %2516 = vmatprep.mubr.f32.mxu0 %v531
        %2517 = vmatmul.mubr.f32.gmra.mrb[0].mxu0 %v306
        %v2518 = vpop.f32.mrb[0].mxu0
        %v2519 = vadd.f32 %v2112, %v2518
        %v2520 = vpop.f32.mrb[0].mxu0
        %2521 = vmatprep.mubr.f32.mxu0 %v533
        %2522 = vmatmul.mubr.f32.gmra.mrb[0].mxu0 %v307
        %v2523 = vpop.f32.mrb[0].mxu0
        %v2524 = vadd.f32 %v2117, %v2523
        %v2525 = vpop.f32.mrb[0].mxu0
        %2526 = vmatprep.mubr.f32.mxu0 %v536
        %2527 = vmatmul.mubr.f32.gmra.mrb[0].mxu0 %v309
        %v2528 = vpop.f32.mrb[0].mxu0
        %v2529 = vadd.f32 %v2122, %v2528
        %v2530 = vpop.f32.mrb[0].mxu0
        %2531 = vmatprep.mubr.f32.mxu0 %v538
        %2532 = vmatmul.mubr.f32.gmra.mrb[0].mxu0 %v310
        %v2533 = vpop.f32.mrb[0].mxu0
        %v2534 = vadd.f32 %v2127, %v2533
        %v2535 = vpop.f32.mrb[0].mxu0
        %2536 = vmatprep.mubr.f32.mxu0 %v540
        %2537 = vmatmul.mubr.f32.gmra.mrb[0].mxu0 %v311
        %v2538 = vpop.f32.mrb[0].mxu0
        %v2539 = vadd.f32 %v2132, %v2538
        %v2540 = vpop.f32.mrb[0].mxu0
        %2541 = vmatprep.mubr.f32.mxu0 %v543
        %2542 = vmatmul.mubr.f32.gmra.mrb[0].mxu0 %v313
        %v2543 = vpop.f32.mrb[0].mxu0
        %v2544 = vadd.f32 %v2137, %v2543
        %v2545 = vpop.f32.mrb[0].mxu0
        %2546 = vmatprep.mubr.f32.mxu0 %v545
        %2547 = vmatmul.mubr.f32.gmra.mrb[0].mxu0 %v314
        %v2548 = vpop.f32.mrb[0].mxu0
        %v2549 = vadd.f32 %v2142, %v2548
        %v2550 = vpop.f32.mrb[0].mxu0
        %2551 = vmatprep.mubr.f32.mxu0 %v547
        %2552 = vmatmul.mubr.f32.gmra.mrb[0].mxu0 %v315
        %v2553 = vpop.f32.mrb[0].mxu0
        %v2554 = vadd.f32 %v2147, %v2553
        %v2555 = vpop.f32.mrb[0].mxu0
        %2556 = vmatprep.mubr.f32.mxu0 %v550
        %2557 = vmatmul.mubr.f32.gmra.mrb[0].mxu0 %v317
        %v2558 = vpop.f32.mrb[0].mxu0
        %v2559 = vadd.f32 %v2152, %v2558
        %v2560 = vpop.f32.mrb[0].mxu0
        %2561 = vmatprep.mubr.f32.mxu0 %v552
        %2562 = vmatmul.mubr.f32.gmra.mrb[0].mxu0 %v318
        %v2563 = vpop.f32.mrb[0].mxu0
        %v2564 = vadd.f32 %v2157, %v2563
        %v2565 = vpop.f32.mrb[0].mxu0
        %2566 = vmatprep.mubr.f32.mxu0 %v554
        %2567 = vmatmul.mubr.f32.gmra.mrb[0].mxu0 %v319
        %v2568 = vpop.f32.mrb[0].mxu0
        %v2569 = vadd.f32 %v2162, %v2568
        %v2570 = vpop.f32.mrb[0].mxu0
        %2571 = vmatprep.mubr.f32.mxu0 %v557
        %2572 = vmatmul.mubr.f32.gmra.mrb[0].mxu0 %v321
        %v2573 = vpop.f32.mrb[0].mxu0
        %v2574 = vadd.f32 %v2167, %v2573
        %v2575 = vpop.f32.mrb[0].mxu0
        %2576 = vmatprep.mubr.f32.mxu0 %v559
        %2577 = vmatmul.mubr.f32.gmra.mrb[0].mxu0 %v322
        %v2578 = vpop.f32.mrb[0].mxu0
        %v2579 = vadd.f32 %v2172, %v2578
        %v2580 = vpop.f32.mrb[0].mxu0
        %2581 = vmatprep.mubr.f32.mxu0 %v561
        %2582 = vmatmul.mubr.f32.gmra.mrb[0].mxu0 %v323
        %v2583 = vpop.f32.mrb[0].mxu0
        %v2584 = vadd.f32 %v2177, %v2583
        %v2585 = vpop.f32.mrb[0].mxu0
        %2586 = vmatprep.mubr.f32.mxu0 %v564
        %2587 = vmatmul.mubr.f32.gmra.mrb[0].mxu0 %v325
        %v2588 = vpop.f32.mrb[0].mxu0
        %v2589 = vadd.f32 %v2182, %v2588
        %v2590 = vpop.f32.mrb[0].mxu0
        %2591 = vmatprep.mubr.f32.mxu0 %v566
        %2592 = vmatmul.mubr.f32.gmra.mrb[0].mxu0 %v326
        %v2593 = vpop.f32.mrb[0].mxu0
        %v2594 = vadd.f32 %v2187, %v2593
        %v2595 = vpop.f32.mrb[0].mxu0
        %2596 = vmatprep.mubr.f32.mxu0 %v568
        %2597 = vmatmul.mubr.f32.gmra.mrb[0].mxu0 %v327
        %v2598 = vpop.f32.mrb[0].mxu0
        %v2599 = vadd.f32 %v2192, %v2598
        %v2600 = vpop.f32.mrb[0].mxu0
        %2601 = vmatprep.mubr.f32.mxu0 %v571
        %2602 = vmatmul.mubr.f32.gmra.mrb[0].mxu0 %v329
        %v2603 = vpop.f32.mrb[0].mxu0
        %v2604 = vadd.f32 %v2197, %v2603
        %v2605 = vpop.f32.mrb[0].mxu0
        %2606 = vmatprep.mubr.f32.mxu0 %v573
        %2607 = vmatmul.mubr.f32.gmra.mrb[0].mxu0 %v330
        %v2608 = vpop.f32.mrb[0].mxu0
        %v2609 = vadd.f32 %v2202, %v2608
        %v2610 = vpop.f32.mrb[0].mxu0
        %2611 = vmatprep.mubr.f32.mxu0 %v575
        %2612 = vmatmul.mubr.f32.gmra.mrb[0].mxu0 %v331
        %v2613 = vpop.f32.mrb[0].mxu0
        %v2614 = vadd.f32 %v2207, %v2613
        %v2615 = vpop.f32.mrb[0].mxu0
        %2616 = vmatprep.mubr.f32.mxu0 %v578
        %2617 = vmatmul.mubr.f32.gmra.mrb[0].mxu0 %v333
        %v2618 = vpop.f32.mrb[0].mxu0
        %v2619 = vadd.f32 %v2212, %v2618
        %v2620 = vpop.f32.mrb[0].mxu0
        %2621 = vmatprep.mubr.f32.mxu0 %v580
        %2622 = vmatmul.mubr.f32.gmra.mrb[0].mxu0 %v334
        %v2623 = vpop.f32.mrb[0].mxu0
        %v2624 = vadd.f32 %v2217, %v2623
        %v2625 = vpop.f32.mrb[0].mxu0
        %2626 = vmatprep.mubr.f32.mxu0 %v582
        %2627 = vmatmul.mubr.f32.gmra.mrb[0].mxu0 %v335
        %v2628 = vpop.f32.mrb[0].mxu0
        %v2629 = vadd.f32 %v2222, %v2628
        %v2630 = vpop.f32.mrb[0].mxu0
        %2631 = vmatprep.mubr.f32.mxu0 %v585
        %2632 = vmatmul.mubr.f32.gmra.mrb[0].mxu0 %v337
        %v2633 = vpop.f32.mrb[0].mxu0
        %v2634 = vadd.f32 %v2227, %v2633
        %v2635 = vpop.f32.mrb[0].mxu0
        %2636 = vmatprep.mubr.f32.mxu0 %v587
        %2637 = vmatmul.mubr.f32.gmra.mrb[0].mxu0 %v338
        %v2638 = vpop.f32.mrb[0].mxu0
        %v2639 = vadd.f32 %v2232, %v2638
        %v2640 = vpop.f32.mrb[0].mxu0
        %2641 = vmatprep.mubr.f32.mxu0 %v589
        %2642 = vmatmul.mubr.f32.gmra.mrb[0].mxu0 %v339
        %v2643 = vpop.f32.mrb[0].mxu0
        %v2644 = vadd.f32 %v2237, %v2643
        %v2645 = vpop.f32.mrb[0].mxu0
        %2646 = vmatprep.mubr.f32.mxu0 %v592
        %2647 = vmatmul.mubr.f32.gmra.mrb[0].mxu0 %v341
        %v2648 = vpop.f32.mrb[0].mxu0
        %v2649 = vadd.f32 %v2242, %v2648
        %v2650 = vpop.f32.mrb[0].mxu0
        %2651 = vmatprep.mubr.f32.mxu0 %v594
        %2652 = vmatmul.mubr.f32.gmra.mrb[0].mxu0 %v342
        %v2653 = vpop.f32.mrb[0].mxu0
        %v2654 = vadd.f32 %v2247, %v2653
        %v2655 = vpop.f32.mrb[0].mxu0
        %2656 = vmatprep.mubr.f32.mxu0 %v596
        %2657 = vmatmul.mubr.f32.gmra.mrb[0].mxu0 %v343
        %v2658 = vpop.f32.mrb[0].mxu0
        %v2659 = vadd.f32 %v2252, %v2658
        %v2660 = vpop.f32.mrb[0].mxu0
        %2661 = vmatprep.mubr.f32.mxu0 %v599
        %2662 = vmatmul.mubr.f32.gmra.mrb[0].mxu0 %v345
        %v2663 = vpop.f32.mrb[0].mxu0
        %v2664 = vadd.f32 %v2257, %v2663
        %v2665 = vpop.f32.mrb[0].mxu0
        %2666 = vmatprep.mubr.f32.mxu0 %v601
        %2667 = vmatmul.mubr.f32.gmra.mrb[0].mxu0 %v346
        %v2668 = vpop.f32.mrb[0].mxu0
        %v2669 = vadd.f32 %v2262, %v2668
        %v2670 = vpop.f32.mrb[0].mxu0
        %2671 = vmatprep.mubr.f32.mxu0 %v603
        %2672 = vmatmul.mubr.f32.gmra.mrb[0].mxu0 %v347
        %v2673 = vpop.f32.mrb[0].mxu0
        %v2674 = vadd.f32 %v2267, %v2673
        %v2675 = vpop.f32.mrb[0].mxu0
        %2676 = vmatprep.mubr.f32.mxu0 %v606
        %2677 = vmatmul.mubr.f32.gmra.mrb[0].mxu0 %v349
        %v2678 = vpop.f32.mrb[0].mxu0
        %v2679 = vadd.f32 %v2272, %v2678
        %v2680 = vpop.f32.mrb[0].mxu0
        %2681 = vmatprep.mubr.f32.mxu0 %v608
        %2682 = vmatmul.mubr.f32.gmra.mrb[0].mxu0 %v350
        %v2683 = vpop.f32.mrb[0].mxu0
        %v2684 = vadd.f32 %v2277, %v2683
        %v2685 = vpop.f32.mrb[0].mxu0
        %2686 = vmatprep.mubr.f32.mxu0 %v610
        %2687 = vmatmul.mubr.f32.gmra.mrb[0].mxu0 %v351
        %v2688 = vpop.f32.mrb[0].mxu0
        %v2689 = vadd.f32 %v2282, %v2688
        %v2690 = vpop.f32.mrb[0].mxu0
        %2691 = vmatprep.mubr.f32.mxu0 %v613
        %2692 = vmatmul.mubr.f32.gmra.mrb[0].mxu0 %v353
        %v2693 = vpop.f32.mrb[0].mxu0
        %v2694 = vadd.f32 %v2287, %v2693
        %v2695 = vpop.f32.mrb[0].mxu0
        %2696 = vmatprep.mubr.f32.mxu0 %v615
        %2697 = vmatmul.mubr.f32.gmra.mrb[0].mxu0 %v354
        %v2698 = vpop.f32.mrb[0].mxu0
        %v2699 = vadd.f32 %v2292, %v2698
        %v2700 = vpop.f32.mrb[0].mxu0
        %2701 = vmatprep.mubr.f32.mxu0 %v617
        %2702 = vmatmul.mubr.f32.gmra.mrb[0].mxu0 %v355
        %v2703 = vpop.f32.mrb[0].mxu0
        %v2704 = vadd.f32 %v2297, %v2703
        %v2705 = vpop.f32.mrb[0].mxu0
        %2706 = vmatprep.mubr.f32.mxu0 %v620
        %2707 = vmatmul.mubr.f32.gmra.mrb[0].mxu0 %v357
        %v2708 = vpop.f32.mrb[0].mxu0
        %v2709 = vpop.f32.mrb[0].mxu0
        %2710 = vmatprep.mubr.f32.mxu0 %v622
        %2711 = vmatmul.mubr.f32.gmra.mrb[0].mxu0 %v358
        %v2712 = vpop.f32.mrb[0].mxu0
        %v2713 = vpop.f32.mrb[0].mxu0
        %2714 = vmatprep.mubr.f32.mxu0 %v624
        %2715 = vmatmul.mubr.f32.gmra.mrb[0].mxu0 %v359
        %v2716 = vpop.f32.mrb[0].mxu0
        %v2717 = vpop.f32.mrb[0].mxu0
        %2718 = vmatprep.mubr.f32.mxu0 %v627
        %2719 = vmatmul.mubr.f32.gmra.mrb[0].mxu0 %v361
        %v2720 = vpop.f32.mrb[0].mxu0
        %v2721 = vpop.f32.mrb[0].mxu0
        %2722 = vmatprep.mubr.f32.mxu0 %v629
        %2723 = vmatmul.mubr.f32.gmra.mrb[0].mxu0 %v362
        %v2724 = vpop.f32.mrb[0].mxu0
        %v2725 = vpop.f32.mrb[0].mxu0
        %2726 = vmatprep.mubr.f32.mxu0 %v631
        %2727 = vmatmul.mubr.f32.gmra.mrb[0].mxu0 %v363
        %v2728 = vpop.f32.mrb[0].mxu0
        %v2729 = vpop.f32.mrb[0].mxu0
        %2730 = vmatprep.mubr.f32.mxu0 %v634
        %2731 = vmatmul.mubr.f32.gmra.mrb[0].mxu0 %v365
        %v2732 = vpop.f32.mrb[0].mxu0
        %v2733 = vpop.f32.mrb[0].mxu0
        %2734 = vmatprep.mubr.f32.mxu0 %v636
        %2735 = vmatmul.mubr.f32.gmra.mrb[0].mxu0 %v366
        %v2736 = vpop.f32.mrb[0].mxu0
        %v2737 = vpop.f32.mrb[0].mxu0
        %2738 = vmatprep.mubr.f32.mxu0 %v638
        %2739 = vmatmul.mubr.f32.gmra.mrb[0].mxu0 %v367
        %v2740 = vpop.f32.mrb[0].mxu0
        %v2741 = vpop.f32.mrb[0].mxu0
        %2742 = vmatprep.mubr.f32.mxu0 %v641
        %2743 = vmatmul.mubr.f32.gmra.mrb[0].mxu0 %v369
        %v2744 = vpop.f32.mrb[0].mxu0
        %v2745 = vpop.f32.mrb[0].mxu0
        %2746 = vmatprep.mubr.f32.mxu0 %v643
        %2747 = vmatmul.mubr.f32.gmra.mrb[0].mxu0 %v370
        %v2748 = vpop.f32.mrb[0].mxu0
        %v2749 = vpop.f32.mrb[0].mxu0
        %2750 = vmatprep.mubr.f32.mxu0 %v645
        %2751 = vmatmul.mubr.f32.gmra.mrb[0].mxu0 %v371
        %v2752 = vpop.f32.mrb[0].mxu0
        %v2753 = vpop.f32.mrb[0].mxu0
        %2754 = vmatprep.mubr.f32.mxu0 %v965
        %2755 = vmatmul.mubr.f32.gmra.mrb[0].mxu0 %v373
        %v2756 = vpop.f32.mrb[0].mxu0
        %v2757 = vpop.f32.mrb[0].mxu0
        %2758 = vmatprep.mubr.f32.mxu0 %v967
        %2759 = vmatmul.mubr.f32.gmra.mrb[0].mxu0 %v374
        %v2760 = vpop.f32.mrb[0].mxu0
        %v2761 = vpop.f32.mrb[0].mxu0
        %2762 = vmatprep.mubr.f32.mxu0 %v969
        %2763 = vmatmul.mubr.f32.gmra.mrb[0].mxu0 %v375
        %v2764 = vpop.f32.mrb[0].mxu0
        %v2765 = vpop.f32.mrb[0].mxu0
        %2766 = vmatprep.mubr.f32.mxu0 %v989
        %2767 = vmatmul.mubr.f32.gmra.mrb[0].mxu0 %v377
        %v2768 = vpop.f32.mrb[0].mxu0
        %v2769 = vpop.f32.mrb[0].mxu0
        %2770 = vmatprep.mubr.f32.mxu0 %v991
        %2771 = vmatmul.mubr.f32.gmra.mrb[0].mxu0 %v378
        %v2772 = vpop.f32.mrb[0].mxu0
        %v2773 = vpop.f32.mrb[0].mxu0
        %2774 = vmatprep.mubr.f32.mxu0 %v993
        %2775 = vmatmul.mubr.f32.gmra.mrb[0].mxu0 %v379
        %v2776 = vpop.f32.mrb[0].mxu0
        %v2777 = vpop.f32.mrb[0].mxu0
        %2778 = vdwg.mxu0
        %2779 = vmatprep.subr.mxu0 0.0
        %2780 = vmatpush1.msra.mxu0 %v1135
        %2781 = vmatprep.subr.mxu0 0.0
        %2782 = vmatpush1.msra.mxu0 %v1136
        %2783 = vmatprep.subr.mxu0 0.0
        %2784 = vmatpush1.msra.mxu0 %v1137
        %2785 = vmatprep.subr.mxu0 0.0
        %2786 = vmatpush1.msra.mxu0 %v1138
        %2787 = vmatprep.subr.mxu0 0.0
        %2788 = vmatpush1.msra.mxu0 %v1139
        %2789 = vmatprep.subr.mxu0 0.0
        %2790 = vmatpush1.msra.mxu0 %v1140
        %2791 = vmatprep.subr.mxu0 0.0
        %2792 = vmatpush1.msra.mxu0 %v1141
        %2793 = vmatprep.subr.mxu0 0.0
        %2794 = vmatpush1.msra.mxu0 %v1142
        %2795 = vmatprep.subr.mxu0 0.0
        %2796 = vmatpush1.msra.mxu0 %v1143
        %2797 = vmatprep.subr.mxu0 0.0
        %2798 = vmatpush1.msra.mxu0 %v1144
        %2799 = vmatprep.subr.mxu0 0.0
        %2800 = vmatpush1.msra.mxu0 %v1145
        %2801 = vmatprep.subr.mxu0 0.0
        %2802 = vmatpush1.msra.mxu0 %v1146
        %2803 = vmatprep.subr.mxu0 0.0
        %2804 = vmatpush1.msra.mxu0 %v1147
        %2805 = vmatprep.subr.mxu0 0.0
        %2806 = vmatpush1.msra.mxu0 %v1148
        %2807 = vmatprep.subr.mxu0 0.0
        %2808 = vmatpush1.msra.mxu0 %v1149
        %2809 = vmatprep.subr.mxu0 0.0
        %2810 = vmatpush1.msra.mxu0 %v1150
        %2811 = vmatprep.subr.mxu0 0.0
        %2812 = vmatpush1.msra.mxu0 0.0
        %2813 = vmatprep.subr.mxu0 0.0
        %2814 = vmatpush1.msra.mxu0 0.0
        %2815 = vmatprep.subr.mxu0 0.0
        %2816 = vmatpush1.msra.mxu0 0.0
        %2817 = vmatprep.subr.mxu0 0.0
        %2818 = vmatpush1.msra.mxu0 0.0
        %2819 = vmatprep.subr.mxu0 0.0
        %2820 = vmatpush1.msra.mxu0 0.0
        %2821 = vmatprep.subr.mxu0 0.0
        %2822 = vmatpush1.msra.mxu0 0.0
        %2823 = vmatprep.subr.mxu0 0.0
        %2824 = vmatpush1.msra.mxu0 0.0
        %2825 = vmatprep.subr.mxu0 0.0
        %2826 = vmatpush1.msra.mxu0 0.0
        %2827 = vmatprep.subr.mxu0 0.0
        %2828 = vmatpush1.msra.mxu0 0.0
        %2829 = vmatprep.subr.mxu0 0.0
        %2830 = vmatpush1.msra.mxu0 0.0
        %2831 = vmatprep.subr.mxu0 0.0
        %2832 = vmatpush1.msra.mxu0 0.0
        %2833 = vmatprep.subr.mxu0 0.0
        %2834 = vmatpush1.msra.mxu0 0.0
        %2835 = vmatprep.subr.mxu0 0.0
        %2836 = vmatpush1.msra.mxu0 0.0
        %2837 = vmatprep.subr.mxu0 0.0
        %2838 = vmatpush1.msra.mxu0 0.0
        %2839 = vmatprep.subr.mxu0 0.0
        %2840 = vmatpush1.msra.mxu0 0.0
        %2841 = vmatprep.subr.mxu0 0.0
        %2842 = vmatpush1.msra.mxu0 0.0
        %2843 = vmatprep.mubr.f32.mxu0 0.0
        %2844 = vmatmul.mubr.f32.gmra.mrb[0].mxu0 %v735
        %v2845 = vpop.f32.mrb[0].mxu0
        %v2846 = vadd.f32 %v2439, %v2845
        %v2847 = vpop.f32.mrb[0].mxu0
        %2848 = vmatprep.mubr.f32.mxu0 0.0
        %2849 = vmatmul.mubr.f32.gmra.mrb[0].mxu0 %v737
        %v2850 = vpop.f32.mrb[0].mxu0
        %v2851 = vadd.f32 %v2444, %v2850
        %v2852 = vpop.f32.mrb[0].mxu0
        %2853 = vmatprep.mubr.f32.mxu0 0.0
        %2854 = vmatmul.mubr.f32.gmra.mrb[0].mxu0 %v739
        %v2855 = vpop.f32.mrb[0].mxu0
        %v2856 = vadd.f32 %v2449, %v2855
        %v2857 = vpop.f32.mrb[0].mxu0
        %2858 = vmatprep.mubr.f32.mxu0 0.0
        %2859 = vmatmul.mubr.f32.gmra.mrb[0].mxu0 %v742
        %v2860 = vpop.f32.mrb[0].mxu0
        %v2861 = vadd.f32 %v2454, %v2860
        %v2862 = vpop.f32.mrb[0].mxu0
        %2863 = vmatprep.mubr.f32.mxu0 0.0
        %2864 = vmatmul.mubr.f32.gmra.mrb[0].mxu0 %v744
        %v2865 = vpop.f32.mrb[0].mxu0
        %v2866 = vadd.f32 %v2459, %v2865
        %v2867 = vpop.f32.mrb[0].mxu0
        %2868 = vmatprep.mubr.f32.mxu0 0.0
        %2869 = vmatmul.mubr.f32.gmra.mrb[0].mxu0 %v746
        %v2870 = vpop.f32.mrb[0].mxu0
        %v2871 = vadd.f32 %v2464, %v2870
        %v2872 = vpop.f32.mrb[0].mxu0
        %2873 = vmatprep.mubr.f32.mxu0 0.0
        %2874 = vmatmul.mubr.f32.gmra.mrb[0].mxu0 %v749
        %v2875 = vpop.f32.mrb[0].mxu0
        %v2876 = vadd.f32 %v2469, %v2875
        %v2877 = vpop.f32.mrb[0].mxu0
        %2878 = vmatprep.mubr.f32.mxu0 0.0
        %2879 = vmatmul.mubr.f32.gmra.mrb[0].mxu0 %v751
        %v2880 = vpop.f32.mrb[0].mxu0
        %v2881 = vadd.f32 %v2474, %v2880
        %v2882 = vpop.f32.mrb[0].mxu0
        %2883 = vmatprep.mubr.f32.mxu0 0.0
        %2884 = vmatmul.mubr.f32.gmra.mrb[0].mxu0 %v753
        %v2885 = vpop.f32.mrb[0].mxu0
        %v2886 = vadd.f32 %v2479, %v2885
        %v2887 = vpop.f32.mrb[0].mxu0
        %2888 = vmatprep.mubr.f32.mxu0 0.0
        %2889 = vmatmul.mubr.f32.gmra.mrb[0].mxu0 %v756
        %v2890 = vpop.f32.mrb[0].mxu0
        %v2891 = vadd.f32 %v2484, %v2890
        %v2892 = vpop.f32.mrb[0].mxu0
        %2893 = vmatprep.mubr.f32.mxu0 0.0
        %2894 = vmatmul.mubr.f32.gmra.mrb[0].mxu0 %v758
        %v2895 = vpop.f32.mrb[0].mxu0
        %v2896 = vadd.f32 %v2489, %v2895
        %v2897 = vpop.f32.mrb[0].mxu0
        %2898 = vmatprep.mubr.f32.mxu0 0.0
        %2899 = vmatmul.mubr.f32.gmra.mrb[0].mxu0 %v760
        %v2900 = vpop.f32.mrb[0].mxu0
        %v2901 = vadd.f32 %v2494, %v2900
        %v2902 = vpop.f32.mrb[0].mxu0
        %2903 = vmatprep.mubr.f32.mxu0 0.0
        %2904 = vmatmul.mubr.f32.gmra.mrb[0].mxu0 %v763
        %v2905 = vpop.f32.mrb[0].mxu0
        %v2906 = vadd.f32 %v2499, %v2905
        %v2907 = vpop.f32.mrb[0].mxu0
        %2908 = vmatprep.mubr.f32.mxu0 0.0
        %2909 = vmatmul.mubr.f32.gmra.mrb[0].mxu0 %v765
        %v2910 = vpop.f32.mrb[0].mxu0
        %v2911 = vadd.f32 %v2504, %v2910
        %v2912 = vpop.f32.mrb[0].mxu0
        %2913 = vmatprep.mubr.f32.mxu0 0.0
        %2914 = vmatmul.mubr.f32.gmra.mrb[0].mxu0 %v767
        %v2915 = vpop.f32.mrb[0].mxu0
        %v2916 = vadd.f32 %v2509, %v2915
        %v2917 = vpop.f32.mrb[0].mxu0
        %2918 = vmatprep.mubr.f32.mxu0 0.0
        %2919 = vmatmul.mubr.f32.gmra.mrb[0].mxu0 %v770
        %v2920 = vpop.f32.mrb[0].mxu0
        %v2921 = vadd.f32 %v2514, %v2920
        %v2922 = vpop.f32.mrb[0].mxu0
        %2923 = vmatprep.mubr.f32.mxu0 0.0
        %2924 = vmatmul.mubr.f32.gmra.mrb[0].mxu0 %v772
        %v2925 = vpop.f32.mrb[0].mxu0
        %v2926 = vadd.f32 %v2519, %v2925
        %v2927 = vpop.f32.mrb[0].mxu0
        %2928 = vmatprep.mubr.f32.mxu0 0.0
        %2929 = vmatmul.mubr.f32.gmra.mrb[0].mxu0 %v774
        %v2930 = vpop.f32.mrb[0].mxu0
        %v2931 = vadd.f32 %v2524, %v2930
        %v2932 = vpop.f32.mrb[0].mxu0
        %2933 = vmatprep.mubr.f32.mxu0 0.0
        %2934 = vmatmul.mubr.f32.gmra.mrb[0].mxu0 %v777
        %v2935 = vpop.f32.mrb[0].mxu0
        %v2936 = vadd.f32 %v2529, %v2935
        %v2937 = vpop.f32.mrb[0].mxu0
        %2938 = vmatprep.mubr.f32.mxu0 0.0
        %2939 = vmatmul.mubr.f32.gmra.mrb[0].mxu0 %v779
        %v2940 = vpop.f32.mrb[0].mxu0
        %v2941 = vadd.f32 %v2534, %v2940
        %v2942 = vpop.f32.mrb[0].mxu0
        %2943 = vmatprep.mubr.f32.mxu0 0.0
        %2944 = vmatmul.mubr.f32.gmra.mrb[0].mxu0 %v781
        %v2945 = vpop.f32.mrb[0].mxu0
        %v2946 = vadd.f32 %v2539, %v2945
        %v2947 = vpop.f32.mrb[0].mxu0
        %2948 = vmatprep.mubr.f32.mxu0 0.0
        %2949 = vmatmul.mubr.f32.gmra.mrb[0].mxu0 %v784
        %v2950 = vpop.f32.mrb[0].mxu0
        %v2951 = vadd.f32 %v2544, %v2950
        %v2952 = vpop.f32.mrb[0].mxu0
        %2953 = vmatprep.mubr.f32.mxu0 0.0
        %2954 = vmatmul.mubr.f32.gmra.mrb[0].mxu0 %v786
        %v2955 = vpop.f32.mrb[0].mxu0
        %v2956 = vadd.f32 %v2549, %v2955
        %v2957 = vpop.f32.mrb[0].mxu0
        %2958 = vmatprep.mubr.f32.mxu0 0.0
        %2959 = vmatmul.mubr.f32.gmra.mrb[0].mxu0 %v788
        %v2960 = vpop.f32.mrb[0].mxu0
        %v2961 = vadd.f32 %v2554, %v2960
        %v2962 = vpop.f32.mrb[0].mxu0
        %2963 = vmatprep.mubr.f32.mxu0 0.0
        %2964 = vmatmul.mubr.f32.gmra.mrb[0].mxu0 %v791
        %v2965 = vpop.f32.mrb[0].mxu0
        %v2966 = vadd.f32 %v2559, %v2965
        %v2967 = vpop.f32.mrb[0].mxu0
        %2968 = vmatprep.mubr.f32.mxu0 0.0
        %2969 = vmatmul.mubr.f32.gmra.mrb[0].mxu0 %v793
        %v2970 = vpop.f32.mrb[0].mxu0
        %v2971 = vadd.f32 %v2564, %v2970
        %v2972 = vpop.f32.mrb[0].mxu0
        %2973 = vmatprep.mubr.f32.mxu0 0.0
        %2974 = vmatmul.mubr.f32.gmra.mrb[0].mxu0 %v795
        %v2975 = vpop.f32.mrb[0].mxu0
        %v2976 = vadd.f32 %v2569, %v2975
        %v2977 = vpop.f32.mrb[0].mxu0
        %2978 = vmatprep.mubr.f32.mxu0 0.0
        %2979 = vmatmul.mubr.f32.gmra.mrb[0].mxu0 %v798
        %v2980 = vpop.f32.mrb[0].mxu0
        %v2981 = vadd.f32 %v2574, %v2980
        %v2982 = vpop.f32.mrb[0].mxu0
        %2983 = vmatprep.mubr.f32.mxu0 0.0
        %2984 = vmatmul.mubr.f32.gmra.mrb[0].mxu0 %v800
        %v2985 = vpop.f32.mrb[0].mxu0
        %v2986 = vadd.f32 %v2579, %v2985
        %v2987 = vpop.f32.mrb[0].mxu0
        %2988 = vmatprep.mubr.f32.mxu0 0.0
        %2989 = vmatmul.mubr.f32.gmra.mrb[0].mxu0 %v802
        %v2990 = vpop.f32.mrb[0].mxu0
        %v2991 = vadd.f32 %v2584, %v2990
        %v2992 = vpop.f32.mrb[0].mxu0
        %2993 = vmatprep.mubr.f32.mxu0 0.0
        %2994 = vmatmul.mubr.f32.gmra.mrb[0].mxu0 %v805
        %v2995 = vpop.f32.mrb[0].mxu0
        %v2996 = vadd.f32 %v2589, %v2995
        %v2997 = vpop.f32.mrb[0].mxu0
        %2998 = vmatprep.mubr.f32.mxu0 0.0
        %2999 = vmatmul.mubr.f32.gmra.mrb[0].mxu0 %v807
        %v3000 = vpop.f32.mrb[0].mxu0
        %v3001 = vadd.f32 %v2594, %v3000
        %v3002 = vpop.f32.mrb[0].mxu0
        %3003 = vmatprep.mubr.f32.mxu0 0.0
        %3004 = vmatmul.mubr.f32.gmra.mrb[0].mxu0 %v809
        %v3005 = vpop.f32.mrb[0].mxu0
        %v3006 = vadd.f32 %v2599, %v3005
        %v3007 = vpop.f32.mrb[0].mxu0
        %3008 = vmatprep.mubr.f32.mxu0 0.0
        %3009 = vmatmul.mubr.f32.gmra.mrb[0].mxu0 %v812
        %v3010 = vpop.f32.mrb[0].mxu0
        %v3011 = vadd.f32 %v2604, %v3010
        %v3012 = vpop.f32.mrb[0].mxu0
        %3013 = vmatprep.mubr.f32.mxu0 0.0
        %3014 = vmatmul.mubr.f32.gmra.mrb[0].mxu0 %v814
        %v3015 = vpop.f32.mrb[0].mxu0
        %v3016 = vadd.f32 %v2609, %v3015
        %v3017 = vpop.f32.mrb[0].mxu0
        %3018 = vmatprep.mubr.f32.mxu0 0.0
        %3019 = vmatmul.mubr.f32.gmra.mrb[0].mxu0 %v816
        %v3020 = vpop.f32.mrb[0].mxu0
        %v3021 = vadd.f32 %v2614, %v3020
        %v3022 = vpop.f32.mrb[0].mxu0
        %3023 = vmatprep.mubr.f32.mxu0 0.0
        %3024 = vmatmul.mubr.f32.gmra.mrb[0].mxu0 %v819
        %v3025 = vpop.f32.mrb[0].mxu0
        %v3026 = vadd.f32 %v2619, %v3025
        %v3027 = vpop.f32.mrb[0].mxu0
        %3028 = vmatprep.mubr.f32.mxu0 0.0
        %3029 = vmatmul.mubr.f32.gmra.mrb[0].mxu0 %v821
        %v3030 = vpop.f32.mrb[0].mxu0
        %v3031 = vadd.f32 %v2624, %v3030
        %v3032 = vpop.f32.mrb[0].mxu0
        %3033 = vmatprep.mubr.f32.mxu0 0.0
        %3034 = vmatmul.mubr.f32.gmra.mrb[0].mxu0 %v823
        %v3035 = vpop.f32.mrb[0].mxu0
        %v3036 = vadd.f32 %v2629, %v3035
        %v3037 = vpop.f32.mrb[0].mxu0
        %3038 = vmatprep.mubr.f32.mxu0 0.0
        %3039 = vmatmul.mubr.f32.gmra.mrb[0].mxu0 %v826
        %v3040 = vpop.f32.mrb[0].mxu0
        %v3041 = vadd.f32 %v2634, %v3040
        %v3042 = vpop.f32.mrb[0].mxu0
        %3043 = vmatprep.mubr.f32.mxu0 0.0
        %3044 = vmatmul.mubr.f32.gmra.mrb[0].mxu0 %v828
        %v3045 = vpop.f32.mrb[0].mxu0
        %v3046 = vadd.f32 %v2639, %v3045
        %v3047 = vpop.f32.mrb[0].mxu0
        %3048 = vmatprep.mubr.f32.mxu0 0.0
        %3049 = vmatmul.mubr.f32.gmra.mrb[0].mxu0 %v830
        %v3050 = vpop.f32.mrb[0].mxu0
        %v3051 = vadd.f32 %v2644, %v3050
        %v3052 = vpop.f32.mrb[0].mxu0
        %3053 = vmatprep.mubr.f32.mxu0 0.0
        %3054 = vmatmul.mubr.f32.gmra.mrb[0].mxu0 %v833
        %v3055 = vpop.f32.mrb[0].mxu0
        %v3056 = vadd.f32 %v2649, %v3055
        %v3057 = vpop.f32.mrb[0].mxu0
        %3058 = vmatprep.mubr.f32.mxu0 0.0
        %3059 = vmatmul.mubr.f32.gmra.mrb[0].mxu0 %v835
        %v3060 = vpop.f32.mrb[0].mxu0
        %v3061 = vadd.f32 %v2654, %v3060
        %v3062 = vpop.f32.mrb[0].mxu0
        %3063 = vmatprep.mubr.f32.mxu0 0.0
        %3064 = vmatmul.mubr.f32.gmra.mrb[0].mxu0 %v837
        %v3065 = vpop.f32.mrb[0].mxu0
        %v3066 = vadd.f32 %v2659, %v3065
        %v3067 = vpop.f32.mrb[0].mxu0
        %3068 = vmatprep.mubr.f32.mxu0 0.0
        %3069 = vmatmul.mubr.f32.gmra.mrb[0].mxu0 %v840
        %v3070 = vpop.f32.mrb[0].mxu0
        %v3071 = vadd.f32 %v2664, %v3070
        %v3072 = vpop.f32.mrb[0].mxu0
        %3073 = vmatprep.mubr.f32.mxu0 0.0
        %3074 = vmatmul.mubr.f32.gmra.mrb[0].mxu0 %v842
        %v3075 = vpop.f32.mrb[0].mxu0
        %v3076 = vadd.f32 %v2669, %v3075
        %v3077 = vpop.f32.mrb[0].mxu0
        %3078 = vmatprep.mubr.f32.mxu0 0.0
        %3079 = vmatmul.mubr.f32.gmra.mrb[0].mxu0 %v844
        %v3080 = vpop.f32.mrb[0].mxu0
        %v3081 = vadd.f32 %v2674, %v3080
        %v3082 = vpop.f32.mrb[0].mxu0
        %3083 = vmatprep.mubr.f32.mxu0 0.0
        %3084 = vmatmul.mubr.f32.gmra.mrb[0].mxu0 %v847
        %v3085 = vpop.f32.mrb[0].mxu0
        %v3086 = vadd.f32 %v2679, %v3085
        %v3087 = vpop.f32.mrb[0].mxu0
        %3088 = vmatprep.mubr.f32.mxu0 0.0
        %3089 = vmatmul.mubr.f32.gmra.mrb[0].mxu0 %v849
        %v3090 = vpop.f32.mrb[0].mxu0
        %v3091 = vadd.f32 %v2684, %v3090
        %v3092 = vpop.f32.mrb[0].mxu0
        %3093 = vmatprep.mubr.f32.mxu0 0.0
        %3094 = vmatmul.mubr.f32.gmra.mrb[0].mxu0 %v851
        %v3095 = vpop.f32.mrb[0].mxu0
        %v3096 = vadd.f32 %v2689, %v3095
        %v3097 = vpop.f32.mrb[0].mxu0
        %3098 = vmatprep.mubr.f32.mxu0 0.0
        %3099 = vmatmul.mubr.f32.gmra.mrb[0].mxu0 %v854
        %v3100 = vpop.f32.mrb[0].mxu0
        %v3101 = vadd.f32 %v2694, %v3100
        %v3102 = vpop.f32.mrb[0].mxu0
        %3103 = vmatprep.mubr.f32.mxu0 0.0
        %3104 = vmatmul.mubr.f32.gmra.mrb[0].mxu0 %v856
        %v3105 = vpop.f32.mrb[0].mxu0
        %v3106 = vadd.f32 %v2699, %v3105
        %v3107 = vpop.f32.mrb[0].mxu0
        %3108 = vmatprep.mubr.f32.mxu0 0.0
        %3109 = vmatmul.mubr.f32.gmra.mrb[0].mxu0 %v858
        %v3110 = vpop.f32.mrb[0].mxu0
        %v3111 = vadd.f32 %v2704, %v3110
        %v3112 = vpop.f32.mrb[0].mxu0
        %3113 = vmatprep.mubr.f32.mxu0 0.0
        %3114 = vmatmul.mubr.f32.gmra.mrb[0].mxu0 %v861
        %v3115 = vpop.f32.mrb[0].mxu0
        %v3116 = vpop.f32.mrb[0].mxu0
        %3117 = vmatprep.mubr.f32.mxu0 0.0
        %3118 = vmatmul.mubr.f32.gmra.mrb[0].mxu0 %v863
        %v3119 = vpop.f32.mrb[0].mxu0
        %v3120 = vpop.f32.mrb[0].mxu0
        %3121 = vmatprep.mubr.f32.mxu0 0.0
        %3122 = vmatmul.mubr.f32.gmra.mrb[0].mxu0 %v865
        %v3123 = vpop.f32.mrb[0].mxu0
        %v3124 = vpop.f32.mrb[0].mxu0
        %3125 = vmatprep.mubr.f32.mxu0 0.0
        %3126 = vmatmul.mubr.f32.gmra.mrb[0].mxu0 %v868
        %v3127 = vpop.f32.mrb[0].mxu0
        %v3128 = vpop.f32.mrb[0].mxu0
        %3129 = vmatprep.mubr.f32.mxu0 0.0
        %3130 = vmatmul.mubr.f32.gmra.mrb[0].mxu0 %v870
        %v3131 = vpop.f32.mrb[0].mxu0
        %v3132 = vpop.f32.mrb[0].mxu0
        %3133 = vmatprep.mubr.f32.mxu0 0.0
        %3134 = vmatmul.mubr.f32.gmra.mrb[0].mxu0 %v872
        %v3135 = vpop.f32.mrb[0].mxu0
        %v3136 = vpop.f32.mrb[0].mxu0
        %3137 = vmatprep.mubr.f32.mxu0 0.0
        %3138 = vmatmul.mubr.f32.gmra.mrb[0].mxu0 %v875
        %v3139 = vpop.f32.mrb[0].mxu0
        %v3140 = vpop.f32.mrb[0].mxu0
        %3141 = vmatprep.mubr.f32.mxu0 0.0
        %3142 = vmatmul.mubr.f32.gmra.mrb[0].mxu0 %v877
        %v3143 = vpop.f32.mrb[0].mxu0
        %v3144 = vpop.f32.mrb[0].mxu0
        %3145 = vmatprep.mubr.f32.mxu0 0.0
        %3146 = vmatmul.mubr.f32.gmra.mrb[0].mxu0 %v879
        %v3147 = vpop.f32.mrb[0].mxu0
        %v3148 = vpop.f32.mrb[0].mxu0
        %3149 = vmatprep.mubr.f32.mxu0 0.0
        %3150 = vmatmul.mubr.f32.gmra.mrb[0].mxu0 %v882
        %v3151 = vpop.f32.mrb[0].mxu0
        %v3152 = vpop.f32.mrb[0].mxu0
        %3153 = vmatprep.mubr.f32.mxu0 0.0
        %3154 = vmatmul.mubr.f32.gmra.mrb[0].mxu0 %v884
        %v3155 = vpop.f32.mrb[0].mxu0
        %v3156 = vpop.f32.mrb[0].mxu0
        %3157 = vmatprep.mubr.f32.mxu0 0.0
        %3158 = vmatmul.mubr.f32.gmra.mrb[0].mxu0 %v886
        %v3159 = vpop.f32.mrb[0].mxu0
        %v3160 = vpop.f32.mrb[0].mxu0
        %3161 = vmatprep.mubr.f32.mxu0 0.0
        %3162 = vmatmul.mubr.f32.gmra.mrb[0].mxu0 %v975
        %v3163 = vpop.f32.mrb[0].mxu0
        %v3164 = vpop.f32.mrb[0].mxu0
        %3165 = vmatprep.mubr.f32.mxu0 0.0
        %3166 = vmatmul.mubr.f32.gmra.mrb[0].mxu0 %v977
        %v3167 = vpop.f32.mrb[0].mxu0
        %v3168 = vpop.f32.mrb[0].mxu0
        %3169 = vmatprep.mubr.f32.mxu0 0.0
        %3170 = vmatmul.mubr.f32.gmra.mrb[0].mxu0 %v979
        %v3171 = vpop.f32.mrb[0].mxu0
        %v3172 = vpop.f32.mrb[0].mxu0
        %3173 = vmatprep.mubr.f32.mxu0 0.0
        %3174 = vmatmul.mubr.f32.gmra.mrb[0].mxu0 %v999
        %v3175 = vpop.f32.mrb[0].mxu0
        %v3176 = vpop.f32.mrb[0].mxu0
        %3177 = vmatprep.mubr.f32.mxu0 0.0
        %3178 = vmatmul.mubr.f32.gmra.mrb[0].mxu0 %v1001
        %v3179 = vpop.f32.mrb[0].mxu0
        %v3180 = vpop.f32.mrb[0].mxu0
        %3181 = vmatprep.mubr.f32.mxu0 0.0
        %3182 = vmatmul.mubr.f32.gmra.mrb[0].mxu0 %v1003
        %v3183 = vpop.f32.mrb[0].mxu0
        %v3184 = vpop.f32.mrb[0].mxu0
        %3185 = vdwg.mxu0
        %v3186 = vld [vmem:[%s2] sm:$0x1]
        %v3188 = vlaneseq
        %v3189 = vshrl.u32 %v3188, 7
        %v3190 = vsub.s32 0, %v3189
        %v3191 = vrot.slane %v3186, %v3190
        %v3193 = vmul.f32 %v2846, %v3191
        %v3194 = vmul.f32 %v2851, %v3191
        %v3195 = vmul.f32 %v2856, %v3191
        %v3196 = vmul.f32 %v2861, %v3191
        %v3197 = vmul.f32 %v2866, %v3191
        %v3198 = vmul.f32 %v2871, %v3191
        %v3199 = vmul.f32 %v2876, %v3191
        %v3200 = vmul.f32 %v2881, %v3191
        %v3201 = vmul.f32 %v2886, %v3191
        %v3202 = vmul.f32 %v2891, %v3191
        %v3203 = vmul.f32 %v2896, %v3191
        %v3204 = vmul.f32 %v2901, %v3191
        %v3205 = vmul.f32 %v2906, %v3191
        %v3206 = vmul.f32 %v2911, %v3191
        %v3207 = vmul.f32 %v2916, %v3191
        %v3208 = vmul.f32 %v2921, %v3191
        %v3209 = vmul.f32 %v2926, %v3191
        %v3210 = vmul.f32 %v2931, %v3191
        %v3211 = vmul.f32 %v2936, %v3191
        %v3212 = vmul.f32 %v2941, %v3191
        %v3213 = vmul.f32 %v2946, %v3191
        %v3214 = vmul.f32 %v2951, %v3191
        %v3215 = vmul.f32 %v2956, %v3191
        %v3216 = vmul.f32 %v2961, %v3191
        %v3217 = vmul.f32 %v2966, %v3191
        %v3218 = vmul.f32 %v2971, %v3191
        %v3219 = vmul.f32 %v2976, %v3191
        %v3220 = vmul.f32 %v2981, %v3191
        %v3221 = vmul.f32 %v2986, %v3191
        %v3222 = vmul.f32 %v2991, %v3191
        %v3223 = vmul.f32 %v2996, %v3191
        %v3224 = vmul.f32 %v3001, %v3191
        %v3225 = vmul.f32 %v3006, %v3191
        %v3226 = vmul.f32 %v3011, %v3191
        %v3227 = vmul.f32 %v3016, %v3191
        %v3228 = vmul.f32 %v3021, %v3191
        %v3229 = vmul.f32 %v3026, %v3191
        %v3230 = vmul.f32 %v3031, %v3191
        %v3231 = vmul.f32 %v3036, %v3191
        %v3232 = vmul.f32 %v3041, %v3191
        %v3233 = vmul.f32 %v3046, %v3191
        %v3234 = vmul.f32 %v3051, %v3191
        %v3235 = vmul.f32 %v3056, %v3191
        %v3236 = vmul.f32 %v3061, %v3191
        %v3237 = vmul.f32 %v3066, %v3191
        %v3238 = vmul.f32 %v3071, %v3191
        %v3239 = vmul.f32 %v3076, %v3191
        %v3240 = vmul.f32 %v3081, %v3191
        %v3241 = vmul.f32 %v3086, %v3191
        %v3242 = vmul.f32 %v3091, %v3191
        %v3243 = vmul.f32 %v3096, %v3191
        %v3244 = vmul.f32 %v3101, %v3191
        %v3245 = vmul.f32 %v3106, %v3191
        %v3246 = vmul.f32 %v3111, %v3191
        %v3247 = vld [vmem:[%s3] sm:$0x1]
        %v3249 = vlaneseq
        %v3250 = vshrl.u32 %v3249, 7
        %v3251 = vsub.s32 0, %v3250
        %v3252 = vrot.slane %v3247, %v3251
        %v3254 = vadd.f32 %v3193, %v3252
        %v3255 = vadd.f32 %v3194, %v3252
        %v3256 = vadd.f32 %v3195, %v3252
        %v3257 = vadd.f32 %v3196, %v3252
        %v3258 = vadd.f32 %v3197, %v3252
        %v3259 = vadd.f32 %v3198, %v3252
        %v3260 = vadd.f32 %v3199, %v3252
        %v3261 = vadd.f32 %v3200, %v3252
        %v3262 = vadd.f32 %v3201, %v3252
        %v3263 = vadd.f32 %v3202, %v3252
        %v3264 = vadd.f32 %v3203, %v3252
        %v3265 = vadd.f32 %v3204, %v3252
        %v3266 = vadd.f32 %v3205, %v3252
        %v3267 = vadd.f32 %v3206, %v3252
        %v3268 = vadd.f32 %v3207, %v3252
        %v3269 = vadd.f32 %v3208, %v3252
        %v3270 = vadd.f32 %v3209, %v3252
        %v3271 = vadd.f32 %v3210, %v3252
        %v3272 = vadd.f32 %v3211, %v3252
        %v3273 = vadd.f32 %v3212, %v3252
        %v3274 = vadd.f32 %v3213, %v3252
        %v3275 = vadd.f32 %v3214, %v3252
        %v3276 = vadd.f32 %v3215, %v3252
        %v3277 = vadd.f32 %v3216, %v3252
        %v3278 = vadd.f32 %v3217, %v3252
        %v3279 = vadd.f32 %v3218, %v3252
        %v3280 = vadd.f32 %v3219, %v3252
        %v3281 = vadd.f32 %v3220, %v3252
        %v3282 = vadd.f32 %v3221, %v3252
        %v3283 = vadd.f32 %v3222, %v3252
        %v3284 = vadd.f32 %v3223, %v3252
        %v3285 = vadd.f32 %v3224, %v3252
        %v3286 = vadd.f32 %v3225, %v3252
        %v3287 = vadd.f32 %v3226, %v3252
        %v3288 = vadd.f32 %v3227, %v3252
        %v3289 = vadd.f32 %v3228, %v3252
        %v3290 = vadd.f32 %v3229, %v3252
        %v3291 = vadd.f32 %v3230, %v3252
        %v3292 = vadd.f32 %v3231, %v3252
        %v3293 = vadd.f32 %v3232, %v3252
        %v3294 = vadd.f32 %v3233, %v3252
        %v3295 = vadd.f32 %v3234, %v3252
        %v3296 = vadd.f32 %v3235, %v3252
        %v3297 = vadd.f32 %v3236, %v3252
        %v3298 = vadd.f32 %v3237, %v3252
        %v3299 = vadd.f32 %v3238, %v3252
        %v3300 = vadd.f32 %v3239, %v3252
        %v3301 = vadd.f32 %v3240, %v3252
        %v3302 = vadd.f32 %v3241, %v3252
        %v3303 = vadd.f32 %v3242, %v3252
        %v3304 = vadd.f32 %v3243, %v3252
        %v3305 = vadd.f32 %v3244, %v3252
        %v3306 = vadd.f32 %v3245, %v3252
        %v3307 = vadd.f32 %v3246, %v3252
        %v3308 = vmax.f32 %v3254, 0.0
        %v3309 = vmax.f32 %v3255, 0.0
        %v3310 = vmax.f32 %v3256, 0.0
        %v3311 = vmax.f32 %v3257, 0.0
        %v3312 = vmax.f32 %v3258, 0.0
        %v3313 = vmax.f32 %v3259, 0.0
        %v3314 = vmax.f32 %v3260, 0.0
        %v3315 = vmax.f32 %v3261, 0.0
        %v3316 = vmax.f32 %v3262, 0.0
        %v3317 = vmax.f32 %v3263, 0.0
        %v3318 = vmax.f32 %v3264, 0.0
        %v3319 = vmax.f32 %v3265, 0.0
        %v3320 = vmax.f32 %v3266, 0.0
        %v3321 = vmax.f32 %v3267, 0.0
        %v3322 = vmax.f32 %v3268, 0.0
        %v3323 = vmax.f32 %v3269, 0.0
        %v3324 = vmax.f32 %v3270, 0.0
        %v3325 = vmax.f32 %v3271, 0.0
        %v3326 = vmax.f32 %v3272, 0.0
        %v3327 = vmax.f32 %v3273, 0.0
        %v3328 = vmax.f32 %v3274, 0.0
        %v3329 = vmax.f32 %v3275, 0.0
        %v3330 = vmax.f32 %v3276, 0.0
        %v3331 = vmax.f32 %v3277, 0.0
        %v3332 = vmax.f32 %v3278, 0.0
        %v3333 = vmax.f32 %v3279, 0.0
        %v3334 = vmax.f32 %v3280, 0.0
        %v3335 = vmax.f32 %v3281, 0.0
        %v3336 = vmax.f32 %v3282, 0.0
        %v3337 = vmax.f32 %v3283, 0.0
        %v3338 = vmax.f32 %v3284, 0.0
        %v3339 = vmax.f32 %v3285, 0.0
        %v3340 = vmax.f32 %v3286, 0.0
        %v3341 = vmax.f32 %v3287, 0.0
        %v3342 = vmax.f32 %v3288, 0.0
        %v3343 = vmax.f32 %v3289, 0.0
        %v3344 = vmax.f32 %v3290, 0.0
        %v3345 = vmax.f32 %v3291, 0.0
        %v3346 = vmax.f32 %v3292, 0.0
        %v3347 = vmax.f32 %v3293, 0.0
        %v3348 = vmax.f32 %v3294, 0.0
        %v3349 = vmax.f32 %v3295, 0.0
        %v3350 = vmax.f32 %v3296, 0.0
        %v3351 = vmax.f32 %v3297, 0.0
        %v3352 = vmax.f32 %v3298, 0.0
        %v3353 = vmax.f32 %v3299, 0.0
        %v3354 = vmax.f32 %v3300, 0.0
        %v3355 = vmax.f32 %v3301, 0.0
        %v3356 = vmax.f32 %v3302, 0.0
        %v3357 = vmax.f32 %v3303, 0.0
        %v3358 = vmax.f32 %v3304, 0.0
        %v3359 = vmax.f32 %v3305, 0.0
        %v3360 = vmax.f32 %v3306, 0.0
        %v3361 = vmax.f32 %v3307, 0.0
        %v3362 = vlaneseq
        %v3363 = vshrl.u32 %v3362, 7
        %v3364 = vadd.s32 %v3363, 8
        %v3365 = vadd.s32 %v3363, 16
        %vm3366 = vcmp.ge.s32.totalorder %v3363, 1
        %vm3367 = vcmp.ge.s32.totalorder %v3364, 1
        %vm3368 = vcmp.ge.s32.totalorder %v3365, 1
        %vm3369 = vmand 0, %vm3366
        %vm3370 = vmand 0, %vm3367
        %vm3371 = vmand 0, %vm3368
        %vm3372 = vmand 1, %vm3366
        %vm3373 = vmand 1, %vm3367
        %vm3374 = vmand 1, %vm3368
        %vm3375 = vcmp.le.s32.totalorder %v3363, 16
        %vm3376 = vcmp.le.s32.totalorder %v3364, 16
        %vm3377 = vcmp.le.s32.totalorder %v3365, 16
        %vm3378 = vmand %vm3369, %vm3375
        %vm3379 = vmand %vm3370, %vm3376
        %vm3380 = vmand %vm3371, %vm3377
        %vm3381 = vmand %vm3372, %vm3375
        %vm3382 = vmand %vm3373, %vm3376
        %vm3383 = vmand %vm3374, %vm3377
        %v3384 = vsel %vm3378, %v3308, 0.0
        %v3385 = vsel %vm3379, %v3309, 0.0
        %v3386 = vsel %vm3380, %v3310, 0.0
        %v3387 = vsel %vm3381, %v3311, 0.0
        %v3388 = vsel %vm3382, %v3312, 0.0
        %v3389 = vsel %vm3383, %v3313, 0.0
        %v3390 = vsel %vm3381, %v3314, 0.0
        %v3391 = vsel %vm3382, %v3315, 0.0
        %v3392 = vsel %vm3383, %v3316, 0.0
        %v3393 = vsel %vm3381, %v3317, 0.0
        %v3394 = vsel %vm3382, %v3318, 0.0
        %v3395 = vsel %vm3383, %v3319, 0.0
        %v3396 = vsel %vm3381, %v3320, 0.0
        %v3397 = vsel %vm3382, %v3321, 0.0
        %v3398 = vsel %vm3383, %v3322, 0.0
        %v3399 = vsel %vm3381, %v3323, 0.0
        %v3400 = vsel %vm3382, %v3324, 0.0
        %v3401 = vsel %vm3383, %v3325, 0.0
        %v3402 = vsel %vm3381, %v3326, 0.0
        %v3403 = vsel %vm3382, %v3327, 0.0
        %v3404 = vsel %vm3383, %v3328, 0.0
        %v3405 = vsel %vm3381, %v3329, 0.0
        %v3406 = vsel %vm3382, %v3330, 0.0
        %v3407 = vsel %vm3383, %v3331, 0.0
        %v3408 = vsel %vm3381, %v3332, 0.0
        %v3409 = vsel %vm3382, %v3333, 0.0
        %v3410 = vsel %vm3383, %v3334, 0.0
        %v3411 = vsel %vm3381, %v3335, 0.0
        %v3412 = vsel %vm3382, %v3336, 0.0
        %v3413 = vsel %vm3383, %v3337, 0.0
        %v3414 = vsel %vm3381, %v3338, 0.0
        %v3415 = vsel %vm3382, %v3339, 0.0
        %v3416 = vsel %vm3383, %v3340, 0.0
        %v3417 = vsel %vm3381, %v3341, 0.0
        %v3418 = vsel %vm3382, %v3342, 0.0
        %v3419 = vsel %vm3383, %v3343, 0.0
        %v3420 = vsel %vm3381, %v3344, 0.0
        %v3421 = vsel %vm3382, %v3345, 0.0
        %v3422 = vsel %vm3383, %v3346, 0.0
        %v3423 = vsel %vm3381, %v3347, 0.0
        %v3424 = vsel %vm3382, %v3348, 0.0
        %v3425 = vsel %vm3383, %v3349, 0.0
        %v3426 = vsel %vm3381, %v3350, 0.0
        %v3427 = vsel %vm3382, %v3351, 0.0
        %v3428 = vsel %vm3383, %v3352, 0.0
        %v3429 = vsel %vm3381, %v3353, 0.0
        %v3430 = vsel %vm3382, %v3354, 0.0
        %v3431 = vsel %vm3383, %v3355, 0.0
        %v3432 = vsel %vm3381, %v3356, 0.0
        %v3433 = vsel %vm3382, %v3357, 0.0
        %v3434 = vsel %vm3383, %v3358, 0.0
        %v3435 = vsel %vm3378, %v3359, 0.0
        %v3436 = vsel %vm3379, %v3360, 0.0
        %v3437 = vsel %vm3380, %v3361, 0.0
        %v3486 = vrot.slane %v3384, 1
        %v3487 = vrot.slane %v3385, 1
        %v3488 = vsel %vm477, %v3486, %v3487
        %v3489 = vrot.slane %v3386, 1
        %v3490 = vsel %vm477, %v3487, %v3489
        %v3491 = vrot.slane %v3387, 1
        %v3492 = vrot.slane %v3388, 1
        %v3493 = vsel %vm477, %v3491, %v3492
        %v3494 = vrot.slane %v3389, 1
        %v3495 = vsel %vm477, %v3492, %v3494
        %v3496 = vrot.slane %v3390, 1
        %v3497 = vrot.slane %v3391, 1
        %v3498 = vsel %vm477, %v3496, %v3497
        %v3499 = vrot.slane %v3392, 1
        %v3500 = vsel %vm477, %v3497, %v3499
        %v3501 = vrot.slane %v3393, 1
        %v3502 = vrot.slane %v3394, 1
        %v3503 = vsel %vm477, %v3501, %v3502
        %v3504 = vrot.slane %v3395, 1
        %v3505 = vsel %vm477, %v3502, %v3504
        %v3506 = vrot.slane %v3396, 1
        %v3507 = vrot.slane %v3397, 1
        %v3508 = vsel %vm477, %v3506, %v3507
        %v3509 = vrot.slane %v3398, 1
        %v3510 = vsel %vm477, %v3507, %v3509
        %v3511 = vrot.slane %v3399, 1
        %v3512 = vrot.slane %v3400, 1
        %v3513 = vsel %vm477, %v3511, %v3512
        %v3514 = vrot.slane %v3401, 1
        %v3515 = vsel %vm477, %v3512, %v3514
        %v3516 = vrot.slane %v3402, 1
        %v3517 = vrot.slane %v3403, 1
        %v3518 = vsel %vm477, %v3516, %v3517
        %v3519 = vrot.slane %v3404, 1
        %v3520 = vsel %vm477, %v3517, %v3519
        %v3521 = vrot.slane %v3405, 1
        %v3522 = vrot.slane %v3406, 1
        %v3523 = vsel %vm477, %v3521, %v3522
        %v3524 = vrot.slane %v3407, 1
        %v3525 = vsel %vm477, %v3522, %v3524
        %v3526 = vrot.slane %v3408, 1
        %v3527 = vrot.slane %v3409, 1
        %v3528 = vsel %vm477, %v3526, %v3527
        %v3529 = vrot.slane %v3410, 1
        %v3530 = vsel %vm477, %v3527, %v3529
        %v3531 = vrot.slane %v3411, 1
        %v3532 = vrot.slane %v3412, 1
        %v3533 = vsel %vm477, %v3531, %v3532
        %v3534 = vrot.slane %v3413, 1
        %v3535 = vsel %vm477, %v3532, %v3534
        %v3536 = vrot.slane %v3414, 1
        %v3537 = vrot.slane %v3415, 1
        %v3538 = vsel %vm477, %v3536, %v3537
        %v3539 = vrot.slane %v3416, 1
        %v3540 = vsel %vm477, %v3537, %v3539
        %v3541 = vrot.slane %v3417, 1
        %v3542 = vrot.slane %v3418, 1
        %v3543 = vsel %vm477, %v3541, %v3542
        %v3544 = vrot.slane %v3419, 1
        %v3545 = vsel %vm477, %v3542, %v3544
        %v3546 = vrot.slane %v3420, 1
        %v3547 = vrot.slane %v3421, 1
        %v3548 = vsel %vm477, %v3546, %v3547
        %v3549 = vrot.slane %v3422, 1
        %v3550 = vsel %vm477, %v3547, %v3549
        %v3551 = vrot.slane %v3423, 1
        %v3552 = vrot.slane %v3424, 1
        %v3553 = vsel %vm477, %v3551, %v3552
        %v3554 = vrot.slane %v3425, 1
        %v3555 = vsel %vm477, %v3552, %v3554
        %v3556 = vrot.slane %v3426, 1
        %v3557 = vrot.slane %v3427, 1
        %v3558 = vsel %vm477, %v3556, %v3557
        %v3559 = vrot.slane %v3428, 1
        %v3560 = vsel %vm477, %v3557, %v3559
        %v3561 = vrot.slane %v3429, 1
        %v3562 = vrot.slane %v3430, 1
        %v3563 = vsel %vm477, %v3561, %v3562
        %v3564 = vrot.slane %v3431, 1
        %v3565 = vsel %vm477, %v3562, %v3564
        %v3598 = vrot.slane %v3384, 2
        %v3599 = vrot.slane %v3385, 2
        %v3600 = vsel %vm718, %v3598, %v3599
        %v3601 = vrot.slane %v3386, 2
        %v3602 = vsel %vm718, %v3599, %v3601
        %v3603 = vrot.slane %v3387, 2
        %v3604 = vrot.slane %v3388, 2
        %v3605 = vsel %vm718, %v3603, %v3604
        %v3606 = vrot.slane %v3389, 2
        %v3607 = vsel %vm718, %v3604, %v3606
        %v3608 = vrot.slane %v3390, 2
        %v3609 = vrot.slane %v3391, 2
        %v3610 = vsel %vm718, %v3608, %v3609
        %v3611 = vrot.slane %v3392, 2
        %v3612 = vsel %vm718, %v3609, %v3611
        %v3613 = vrot.slane %v3393, 2
        %v3614 = vrot.slane %v3394, 2
        %v3615 = vsel %vm718, %v3613, %v3614
        %v3616 = vrot.slane %v3395, 2
        %v3617 = vsel %vm718, %v3614, %v3616
        %v3618 = vrot.slane %v3396, 2
        %v3619 = vrot.slane %v3397, 2
        %v3620 = vsel %vm718, %v3618, %v3619
        %v3621 = vrot.slane %v3398, 2
        %v3622 = vsel %vm718, %v3619, %v3621
        %v3623 = vrot.slane %v3399, 2
        %v3624 = vrot.slane %v3400, 2
        %v3625 = vsel %vm718, %v3623, %v3624
        %v3626 = vrot.slane %v3401, 2
        %v3627 = vsel %vm718, %v3624, %v3626
        %v3628 = vrot.slane %v3402, 2
        %v3629 = vrot.slane %v3403, 2
        %v3630 = vsel %vm718, %v3628, %v3629
        %v3631 = vrot.slane %v3404, 2
        %v3632 = vsel %vm718, %v3629, %v3631
        %v3633 = vrot.slane %v3405, 2
        %v3634 = vrot.slane %v3406, 2
        %v3635 = vsel %vm718, %v3633, %v3634
        %v3636 = vrot.slane %v3407, 2
        %v3637 = vsel %vm718, %v3634, %v3636
        %v3638 = vrot.slane %v3408, 2
        %v3639 = vrot.slane %v3409, 2
        %v3640 = vsel %vm718, %v3638, %v3639
        %v3641 = vrot.slane %v3410, 2
        %v3642 = vsel %vm718, %v3639, %v3641
        %v3643 = vrot.slane %v3411, 2
        %v3644 = vrot.slane %v3412, 2
        %v3645 = vsel %vm718, %v3643, %v3644
        %v3646 = vrot.slane %v3413, 2
        %v3647 = vsel %vm718, %v3644, %v3646
        %v3648 = vrot.slane %v3414, 2
        %v3649 = vrot.slane %v3415, 2
        %v3650 = vsel %vm718, %v3648, %v3649
        %v3651 = vrot.slane %v3416, 2
        %v3652 = vsel %vm718, %v3649, %v3651
        %v3653 = vrot.slane %v3417, 2
        %v3654 = vrot.slane %v3418, 2
        %v3655 = vsel %vm718, %v3653, %v3654
        %v3656 = vrot.slane %v3419, 2
        %v3657 = vsel %vm718, %v3654, %v3656
        %v3658 = vrot.slane %v3420, 2
        %v3659 = vrot.slane %v3421, 2
        %v3660 = vsel %vm718, %v3658, %v3659
        %v3661 = vrot.slane %v3422, 2
        %v3662 = vsel %vm718, %v3659, %v3661
        %v3663 = vrot.slane %v3423, 2
        %v3664 = vrot.slane %v3424, 2
        %v3665 = vsel %vm718, %v3663, %v3664
        %v3666 = vrot.slane %v3425, 2
        %v3667 = vsel %vm718, %v3664, %v3666
        %v3668 = vrot.slane %v3426, 2
        %v3669 = vrot.slane %v3427, 2
        %v3670 = vsel %vm718, %v3668, %v3669
        %v3671 = vrot.slane %v3428, 2
        %v3672 = vsel %vm718, %v3669, %v3671
        %v3673 = vrot.slane %v3429, 2
        %v3674 = vrot.slane %v3430, 2
        %v3675 = vsel %vm718, %v3673, %v3674
        %v3676 = vrot.slane %v3431, 2
        %v3677 = vsel %vm718, %v3674, %v3676
        %v3713 = vrot.slane %v3432, 1
        %v3714 = vrot.slane %v3433, 1
        %v3715 = vsel %vm477, %v3713, %v3714
        %v3716 = vrot.slane %v3434, 1
        %v3717 = vsel %vm477, %v3714, %v3716
        %v3720 = vrot.slane %v3432, 2
        %v3721 = vrot.slane %v3433, 2
        %v3722 = vsel %vm718, %v3720, %v3721
        %v3723 = vrot.slane %v3434, 2
        %v3724 = vsel %vm718, %v3721, %v3723
        %v3730 = vrot.slane %v3435, 1
        %v3731 = vrot.slane %v3436, 1
        %v3732 = vsel %vm477, %v3730, %v3731
        %v3733 = vrot.slane %v3437, 1
        %v3734 = vsel %vm477, %v3731, %v3733
        %v3737 = vrot.slane %v3435, 2
        %v3738 = vrot.slane %v3436, 2
        %v3739 = vsel %vm718, %v3737, %v3738
        %v3740 = vrot.slane %v3437, 2
        %v3741 = vsel %vm718, %v3738, %v3740
        %v3744 = vld [vmem:[%s4] sm:$0xff]
        %v3745 = vld [vmem:[%s4 + $0x8] sm:$0xff]
        %v3746 = vld [vmem:[%s4 + $0x10] sm:$0xff]
        %v3747 = vld [vmem:[%s4 + $0x18] sm:$0xff]
        %v3748 = vld [vmem:[%s4 + $0x20] sm:$0xff]
        %v3749 = vld [vmem:[%s4 + $0x28] sm:$0xff]
        %v3750 = vld [vmem:[%s4 + $0x30] sm:$0xff]
        %v3751 = vld [vmem:[%s4 + $0x38] sm:$0xff]
        %v3752 = vld [vmem:[%s4 + $0x40] sm:$0xff]
        %v3753 = vld [vmem:[%s4 + $0x48] sm:$0xff]
        %v3754 = vld [vmem:[%s4 + $0x50] sm:$0xff]
        %v3755 = vld [vmem:[%s4 + $0x58] sm:$0xff]
        %v3756 = vld [vmem:[%s4 + $0x60] sm:$0xff]
        %v3757 = vld [vmem:[%s4 + $0x68] sm:$0xff]
        %v3758 = vld [vmem:[%s4 + $0x70] sm:$0xff]
        %v3759 = vld [vmem:[%s4 + $0x78] sm:$0xff]
        %v3760 = vld [vmem:[%s4 + $0x80] sm:$0xff]
        %v3761 = vld [vmem:[%s4 + $0x88] sm:$0xff]
        %v3762 = vld [vmem:[%s4 + $0x90] sm:$0xff]
        %v3763 = vld [vmem:[%s4 + $0x98] sm:$0xff]
        %v3764 = vld [vmem:[%s4 + $0xa0] sm:$0xff]
        %v3765 = vld [vmem:[%s4 + $0xa8] sm:$0xff]
        %v3766 = vld [vmem:[%s4 + $0xb0] sm:$0xff]
        %v3767 = vld [vmem:[%s4 + $0xb8] sm:$0xff]
        %v3768 = vld [vmem:[%s4 + $0xc0] sm:$0xff]
        %v3769 = vld [vmem:[%s4 + $0xc8] sm:$0xff]
        %v3770 = vld [vmem:[%s4 + $0xd0] sm:$0xff]
        %v3771 = vld [vmem:[%s4 + $0xd8] sm:$0xff]
        %v3772 = vld [vmem:[%s4 + $0xe0] sm:$0xff]
        %v3773 = vld [vmem:[%s4 + $0xe8] sm:$0xff]
        %v3774 = vld [vmem:[%s4 + $0xf0] sm:$0xff]
        %v3775 = vld [vmem:[%s4 + $0xf8] sm:$0xff]
        %v3776 = vld [vmem:[%s4 + $0x100] sm:$0xff]
        %v3777 = vld [vmem:[%s4 + $0x108] sm:$0xff]
        %v3778 = vld [vmem:[%s4 + $0x110] sm:$0xff]
        %v3779 = vld [vmem:[%s4 + $0x118] sm:$0xff]
        %v3780 = vld [vmem:[%s4 + $0x120] sm:$0xff]
        %v3781 = vld [vmem:[%s4 + $0x128] sm:$0xff]
        %v3782 = vld [vmem:[%s4 + $0x130] sm:$0xff]
        %v3783 = vld [vmem:[%s4 + $0x138] sm:$0xff]
        %v3784 = vld [vmem:[%s4 + $0x140] sm:$0xff]
        %v3785 = vld [vmem:[%s4 + $0x148] sm:$0xff]
        %v3786 = vld [vmem:[%s4 + $0x150] sm:$0xff]
        %v3787 = vld [vmem:[%s4 + $0x158] sm:$0xff]
        %v3788 = vld [vmem:[%s4 + $0x160] sm:$0xff]
        %v3789 = vld [vmem:[%s4 + $0x168] sm:$0xff]
        %v3790 = vld [vmem:[%s4 + $0x170] sm:$0xff]
        %v3791 = vld [vmem:[%s4 + $0x178] sm:$0xff]
        %v3792 = vld [vmem:[%s4 + $0x180] sm:$0xff]
        %v3793 = vld [vmem:[%s4 + $0x188] sm:$0xff]
        %v3794 = vld [vmem:[%s4 + $0x190] sm:$0xff]
        %v3795 = vld [vmem:[%s4 + $0x198] sm:$0xff]
        %v3796 = vld [vmem:[%s4 + $0x1a0] sm:$0xff]
        %v3797 = vld [vmem:[%s4 + $0x1a8] sm:$0xff]
        %v3798 = vld [vmem:[%s4 + $0x1b0] sm:$0xff]
        %v3799 = vld [vmem:[%s4 + $0x1b8] sm:$0xff]
        %v3800 = vld [vmem:[%s4 + $0x1c0] sm:$0xff]
        %v3801 = vld [vmem:[%s4 + $0x1c8] sm:$0xff]
        %v3802 = vld [vmem:[%s4 + $0x1d0] sm:$0xff]
        %v3803 = vld [vmem:[%s4 + $0x1d8] sm:$0xff]
        %v3804 = vld [vmem:[%s4 + $0x1e0] sm:$0xff]
        %v3805 = vld [vmem:[%s4 + $0x1e8] sm:$0xff]
        %v3806 = vld [vmem:[%s4 + $0x1f0] sm:$0xff]
        %v3807 = vld [vmem:[%s4 + $0x1f8] sm:$0xff]
        %v3808 = vld [vmem:[%s4 + $0x200] sm:$0xff]
        %v3809 = vld [vmem:[%s4 + $0x208] sm:$0xff]
        %v3810 = vld [vmem:[%s4 + $0x210] sm:$0xff]
        %v3811 = vld [vmem:[%s4 + $0x218] sm:$0xff]
        %v3812 = vld [vmem:[%s4 + $0x220] sm:$0xff]
        %v3813 = vld [vmem:[%s4 + $0x228] sm:$0xff]
        %v3814 = vld [vmem:[%s4 + $0x230] sm:$0xff]
        %v3815 = vld [vmem:[%s4 + $0x238] sm:$0xff]
        %v3816 = vld [vmem:[%s4 + $0x240] sm:$0xff]
        %v3817 = vld [vmem:[%s4 + $0x248] sm:$0xff]
        %v3818 = vld [vmem:[%s4 + $0x250] sm:$0xff]
        %v3819 = vld [vmem:[%s4 + $0x258] sm:$0xff]
        %v3820 = vld [vmem:[%s4 + $0x260] sm:$0xff]
        %v3821 = vld [vmem:[%s4 + $0x268] sm:$0xff]
        %v3822 = vld [vmem:[%s4 + $0x270] sm:$0xff]
        %v3823 = vld [vmem:[%s4 + $0x278] sm:$0xff]
        %v3824 = vld [vmem:[%s4 + $0x280] sm:$0xff]
        %v3825 = vld [vmem:[%s4 + $0x288] sm:$0xff]
        %v3826 = vld [vmem:[%s4 + $0x290] sm:$0xff]
        %v3827 = vld [vmem:[%s4 + $0x298] sm:$0xff]
        %v3828 = vld [vmem:[%s4 + $0x2a0] sm:$0xff]
        %v3829 = vld [vmem:[%s4 + $0x2a8] sm:$0xff]
        %v3830 = vld [vmem:[%s4 + $0x2b0] sm:$0xff]
        %v3831 = vld [vmem:[%s4 + $0x2b8] sm:$0xff]
        %v3832 = vld [vmem:[%s4 + $0x2c0] sm:$0xff]
        %v3833 = vld [vmem:[%s4 + $0x2c8] sm:$0xff]
        %v3834 = vld [vmem:[%s4 + $0x2d0] sm:$0xff]
        %v3835 = vld [vmem:[%s4 + $0x2d8] sm:$0xff]
        %v3836 = vld [vmem:[%s4 + $0x2e0] sm:$0xff]
        %v3837 = vld [vmem:[%s4 + $0x2e8] sm:$0xff]
        %v3838 = vld [vmem:[%s4 + $0x2f0] sm:$0xff]
        %v3839 = vld [vmem:[%s4 + $0x2f8] sm:$0xff]
        %v3840 = vld [vmem:[%s4 + $0x300] sm:$0xff]
        %v3841 = vld [vmem:[%s4 + $0x308] sm:$0xff]
        %v3842 = vld [vmem:[%s4 + $0x310] sm:$0xff]
        %v3843 = vld [vmem:[%s4 + $0x318] sm:$0xff]
        %v3844 = vld [vmem:[%s4 + $0x320] sm:$0xff]
        %v3845 = vld [vmem:[%s4 + $0x328] sm:$0xff]
        %v3846 = vld [vmem:[%s4 + $0x330] sm:$0xff]
        %v3847 = vld [vmem:[%s4 + $0x338] sm:$0xff]
        %v3848 = vld [vmem:[%s4 + $0x340] sm:$0xff]
        %v3849 = vld [vmem:[%s4 + $0x348] sm:$0xff]
        %v3850 = vld [vmem:[%s4 + $0x350] sm:$0xff]
        %v3851 = vld [vmem:[%s4 + $0x358] sm:$0xff]
        %v3852 = vld [vmem:[%s4 + $0x360] sm:$0xff]
        %v3853 = vld [vmem:[%s4 + $0x368] sm:$0xff]
        %v3854 = vld [vmem:[%s4 + $0x370] sm:$0xff]
        %v3855 = vld [vmem:[%s4 + $0x378] sm:$0xff]
        %v3856 = vld [vmem:[%s4 + $0x380] sm:$0xff]
        %v3857 = vld [vmem:[%s4 + $0x388] sm:$0xff]
        %v3858 = vld [vmem:[%s4 + $0x390] sm:$0xff]
        %v3859 = vld [vmem:[%s4 + $0x398] sm:$0xff]
        %v3860 = vld [vmem:[%s4 + $0x3a0] sm:$0xff]
        %v3861 = vld [vmem:[%s4 + $0x3a8] sm:$0xff]
        %v3862 = vld [vmem:[%s4 + $0x3b0] sm:$0xff]
        %v3863 = vld [vmem:[%s4 + $0x3b8] sm:$0xff]
        %v3864 = vld [vmem:[%s4 + $0x3c0] sm:$0xff]
        %v3865 = vld [vmem:[%s4 + $0x3c8] sm:$0xff]
        %v3866 = vld [vmem:[%s4 + $0x3d0] sm:$0xff]
        %v3867 = vld [vmem:[%s4 + $0x3d8] sm:$0xff]
        %v3868 = vld [vmem:[%s4 + $0x3e0] sm:$0xff]
        %v3869 = vld [vmem:[%s4 + $0x3e8] sm:$0xff]
        %v3870 = vld [vmem:[%s4 + $0x3f0] sm:$0xff]
        %v3871 = vld [vmem:[%s4 + $0x3f8] sm:$0xff]
        %v3872 = vld [vmem:[%s4 + $0x400] sm:$0xff]
        %v3873 = vld [vmem:[%s4 + $0x408] sm:$0xff]
        %v3874 = vld [vmem:[%s4 + $0x410] sm:$0xff]
        %v3875 = vld [vmem:[%s4 + $0x418] sm:$0xff]
        %v3876 = vld [vmem:[%s4 + $0x420] sm:$0xff]
        %v3877 = vld [vmem:[%s4 + $0x428] sm:$0xff]
        %v3878 = vld [vmem:[%s4 + $0x430] sm:$0xff]
        %v3879 = vld [vmem:[%s4 + $0x438] sm:$0xff]
        %v3880 = vld [vmem:[%s4 + $0x440] sm:$0xff]
        %v3881 = vld [vmem:[%s4 + $0x448] sm:$0xff]
        %v3882 = vld [vmem:[%s4 + $0x450] sm:$0xff]
        %v3883 = vld [vmem:[%s4 + $0x458] sm:$0xff]
        %v3884 = vld [vmem:[%s4 + $0x460] sm:$0xff]
        %v3885 = vld [vmem:[%s4 + $0x468] sm:$0xff]
        %v3886 = vld [vmem:[%s4 + $0x470] sm:$0xff]
        %v3887 = vld [vmem:[%s4 + $0x478] sm:$0xff]
        %3888 = vmatprep.subr.mxu0 0.0
        %3889 = vmatpush1.msra.mxu0 %v3744
        %3890 = vmatprep.subr.mxu0 0.0
        %3891 = vmatpush1.msra.mxu0 %v3745
        %3892 = vmatprep.subr.mxu0 0.0
        %3893 = vmatpush1.msra.mxu0 %v3746
        %3894 = vmatprep.subr.mxu0 0.0
        %3895 = vmatpush1.msra.mxu0 %v3747
        %3896 = vmatprep.subr.mxu0 0.0
        %3897 = vmatpush1.msra.mxu0 %v3748
        %3898 = vmatprep.subr.mxu0 0.0
        %3899 = vmatpush1.msra.mxu0 %v3749
        %3900 = vmatprep.subr.mxu0 0.0
        %3901 = vmatpush1.msra.mxu0 %v3750
        %3902 = vmatprep.subr.mxu0 0.0
        %3903 = vmatpush1.msra.mxu0 %v3751
        %3904 = vmatprep.subr.mxu0 0.0
        %3905 = vmatpush1.msra.mxu0 %v3752
        %3906 = vmatprep.subr.mxu0 0.0
        %3907 = vmatpush1.msra.mxu0 %v3753
        %3908 = vmatprep.subr.mxu0 0.0
        %3909 = vmatpush1.msra.mxu0 %v3754
        %3910 = vmatprep.subr.mxu0 0.0
        %3911 = vmatpush1.msra.mxu0 %v3755
        %3912 = vmatprep.subr.mxu0 0.0
        %3913 = vmatpush1.msra.mxu0 %v3756
        %3914 = vmatprep.subr.mxu0 0.0
        %3915 = vmatpush1.msra.mxu0 %v3757
        %3916 = vmatprep.subr.mxu0 0.0
        %3917 = vmatpush1.msra.mxu0 %v3758
        %3918 = vmatprep.subr.mxu0 0.0
        %3919 = vmatpush1.msra.mxu0 %v3759
        %3920 = vmatprep.subr.mxu0 0.0
        %3921 = vmatpush1.msra.mxu0 %v3760
        %3922 = vmatprep.subr.mxu0 0.0
        %3923 = vmatpush1.msra.mxu0 %v3761
        %3924 = vmatprep.subr.mxu0 0.0
        %3925 = vmatpush1.msra.mxu0 %v3762
        %3926 = vmatprep.subr.mxu0 0.0
        %3927 = vmatpush1.msra.mxu0 %v3763
        %3928 = vmatprep.subr.mxu0 0.0
        %3929 = vmatpush1.msra.mxu0 %v3764
        %3930 = vmatprep.subr.mxu0 0.0
        %3931 = vmatpush1.msra.mxu0 %v3765
        %3932 = vmatprep.subr.mxu0 0.0
        %3933 = vmatpush1.msra.mxu0 %v3766
        %3934 = vmatprep.subr.mxu0 0.0
        %3935 = vmatpush1.msra.mxu0 %v3767
        %3936 = vmatprep.subr.mxu0 0.0
        %3937 = vmatpush1.msra.mxu0 %v3768
        %3938 = vmatprep.subr.mxu0 0.0
        %3939 = vmatpush1.msra.mxu0 %v3769
        %3940 = vmatprep.subr.mxu0 0.0
        %3941 = vmatpush1.msra.mxu0 %v3770
        %3942 = vmatprep.subr.mxu0 0.0
        %3943 = vmatpush1.msra.mxu0 %v3771
        %3944 = vmatprep.subr.mxu0 0.0
        %3945 = vmatpush1.msra.mxu0 %v3772
        %3946 = vmatprep.subr.mxu0 0.0
        %3947 = vmatpush1.msra.mxu0 %v3773
        %3948 = vmatprep.subr.mxu0 0.0
        %3949 = vmatpush1.msra.mxu0 %v3774
        %3950 = vmatprep.subr.mxu0 0.0
        %3951 = vmatpush1.msra.mxu0 %v3775
        %3952 = vmatprep.mubr.f32.mxu0 %v3488
        %3953 = vmatmul.mubr.f32.gmra.mrb[0].mxu0 %v3384
        %v3954 = vpop.f32.mrb[0].mxu0
        %v3955 = vadd.f32 0.0, %v3954
        %v3956 = vpop.f32.mrb[0].mxu0
        %3957 = vmatprep.mubr.f32.mxu0 %v3490
        %3958 = vmatmul.mubr.f32.gmra.mrb[0].mxu0 %v3385
        %v3959 = vpop.f32.mrb[0].mxu0
        %v3960 = vadd.f32 0.0, %v3959
        %v3961 = vpop.f32.mrb[0].mxu0
        %3962 = vmatprep.mubr.f32.mxu0 %v3493
        %3963 = vmatmul.mubr.f32.gmra.mrb[0].mxu0 %v3387
        %v3964 = vpop.f32.mrb[0].mxu0
        %v3965 = vadd.f32 0.0, %v3964
        %v3966 = vpop.f32.mrb[0].mxu0
        %3967 = vmatprep.mubr.f32.mxu0 %v3495
        %3968 = vmatmul.mubr.f32.gmra.mrb[0].mxu0 %v3388
        %v3969 = vpop.f32.mrb[0].mxu0
        %v3970 = vadd.f32 0.0, %v3969
        %v3971 = vpop.f32.mrb[0].mxu0
        %3972 = vmatprep.mubr.f32.mxu0 %v3498
        %3973 = vmatmul.mubr.f32.gmra.mrb[0].mxu0 %v3390
        %v3974 = vpop.f32.mrb[0].mxu0
        %v3975 = vadd.f32 0.0, %v3974
        %v3976 = vpop.f32.mrb[0].mxu0
        %3977 = vmatprep.mubr.f32.mxu0 %v3500
        %3978 = vmatmul.mubr.f32.gmra.mrb[0].mxu0 %v3391
        %v3979 = vpop.f32.mrb[0].mxu0
        %v3980 = vadd.f32 0.0, %v3979
        %v3981 = vpop.f32.mrb[0].mxu0
        %3982 = vmatprep.mubr.f32.mxu0 %v3503
        %3983 = vmatmul.mubr.f32.gmra.mrb[0].mxu0 %v3393
        %v3984 = vpop.f32.mrb[0].mxu0
        %v3985 = vadd.f32 0.0, %v3984
        %v3986 = vpop.f32.mrb[0].mxu0
        %3987 = vmatprep.mubr.f32.mxu0 %v3505
        %3988 = vmatmul.mubr.f32.gmra.mrb[0].mxu0 %v3394
        %v3989 = vpop.f32.mrb[0].mxu0
        %v3990 = vadd.f32 0.0, %v3989
        %v3991 = vpop.f32.mrb[0].mxu0
        %3992 = vmatprep.mubr.f32.mxu0 %v3508
        %3993 = vmatmul.mubr.f32.gmra.mrb[0].mxu0 %v3396
        %v3994 = vpop.f32.mrb[0].mxu0
        %v3995 = vadd.f32 0.0, %v3994
        %v3996 = vpop.f32.mrb[0].mxu0
        %3997 = vmatprep.mubr.f32.mxu0 %v3510
        %3998 = vmatmul.mubr.f32.gmra.mrb[0].mxu0 %v3397
        %v3999 = vpop.f32.mrb[0].mxu0
        %v4000 = vadd.f32 0.0, %v3999
        %v4001 = vpop.f32.mrb[0].mxu0
        %4002 = vmatprep.mubr.f32.mxu0 %v3513
        %4003 = vmatmul.mubr.f32.gmra.mrb[0].mxu0 %v3399
        %v4004 = vpop.f32.mrb[0].mxu0
        %v4005 = vadd.f32 0.0, %v4004
        %v4006 = vpop.f32.mrb[0].mxu0
        %4007 = vmatprep.mubr.f32.mxu0 %v3515
        %4008 = vmatmul.mubr.f32.gmra.mrb[0].mxu0 %v3400
        %v4009 = vpop.f32.mrb[0].mxu0
        %v4010 = vadd.f32 0.0, %v4009
        %v4011 = vpop.f32.mrb[0].mxu0
        %4012 = vmatprep.mubr.f32.mxu0 %v3518
        %4013 = vmatmul.mubr.f32.gmra.mrb[0].mxu0 %v3402
        %v4014 = vpop.f32.mrb[0].mxu0
        %v4015 = vadd.f32 0.0, %v4014
        %v4016 = vpop.f32.mrb[0].mxu0
        %4017 = vmatprep.mubr.f32.mxu0 %v3520
        %4018 = vmatmul.mubr.f32.gmra.mrb[0].mxu0 %v3403
        %v4019 = vpop.f32.mrb[0].mxu0
        %v4020 = vadd.f32 0.0, %v4019
        %v4021 = vpop.f32.mrb[0].mxu0
        %4022 = vmatprep.mubr.f32.mxu0 %v3523
        %4023 = vmatmul.mubr.f32.gmra.mrb[0].mxu0 %v3405
        %v4024 = vpop.f32.mrb[0].mxu0
        %v4025 = vadd.f32 0.0, %v4024
        %v4026 = vpop.f32.mrb[0].mxu0
        %4027 = vmatprep.mubr.f32.mxu0 %v3525
        %4028 = vmatmul.mubr.f32.gmra.mrb[0].mxu0 %v3406
        %v4029 = vpop.f32.mrb[0].mxu0
        %v4030 = vadd.f32 0.0, %v4029
        %v4031 = vpop.f32.mrb[0].mxu0
        %4032 = vmatprep.mubr.f32.mxu0 %v3528
        %4033 = vmatmul.mubr.f32.gmra.mrb[0].mxu0 %v3408
        %v4034 = vpop.f32.mrb[0].mxu0
        %v4035 = vadd.f32 0.0, %v4034
        %v4036 = vpop.f32.mrb[0].mxu0
        %4037 = vmatprep.mubr.f32.mxu0 %v3530
        %4038 = vmatmul.mubr.f32.gmra.mrb[0].mxu0 %v3409
        %v4039 = vpop.f32.mrb[0].mxu0
        %v4040 = vadd.f32 0.0, %v4039
        %v4041 = vpop.f32.mrb[0].mxu0
        %4042 = vmatprep.mubr.f32.mxu0 %v3533
        %4043 = vmatmul.mubr.f32.gmra.mrb[0].mxu0 %v3411
        %v4044 = vpop.f32.mrb[0].mxu0
        %v4045 = vadd.f32 0.0, %v4044
        %v4046 = vpop.f32.mrb[0].mxu0
        %4047 = vmatprep.mubr.f32.mxu0 %v3535
        %4048 = vmatmul.mubr.f32.gmra.mrb[0].mxu0 %v3412
        %v4049 = vpop.f32.mrb[0].mxu0
        %v4050 = vadd.f32 0.0, %v4049
        %v4051 = vpop.f32.mrb[0].mxu0
        %4052 = vmatprep.mubr.f32.mxu0 %v3538
        %4053 = vmatmul.mubr.f32.gmra.mrb[0].mxu0 %v3414
        %v4054 = vpop.f32.mrb[0].mxu0
        %v4055 = vadd.f32 0.0, %v4054
        %v4056 = vpop.f32.mrb[0].mxu0
        %4057 = vmatprep.mubr.f32.mxu0 %v3540
        %4058 = vmatmul.mubr.f32.gmra.mrb[0].mxu0 %v3415
        %v4059 = vpop.f32.mrb[0].mxu0
        %v4060 = vadd.f32 0.0, %v4059
        %v4061 = vpop.f32.mrb[0].mxu0
        %4062 = vmatprep.mubr.f32.mxu0 %v3543
        %4063 = vmatmul.mubr.f32.gmra.mrb[0].mxu0 %v3417
        %v4064 = vpop.f32.mrb[0].mxu0
        %v4065 = vadd.f32 0.0, %v4064
        %v4066 = vpop.f32.mrb[0].mxu0
        %4067 = vmatprep.mubr.f32.mxu0 %v3545
        %4068 = vmatmul.mubr.f32.gmra.mrb[0].mxu0 %v3418
        %v4069 = vpop.f32.mrb[0].mxu0
        %v4070 = vadd.f32 0.0, %v4069
        %v4071 = vpop.f32.mrb[0].mxu0
        %4072 = vmatprep.mubr.f32.mxu0 %v3548
        %4073 = vmatmul.mubr.f32.gmra.mrb[0].mxu0 %v3420
        %v4074 = vpop.f32.mrb[0].mxu0
        %v4075 = vadd.f32 0.0, %v4074
        %v4076 = vpop.f32.mrb[0].mxu0
        %4077 = vmatprep.mubr.f32.mxu0 %v3550
        %4078 = vmatmul.mubr.f32.gmra.mrb[0].mxu0 %v3421
        %v4079 = vpop.f32.mrb[0].mxu0
        %v4080 = vadd.f32 0.0, %v4079
        %v4081 = vpop.f32.mrb[0].mxu0
        %4082 = vmatprep.mubr.f32.mxu0 %v3553
        %4083 = vmatmul.mubr.f32.gmra.mrb[0].mxu0 %v3423
        %v4084 = vpop.f32.mrb[0].mxu0
        %v4085 = vadd.f32 0.0, %v4084
        %v4086 = vpop.f32.mrb[0].mxu0
        %4087 = vmatprep.mubr.f32.mxu0 %v3555
        %4088 = vmatmul.mubr.f32.gmra.mrb[0].mxu0 %v3424
        %v4089 = vpop.f32.mrb[0].mxu0
        %v4090 = vadd.f32 0.0, %v4089
        %v4091 = vpop.f32.mrb[0].mxu0
        %4092 = vmatprep.mubr.f32.mxu0 %v3558
        %4093 = vmatmul.mubr.f32.gmra.mrb[0].mxu0 %v3426
        %v4094 = vpop.f32.mrb[0].mxu0
        %v4095 = vadd.f32 0.0, %v4094
        %v4096 = vpop.f32.mrb[0].mxu0
        %4097 = vmatprep.mubr.f32.mxu0 %v3560
        %4098 = vmatmul.mubr.f32.gmra.mrb[0].mxu0 %v3427
        %v4099 = vpop.f32.mrb[0].mxu0
        %v4100 = vadd.f32 0.0, %v4099
        %v4101 = vpop.f32.mrb[0].mxu0
        %4102 = vmatprep.mubr.f32.mxu0 %v3563
        %4103 = vmatmul.mubr.f32.gmra.mrb[0].mxu0 %v3429
        %v4104 = vpop.f32.mrb[0].mxu0
        %v4105 = vadd.f32 0.0, %v4104
        %v4106 = vpop.f32.mrb[0].mxu0
        %4107 = vmatprep.mubr.f32.mxu0 %v3565
        %4108 = vmatmul.mubr.f32.gmra.mrb[0].mxu0 %v3430
        %v4109 = vpop.f32.mrb[0].mxu0
        %v4110 = vadd.f32 0.0, %v4109
        %v4111 = vpop.f32.mrb[0].mxu0
        %4112 = vdwg.mxu0
        %4113 = vmatprep.subr.mxu0 0.0
        %4114 = vmatpush1.msra.mxu0 %v3776
        %4115 = vmatprep.subr.mxu0 0.0
        %4116 = vmatpush1.msra.mxu0 %v3777
        %4117 = vmatprep.subr.mxu0 0.0
        %4118 = vmatpush1.msra.mxu0 %v3778
        %4119 = vmatprep.subr.mxu0 0.0
        %4120 = vmatpush1.msra.mxu0 %v3779
        %4121 = vmatprep.subr.mxu0 0.0
        %4122 = vmatpush1.msra.mxu0 %v3780
        %4123 = vmatprep.subr.mxu0 0.0
        %4124 = vmatpush1.msra.mxu0 %v3781
        %4125 = vmatprep.subr.mxu0 0.0
        %4126 = vmatpush1.msra.mxu0 %v3782
        %4127 = vmatprep.subr.mxu0 0.0
        %4128 = vmatpush1.msra.mxu0 %v3783
        %4129 = vmatprep.subr.mxu0 0.0
        %4130 = vmatpush1.msra.mxu0 %v3784
        %4131 = vmatprep.subr.mxu0 0.0
        %4132 = vmatpush1.msra.mxu0 %v3785
        %4133 = vmatprep.subr.mxu0 0.0
        %4134 = vmatpush1.msra.mxu0 %v3786
        %4135 = vmatprep.subr.mxu0 0.0
        %4136 = vmatpush1.msra.mxu0 %v3787
        %4137 = vmatprep.subr.mxu0 0.0
        %4138 = vmatpush1.msra.mxu0 %v3788
        %4139 = vmatprep.subr.mxu0 0.0
        %4140 = vmatpush1.msra.mxu0 %v3789
        %4141 = vmatprep.subr.mxu0 0.0
        %4142 = vmatpush1.msra.mxu0 %v3790
        %4143 = vmatprep.subr.mxu0 0.0
        %4144 = vmatpush1.msra.mxu0 %v3791
        %4145 = vmatprep.subr.mxu0 0.0
        %4146 = vmatpush1.msra.mxu0 %v3792
        %4147 = vmatprep.subr.mxu0 0.0
        %4148 = vmatpush1.msra.mxu0 %v3793
        %4149 = vmatprep.subr.mxu0 0.0
        %4150 = vmatpush1.msra.mxu0 %v3794
        %4151 = vmatprep.subr.mxu0 0.0
        %4152 = vmatpush1.msra.mxu0 %v3795
        %4153 = vmatprep.subr.mxu0 0.0
        %4154 = vmatpush1.msra.mxu0 %v3796
        %4155 = vmatprep.subr.mxu0 0.0
        %4156 = vmatpush1.msra.mxu0 %v3797
        %4157 = vmatprep.subr.mxu0 0.0
        %4158 = vmatpush1.msra.mxu0 %v3798
        %4159 = vmatprep.subr.mxu0 0.0
        %4160 = vmatpush1.msra.mxu0 %v3799
        %4161 = vmatprep.subr.mxu0 0.0
        %4162 = vmatpush1.msra.mxu0 %v3800
        %4163 = vmatprep.subr.mxu0 0.0
        %4164 = vmatpush1.msra.mxu0 %v3801
        %4165 = vmatprep.subr.mxu0 0.0
        %4166 = vmatpush1.msra.mxu0 %v3802
        %4167 = vmatprep.subr.mxu0 0.0
        %4168 = vmatpush1.msra.mxu0 %v3803
        %4169 = vmatprep.subr.mxu0 0.0
        %4170 = vmatpush1.msra.mxu0 %v3804
        %4171 = vmatprep.subr.mxu0 0.0
        %4172 = vmatpush1.msra.mxu0 %v3805
        %4173 = vmatprep.subr.mxu0 0.0
        %4174 = vmatpush1.msra.mxu0 %v3806
        %4175 = vmatprep.subr.mxu0 0.0
        %4176 = vmatpush1.msra.mxu0 %v3807
        %4177 = vmatprep.mubr.f32.mxu0 %v3387
        %4178 = vmatmul.mubr.f32.gmra.mrb[0].mxu0 %v3600
        %v4179 = vpop.f32.mrb[0].mxu0
        %v4180 = vadd.f32 %v3955, %v4179
        %v4181 = vpop.f32.mrb[0].mxu0
        %4182 = vmatprep.mubr.f32.mxu0 %v3388
        %4183 = vmatmul.mubr.f32.gmra.mrb[0].mxu0 %v3602
        %v4184 = vpop.f32.mrb[0].mxu0
        %v4185 = vadd.f32 %v3960, %v4184
        %v4186 = vpop.f32.mrb[0].mxu0
        %4187 = vmatprep.mubr.f32.mxu0 %v3390
        %4188 = vmatmul.mubr.f32.gmra.mrb[0].mxu0 %v3605
        %v4189 = vpop.f32.mrb[0].mxu0
        %v4190 = vadd.f32 %v3965, %v4189
        %v4191 = vpop.f32.mrb[0].mxu0
        %4192 = vmatprep.mubr.f32.mxu0 %v3391
        %4193 = vmatmul.mubr.f32.gmra.mrb[0].mxu0 %v3607
        %v4194 = vpop.f32.mrb[0].mxu0
        %v4195 = vadd.f32 %v3970, %v4194
        %v4196 = vpop.f32.mrb[0].mxu0
        %4197 = vmatprep.mubr.f32.mxu0 %v3393
        %4198 = vmatmul.mubr.f32.gmra.mrb[0].mxu0 %v3610
        %v4199 = vpop.f32.mrb[0].mxu0
        %v4200 = vadd.f32 %v3975, %v4199
        %v4201 = vpop.f32.mrb[0].mxu0
        %4202 = vmatprep.mubr.f32.mxu0 %v3394
        %4203 = vmatmul.mubr.f32.gmra.mrb[0].mxu0 %v3612
        %v4204 = vpop.f32.mrb[0].mxu0
        %v4205 = vadd.f32 %v3980, %v4204
        %v4206 = vpop.f32.mrb[0].mxu0
        %4207 = vmatprep.mubr.f32.mxu0 %v3396
        %4208 = vmatmul.mubr.f32.gmra.mrb[0].mxu0 %v3615
        %v4209 = vpop.f32.mrb[0].mxu0
        %v4210 = vadd.f32 %v3985, %v4209
        %v4211 = vpop.f32.mrb[0].mxu0
        %4212 = vmatprep.mubr.f32.mxu0 %v3397
        %4213 = vmatmul.mubr.f32.gmra.mrb[0].mxu0 %v3617
        %v4214 = vpop.f32.mrb[0].mxu0
        %v4215 = vadd.f32 %v3990, %v4214
        %v4216 = vpop.f32.mrb[0].mxu0
        %4217 = vmatprep.mubr.f32.mxu0 %v3399
        %4218 = vmatmul.mubr.f32.gmra.mrb[0].mxu0 %v3620
        %v4219 = vpop.f32.mrb[0].mxu0
        %v4220 = vadd.f32 %v3995, %v4219
        %v4221 = vpop.f32.mrb[0].mxu0
        %4222 = vmatprep.mubr.f32.mxu0 %v3400
        %4223 = vmatmul.mubr.f32.gmra.mrb[0].mxu0 %v3622
        %v4224 = vpop.f32.mrb[0].mxu0
        %v4225 = vadd.f32 %v4000, %v4224
        %v4226 = vpop.f32.mrb[0].mxu0
        %4227 = vmatprep.mubr.f32.mxu0 %v3402
        %4228 = vmatmul.mubr.f32.gmra.mrb[0].mxu0 %v3625
        %v4229 = vpop.f32.mrb[0].mxu0
        %v4230 = vadd.f32 %v4005, %v4229
        %v4231 = vpop.f32.mrb[0].mxu0
        %4232 = vmatprep.mubr.f32.mxu0 %v3403
        %4233 = vmatmul.mubr.f32.gmra.mrb[0].mxu0 %v3627
        %v4234 = vpop.f32.mrb[0].mxu0
        %v4235 = vadd.f32 %v4010, %v4234
        %v4236 = vpop.f32.mrb[0].mxu0
        %4237 = vmatprep.mubr.f32.mxu0 %v3405
        %4238 = vmatmul.mubr.f32.gmra.mrb[0].mxu0 %v3630
        %v4239 = vpop.f32.mrb[0].mxu0
        %v4240 = vadd.f32 %v4015, %v4239
        %v4241 = vpop.f32.mrb[0].mxu0
        %4242 = vmatprep.mubr.f32.mxu0 %v3406
        %4243 = vmatmul.mubr.f32.gmra.mrb[0].mxu0 %v3632
        %v4244 = vpop.f32.mrb[0].mxu0
        %v4245 = vadd.f32 %v4020, %v4244
        %v4246 = vpop.f32.mrb[0].mxu0
        %4247 = vmatprep.mubr.f32.mxu0 %v3408
        %4248 = vmatmul.mubr.f32.gmra.mrb[0].mxu0 %v3635
        %v4249 = vpop.f32.mrb[0].mxu0
        %v4250 = vadd.f32 %v4025, %v4249
        %v4251 = vpop.f32.mrb[0].mxu0
        %4252 = vmatprep.mubr.f32.mxu0 %v3409
        %4253 = vmatmul.mubr.f32.gmra.mrb[0].mxu0 %v3637
        %v4254 = vpop.f32.mrb[0].mxu0
        %v4255 = vadd.f32 %v4030, %v4254
        %v4256 = vpop.f32.mrb[0].mxu0
        %4257 = vmatprep.mubr.f32.mxu0 %v3411
        %4258 = vmatmul.mubr.f32.gmra.mrb[0].mxu0 %v3640
        %v4259 = vpop.f32.mrb[0].mxu0
        %v4260 = vadd.f32 %v4035, %v4259
        %v4261 = vpop.f32.mrb[0].mxu0
        %4262 = vmatprep.mubr.f32.mxu0 %v3412
        %4263 = vmatmul.mubr.f32.gmra.mrb[0].mxu0 %v3642
        %v4264 = vpop.f32.mrb[0].mxu0
        %v4265 = vadd.f32 %v4040, %v4264
        %v4266 = vpop.f32.mrb[0].mxu0
        %4267 = vmatprep.mubr.f32.mxu0 %v3414
        %4268 = vmatmul.mubr.f32.gmra.mrb[0].mxu0 %v3645
        %v4269 = vpop.f32.mrb[0].mxu0
        %v4270 = vadd.f32 %v4045, %v4269
        %v4271 = vpop.f32.mrb[0].mxu0
        %4272 = vmatprep.mubr.f32.mxu0 %v3415
        %4273 = vmatmul.mubr.f32.gmra.mrb[0].mxu0 %v3647
        %v4274 = vpop.f32.mrb[0].mxu0
        %v4275 = vadd.f32 %v4050, %v4274
        %v4276 = vpop.f32.mrb[0].mxu0
        %4277 = vmatprep.mubr.f32.mxu0 %v3417
        %4278 = vmatmul.mubr.f32.gmra.mrb[0].mxu0 %v3650
        %v4279 = vpop.f32.mrb[0].mxu0
        %v4280 = vadd.f32 %v4055, %v4279
        %v4281 = vpop.f32.mrb[0].mxu0
        %4282 = vmatprep.mubr.f32.mxu0 %v3418
        %4283 = vmatmul.mubr.f32.gmra.mrb[0].mxu0 %v3652
        %v4284 = vpop.f32.mrb[0].mxu0
        %v4285 = vadd.f32 %v4060, %v4284
        %v4286 = vpop.f32.mrb[0].mxu0
        %4287 = vmatprep.mubr.f32.mxu0 %v3420
        %4288 = vmatmul.mubr.f32.gmra.mrb[0].mxu0 %v3655
        %v4289 = vpop.f32.mrb[0].mxu0
        %v4290 = vadd.f32 %v4065, %v4289
        %v4291 = vpop.f32.mrb[0].mxu0
        %4292 = vmatprep.mubr.f32.mxu0 %v3421
        %4293 = vmatmul.mubr.f32.gmra.mrb[0].mxu0 %v3657
        %v4294 = vpop.f32.mrb[0].mxu0
        %v4295 = vadd.f32 %v4070, %v4294
        %v4296 = vpop.f32.mrb[0].mxu0
        %4297 = vmatprep.mubr.f32.mxu0 %v3423
        %4298 = vmatmul.mubr.f32.gmra.mrb[0].mxu0 %v3660
        %v4299 = vpop.f32.mrb[0].mxu0
        %v4300 = vadd.f32 %v4075, %v4299
        %v4301 = vpop.f32.mrb[0].mxu0
        %4302 = vmatprep.mubr.f32.mxu0 %v3424
        %4303 = vmatmul.mubr.f32.gmra.mrb[0].mxu0 %v3662
        %v4304 = vpop.f32.mrb[0].mxu0
        %v4305 = vadd.f32 %v4080, %v4304
        %v4306 = vpop.f32.mrb[0].mxu0
        %4307 = vmatprep.mubr.f32.mxu0 %v3426
        %4308 = vmatmul.mubr.f32.gmra.mrb[0].mxu0 %v3665
        %v4309 = vpop.f32.mrb[0].mxu0
        %v4310 = vadd.f32 %v4085, %v4309
        %v4311 = vpop.f32.mrb[0].mxu0
        %4312 = vmatprep.mubr.f32.mxu0 %v3427
        %4313 = vmatmul.mubr.f32.gmra.mrb[0].mxu0 %v3667
        %v4314 = vpop.f32.mrb[0].mxu0
        %v4315 = vadd.f32 %v4090, %v4314
        %v4316 = vpop.f32.mrb[0].mxu0
        %4317 = vmatprep.mubr.f32.mxu0 %v3429
        %4318 = vmatmul.mubr.f32.gmra.mrb[0].mxu0 %v3670
        %v4319 = vpop.f32.mrb[0].mxu0
        %v4320 = vadd.f32 %v4095, %v4319
        %v4321 = vpop.f32.mrb[0].mxu0
        %4322 = vmatprep.mubr.f32.mxu0 %v3430
        %4323 = vmatmul.mubr.f32.gmra.mrb[0].mxu0 %v3672
        %v4324 = vpop.f32.mrb[0].mxu0
        %v4325 = vadd.f32 %v4100, %v4324
        %v4326 = vpop.f32.mrb[0].mxu0
        %4327 = vmatprep.mubr.f32.mxu0 %v3432
        %4328 = vmatmul.mubr.f32.gmra.mrb[0].mxu0 %v3675
        %v4329 = vpop.f32.mrb[0].mxu0
        %v4330 = vadd.f32 %v4105, %v4329
        %v4331 = vpop.f32.mrb[0].mxu0
        %4332 = vmatprep.mubr.f32.mxu0 %v3433
        %4333 = vmatmul.mubr.f32.gmra.mrb[0].mxu0 %v3677
        %v4334 = vpop.f32.mrb[0].mxu0
        %v4335 = vadd.f32 %v4110, %v4334
        %v4336 = vpop.f32.mrb[0].mxu0
        %4337 = vdwg.mxu0
        %4338 = vmatprep.subr.mxu0 0.0
        %4339 = vmatpush1.msra.mxu0 %v3808
        %4340 = vmatprep.subr.mxu0 0.0
        %4341 = vmatpush1.msra.mxu0 %v3809
        %4342 = vmatprep.subr.mxu0 0.0
        %4343 = vmatpush1.msra.mxu0 %v3810
        %4344 = vmatprep.subr.mxu0 0.0
        %4345 = vmatpush1.msra.mxu0 %v3811
        %4346 = vmatprep.subr.mxu0 0.0
        %4347 = vmatpush1.msra.mxu0 %v3812
        %4348 = vmatprep.subr.mxu0 0.0
        %4349 = vmatpush1.msra.mxu0 %v3813
        %4350 = vmatprep.subr.mxu0 0.0
        %4351 = vmatpush1.msra.mxu0 %v3814
        %4352 = vmatprep.subr.mxu0 0.0
        %4353 = vmatpush1.msra.mxu0 %v3815
        %4354 = vmatprep.subr.mxu0 0.0
        %4355 = vmatpush1.msra.mxu0 %v3816
        %4356 = vmatprep.subr.mxu0 0.0
        %4357 = vmatpush1.msra.mxu0 %v3817
        %4358 = vmatprep.subr.mxu0 0.0
        %4359 = vmatpush1.msra.mxu0 %v3818
        %4360 = vmatprep.subr.mxu0 0.0
        %4361 = vmatpush1.msra.mxu0 %v3819
        %4362 = vmatprep.subr.mxu0 0.0
        %4363 = vmatpush1.msra.mxu0 %v3820
        %4364 = vmatprep.subr.mxu0 0.0
        %4365 = vmatpush1.msra.mxu0 %v3821
        %4366 = vmatprep.subr.mxu0 0.0
        %4367 = vmatpush1.msra.mxu0 %v3822
        %4368 = vmatprep.subr.mxu0 0.0
        %4369 = vmatpush1.msra.mxu0 %v3823
        %4370 = vmatprep.subr.mxu0 0.0
        %4371 = vmatpush1.msra.mxu0 %v3824
        %4372 = vmatprep.subr.mxu0 0.0
        %4373 = vmatpush1.msra.mxu0 %v3825
        %4374 = vmatprep.subr.mxu0 0.0
        %4375 = vmatpush1.msra.mxu0 %v3826
        %4376 = vmatprep.subr.mxu0 0.0
        %4377 = vmatpush1.msra.mxu0 %v3827
        %4378 = vmatprep.subr.mxu0 0.0
        %4379 = vmatpush1.msra.mxu0 %v3828
        %4380 = vmatprep.subr.mxu0 0.0
        %4381 = vmatpush1.msra.mxu0 %v3829
        %4382 = vmatprep.subr.mxu0 0.0
        %4383 = vmatpush1.msra.mxu0 %v3830
        %4384 = vmatprep.subr.mxu0 0.0
        %4385 = vmatpush1.msra.mxu0 %v3831
        %4386 = vmatprep.subr.mxu0 0.0
        %4387 = vmatpush1.msra.mxu0 %v3832
        %4388 = vmatprep.subr.mxu0 0.0
        %4389 = vmatpush1.msra.mxu0 %v3833
        %4390 = vmatprep.subr.mxu0 0.0
        %4391 = vmatpush1.msra.mxu0 %v3834
        %4392 = vmatprep.subr.mxu0 0.0
        %4393 = vmatpush1.msra.mxu0 %v3835
        %4394 = vmatprep.subr.mxu0 0.0
        %4395 = vmatpush1.msra.mxu0 %v3836
        %4396 = vmatprep.subr.mxu0 0.0
        %4397 = vmatpush1.msra.mxu0 %v3837
        %4398 = vmatprep.subr.mxu0 0.0
        %4399 = vmatpush1.msra.mxu0 %v3838
        %4400 = vmatprep.subr.mxu0 0.0
        %4401 = vmatpush1.msra.mxu0 %v3839
        %4402 = vmatprep.mubr.f32.mxu0 %v3605
        %4403 = vmatmul.mubr.f32.gmra.mrb[0].mxu0 %v3493
        %v4404 = vpop.f32.mrb[0].mxu0
        %v4405 = vadd.f32 %v4180, %v4404
        %v4406 = vpop.f32.mrb[0].mxu0
        %4407 = vmatprep.mubr.f32.mxu0 %v3607
        %4408 = vmatmul.mubr.f32.gmra.mrb[0].mxu0 %v3495
        %v4409 = vpop.f32.mrb[0].mxu0
        %v4410 = vadd.f32 %v4185, %v4409
        %v4411 = vpop.f32.mrb[0].mxu0
        %4412 = vmatprep.mubr.f32.mxu0 %v3610
        %4413 = vmatmul.mubr.f32.gmra.mrb[0].mxu0 %v3498
        %v4414 = vpop.f32.mrb[0].mxu0
        %v4415 = vadd.f32 %v4190, %v4414
        %v4416 = vpop.f32.mrb[0].mxu0
        %4417 = vmatprep.mubr.f32.mxu0 %v3612
        %4418 = vmatmul.mubr.f32.gmra.mrb[0].mxu0 %v3500
        %v4419 = vpop.f32.mrb[0].mxu0
        %v4420 = vadd.f32 %v4195, %v4419
        %v4421 = vpop.f32.mrb[0].mxu0
        %4422 = vmatprep.mubr.f32.mxu0 %v3615
        %4423 = vmatmul.mubr.f32.gmra.mrb[0].mxu0 %v3503
        %v4424 = vpop.f32.mrb[0].mxu0
        %v4425 = vadd.f32 %v4200, %v4424
        %v4426 = vpop.f32.mrb[0].mxu0
        %4427 = vmatprep.mubr.f32.mxu0 %v3617
        %4428 = vmatmul.mubr.f32.gmra.mrb[0].mxu0 %v3505
        %v4429 = vpop.f32.mrb[0].mxu0
        %v4430 = vadd.f32 %v4205, %v4429
        %v4431 = vpop.f32.mrb[0].mxu0
        %4432 = vmatprep.mubr.f32.mxu0 %v3620
        %4433 = vmatmul.mubr.f32.gmra.mrb[0].mxu0 %v3508
        %v4434 = vpop.f32.mrb[0].mxu0
        %v4435 = vadd.f32 %v4210, %v4434
        %v4436 = vpop.f32.mrb[0].mxu0
        %4437 = vmatprep.mubr.f32.mxu0 %v3622
        %4438 = vmatmul.mubr.f32.gmra.mrb[0].mxu0 %v3510
        %v4439 = vpop.f32.mrb[0].mxu0
        %v4440 = vadd.f32 %v4215, %v4439
        %v4441 = vpop.f32.mrb[0].mxu0
        %4442 = vmatprep.mubr.f32.mxu0 %v3625
        %4443 = vmatmul.mubr.f32.gmra.mrb[0].mxu0 %v3513
        %v4444 = vpop.f32.mrb[0].mxu0
        %v4445 = vadd.f32 %v4220, %v4444
        %v4446 = vpop.f32.mrb[0].mxu0
        %4447 = vmatprep.mubr.f32.mxu0 %v3627
        %4448 = vmatmul.mubr.f32.gmra.mrb[0].mxu0 %v3515
        %v4449 = vpop.f32.mrb[0].mxu0
        %v4450 = vadd.f32 %v4225, %v4449
        %v4451 = vpop.f32.mrb[0].mxu0
        %4452 = vmatprep.mubr.f32.mxu0 %v3630
        %4453 = vmatmul.mubr.f32.gmra.mrb[0].mxu0 %v3518
        %v4454 = vpop.f32.mrb[0].mxu0
        %v4455 = vadd.f32 %v4230, %v4454
        %v4456 = vpop.f32.mrb[0].mxu0
        %4457 = vmatprep.mubr.f32.mxu0 %v3632
        %4458 = vmatmul.mubr.f32.gmra.mrb[0].mxu0 %v3520
        %v4459 = vpop.f32.mrb[0].mxu0
        %v4460 = vadd.f32 %v4235, %v4459
        %v4461 = vpop.f32.mrb[0].mxu0
        %4462 = vmatprep.mubr.f32.mxu0 %v3635
        %4463 = vmatmul.mubr.f32.gmra.mrb[0].mxu0 %v3523
        %v4464 = vpop.f32.mrb[0].mxu0
        %v4465 = vadd.f32 %v4240, %v4464
        %v4466 = vpop.f32.mrb[0].mxu0
        %4467 = vmatprep.mubr.f32.mxu0 %v3637
        %4468 = vmatmul.mubr.f32.gmra.mrb[0].mxu0 %v3525
        %v4469 = vpop.f32.mrb[0].mxu0
        %v4470 = vadd.f32 %v4245, %v4469
        %v4471 = vpop.f32.mrb[0].mxu0
        %4472 = vmatprep.mubr.f32.mxu0 %v3640
        %4473 = vmatmul.mubr.f32.gmra.mrb[0].mxu0 %v3528
        %v4474 = vpop.f32.mrb[0].mxu0
        %v4475 = vadd.f32 %v4250, %v4474
        %v4476 = vpop.f32.mrb[0].mxu0
        %4477 = vmatprep.mubr.f32.mxu0 %v3642
        %4478 = vmatmul.mubr.f32.gmra.mrb[0].mxu0 %v3530
        %v4479 = vpop.f32.mrb[0].mxu0
        %v4480 = vadd.f32 %v4255, %v4479
        %v4481 = vpop.f32.mrb[0].mxu0
        %4482 = vmatprep.mubr.f32.mxu0 %v3645
        %4483 = vmatmul.mubr.f32.gmra.mrb[0].mxu0 %v3533
        %v4484 = vpop.f32.mrb[0].mxu0
        %v4485 = vadd.f32 %v4260, %v4484
        %v4486 = vpop.f32.mrb[0].mxu0
        %4487 = vmatprep.mubr.f32.mxu0 %v3647
        %4488 = vmatmul.mubr.f32.gmra.mrb[0].mxu0 %v3535
        %v4489 = vpop.f32.mrb[0].mxu0
        %v4490 = vadd.f32 %v4265, %v4489
        %v4491 = vpop.f32.mrb[0].mxu0
        %4492 = vmatprep.mubr.f32.mxu0 %v3650
        %4493 = vmatmul.mubr.f32.gmra.mrb[0].mxu0 %v3538
        %v4494 = vpop.f32.mrb[0].mxu0
        %v4495 = vadd.f32 %v4270, %v4494
        %v4496 = vpop.f32.mrb[0].mxu0
        %4497 = vmatprep.mubr.f32.mxu0 %v3652
        %4498 = vmatmul.mubr.f32.gmra.mrb[0].mxu0 %v3540
        %v4499 = vpop.f32.mrb[0].mxu0
        %v4500 = vadd.f32 %v4275, %v4499
        %v4501 = vpop.f32.mrb[0].mxu0
        %4502 = vmatprep.mubr.f32.mxu0 %v3655
        %4503 = vmatmul.mubr.f32.gmra.mrb[0].mxu0 %v3543
        %v4504 = vpop.f32.mrb[0].mxu0
        %v4505 = vadd.f32 %v4280, %v4504
        %v4506 = vpop.f32.mrb[0].mxu0
        %4507 = vmatprep.mubr.f32.mxu0 %v3657
        %4508 = vmatmul.mubr.f32.gmra.mrb[0].mxu0 %v3545
        %v4509 = vpop.f32.mrb[0].mxu0
        %v4510 = vadd.f32 %v4285, %v4509
        %v4511 = vpop.f32.mrb[0].mxu0
        %4512 = vmatprep.mubr.f32.mxu0 %v3660
        %4513 = vmatmul.mubr.f32.gmra.mrb[0].mxu0 %v3548
        %v4514 = vpop.f32.mrb[0].mxu0
        %v4515 = vadd.f32 %v4290, %v4514
        %v4516 = vpop.f32.mrb[0].mxu0
        %4517 = vmatprep.mubr.f32.mxu0 %v3662
        %4518 = vmatmul.mubr.f32.gmra.mrb[0].mxu0 %v3550
        %v4519 = vpop.f32.mrb[0].mxu0
        %v4520 = vadd.f32 %v4295, %v4519
        %v4521 = vpop.f32.mrb[0].mxu0
        %4522 = vmatprep.mubr.f32.mxu0 %v3665
        %4523 = vmatmul.mubr.f32.gmra.mrb[0].mxu0 %v3553
        %v4524 = vpop.f32.mrb[0].mxu0
        %v4525 = vadd.f32 %v4300, %v4524
        %v4526 = vpop.f32.mrb[0].mxu0
        %4527 = vmatprep.mubr.f32.mxu0 %v3667
        %4528 = vmatmul.mubr.f32.gmra.mrb[0].mxu0 %v3555
        %v4529 = vpop.f32.mrb[0].mxu0
        %v4530 = vadd.f32 %v4305, %v4529
        %v4531 = vpop.f32.mrb[0].mxu0
        %4532 = vmatprep.mubr.f32.mxu0 %v3670
        %4533 = vmatmul.mubr.f32.gmra.mrb[0].mxu0 %v3558
        %v4534 = vpop.f32.mrb[0].mxu0
        %v4535 = vadd.f32 %v4310, %v4534
        %v4536 = vpop.f32.mrb[0].mxu0
        %4537 = vmatprep.mubr.f32.mxu0 %v3672
        %4538 = vmatmul.mubr.f32.gmra.mrb[0].mxu0 %v3560
        %v4539 = vpop.f32.mrb[0].mxu0
        %v4540 = vadd.f32 %v4315, %v4539
        %v4541 = vpop.f32.mrb[0].mxu0
        %4542 = vmatprep.mubr.f32.mxu0 %v3675
        %4543 = vmatmul.mubr.f32.gmra.mrb[0].mxu0 %v3563
        %v4544 = vpop.f32.mrb[0].mxu0
        %v4545 = vadd.f32 %v4320, %v4544
        %v4546 = vpop.f32.mrb[0].mxu0
        %4547 = vmatprep.mubr.f32.mxu0 %v3677
        %4548 = vmatmul.mubr.f32.gmra.mrb[0].mxu0 %v3565
        %v4549 = vpop.f32.mrb[0].mxu0
        %v4550 = vadd.f32 %v4325, %v4549
        %v4551 = vpop.f32.mrb[0].mxu0
        %4552 = vmatprep.mubr.f32.mxu0 %v3722
        %4553 = vmatmul.mubr.f32.gmra.mrb[0].mxu0 %v3715
        %v4554 = vpop.f32.mrb[0].mxu0
        %v4555 = vadd.f32 %v4330, %v4554
        %v4556 = vpop.f32.mrb[0].mxu0
        %4557 = vmatprep.mubr.f32.mxu0 %v3724
        %4558 = vmatmul.mubr.f32.gmra.mrb[0].mxu0 %v3717
        %v4559 = vpop.f32.mrb[0].mxu0
        %v4560 = vadd.f32 %v4335, %v4559
        %v4561 = vpop.f32.mrb[0].mxu0
        %4562 = vdwg.mxu0
        %4563 = vmatprep.subr.mxu0 0.0
        %4564 = vmatpush1.msra.mxu0 %v3840
        %4565 = vmatprep.subr.mxu0 0.0
        %4566 = vmatpush1.msra.mxu0 %v3841
        %4567 = vmatprep.subr.mxu0 0.0
        %4568 = vmatpush1.msra.mxu0 %v3842
        %4569 = vmatprep.subr.mxu0 0.0
        %4570 = vmatpush1.msra.mxu0 %v3843
        %4571 = vmatprep.subr.mxu0 0.0
        %4572 = vmatpush1.msra.mxu0 %v3844
        %4573 = vmatprep.subr.mxu0 0.0
        %4574 = vmatpush1.msra.mxu0 %v3845
        %4575 = vmatprep.subr.mxu0 0.0
        %4576 = vmatpush1.msra.mxu0 %v3846
        %4577 = vmatprep.subr.mxu0 0.0
        %4578 = vmatpush1.msra.mxu0 %v3847
        %4579 = vmatprep.subr.mxu0 0.0
        %4580 = vmatpush1.msra.mxu0 %v3848
        %4581 = vmatprep.subr.mxu0 0.0
        %4582 = vmatpush1.msra.mxu0 %v3849
        %4583 = vmatprep.subr.mxu0 0.0
        %4584 = vmatpush1.msra.mxu0 %v3850
        %4585 = vmatprep.subr.mxu0 0.0
        %4586 = vmatpush1.msra.mxu0 %v3851
        %4587 = vmatprep.subr.mxu0 0.0
        %4588 = vmatpush1.msra.mxu0 %v3852
        %4589 = vmatprep.subr.mxu0 0.0
        %4590 = vmatpush1.msra.mxu0 %v3853
        %4591 = vmatprep.subr.mxu0 0.0
        %4592 = vmatpush1.msra.mxu0 %v3854
        %4593 = vmatprep.subr.mxu0 0.0
        %4594 = vmatpush1.msra.mxu0 %v3855
        %4595 = vmatprep.subr.mxu0 0.0
        %4596 = vmatpush1.msra.mxu0 %v3856
        %4597 = vmatprep.subr.mxu0 0.0
        %4598 = vmatpush1.msra.mxu0 %v3857
        %4599 = vmatprep.subr.mxu0 0.0
        %4600 = vmatpush1.msra.mxu0 %v3858
        %4601 = vmatprep.subr.mxu0 0.0
        %4602 = vmatpush1.msra.mxu0 %v3859
        %4603 = vmatprep.subr.mxu0 0.0
        %4604 = vmatpush1.msra.mxu0 %v3860
        %4605 = vmatprep.subr.mxu0 0.0
        %4606 = vmatpush1.msra.mxu0 %v3861
        %4607 = vmatprep.subr.mxu0 0.0
        %4608 = vmatpush1.msra.mxu0 %v3862
        %4609 = vmatprep.subr.mxu0 0.0
        %4610 = vmatpush1.msra.mxu0 %v3863
        %4611 = vmatprep.subr.mxu0 0.0
        %4612 = vmatpush1.msra.mxu0 %v3864
        %4613 = vmatprep.subr.mxu0 0.0
        %4614 = vmatpush1.msra.mxu0 %v3865
        %4615 = vmatprep.subr.mxu0 0.0
        %4616 = vmatpush1.msra.mxu0 %v3866
        %4617 = vmatprep.subr.mxu0 0.0
        %4618 = vmatpush1.msra.mxu0 %v3867
        %4619 = vmatprep.subr.mxu0 0.0
        %4620 = vmatpush1.msra.mxu0 %v3868
        %4621 = vmatprep.subr.mxu0 0.0
        %4622 = vmatpush1.msra.mxu0 %v3869
        %4623 = vmatprep.subr.mxu0 0.0
        %4624 = vmatpush1.msra.mxu0 %v3870
        %4625 = vmatprep.subr.mxu0 0.0
        %4626 = vmatpush1.msra.mxu0 %v3871
        %4627 = vmatprep.mubr.f32.mxu0 %v3498
        %4628 = vmatmul.mubr.f32.gmra.mrb[0].mxu0 %v3390
        %v4629 = vpop.f32.mrb[0].mxu0
        %v4630 = vadd.f32 %v4405, %v4629
        %v4631 = vpop.f32.mrb[0].mxu0
        %4632 = vmatprep.mubr.f32.mxu0 %v3500
        %4633 = vmatmul.mubr.f32.gmra.mrb[0].mxu0 %v3391
        %v4634 = vpop.f32.mrb[0].mxu0
        %v4635 = vadd.f32 %v4410, %v4634
        %v4636 = vpop.f32.mrb[0].mxu0
        %4637 = vmatprep.mubr.f32.mxu0 %v3503
        %4638 = vmatmul.mubr.f32.gmra.mrb[0].mxu0 %v3393
        %v4639 = vpop.f32.mrb[0].mxu0
        %v4640 = vadd.f32 %v4415, %v4639
        %v4641 = vpop.f32.mrb[0].mxu0
        %4642 = vmatprep.mubr.f32.mxu0 %v3505
        %4643 = vmatmul.mubr.f32.gmra.mrb[0].mxu0 %v3394
        %v4644 = vpop.f32.mrb[0].mxu0
        %v4645 = vadd.f32 %v4420, %v4644
        %v4646 = vpop.f32.mrb[0].mxu0
        %4647 = vmatprep.mubr.f32.mxu0 %v3508
        %4648 = vmatmul.mubr.f32.gmra.mrb[0].mxu0 %v3396
        %v4649 = vpop.f32.mrb[0].mxu0
        %v4650 = vadd.f32 %v4425, %v4649
        %v4651 = vpop.f32.mrb[0].mxu0
        %4652 = vmatprep.mubr.f32.mxu0 %v3510
        %4653 = vmatmul.mubr.f32.gmra.mrb[0].mxu0 %v3397
        %v4654 = vpop.f32.mrb[0].mxu0
        %v4655 = vadd.f32 %v4430, %v4654
        %v4656 = vpop.f32.mrb[0].mxu0
        %4657 = vmatprep.mubr.f32.mxu0 %v3513
        %4658 = vmatmul.mubr.f32.gmra.mrb[0].mxu0 %v3399
        %v4659 = vpop.f32.mrb[0].mxu0
        %v4660 = vadd.f32 %v4435, %v4659
        %v4661 = vpop.f32.mrb[0].mxu0
        %4662 = vmatprep.mubr.f32.mxu0 %v3515
        %4663 = vmatmul.mubr.f32.gmra.mrb[0].mxu0 %v3400
        %v4664 = vpop.f32.mrb[0].mxu0
        %v4665 = vadd.f32 %v4440, %v4664
        %v4666 = vpop.f32.mrb[0].mxu0
        %4667 = vmatprep.mubr.f32.mxu0 %v3518
        %4668 = vmatmul.mubr.f32.gmra.mrb[0].mxu0 %v3402
        %v4669 = vpop.f32.mrb[0].mxu0
        %v4670 = vadd.f32 %v4445, %v4669
        %v4671 = vpop.f32.mrb[0].mxu0
        %4672 = vmatprep.mubr.f32.mxu0 %v3520
        %4673 = vmatmul.mubr.f32.gmra.mrb[0].mxu0 %v3403
        %v4674 = vpop.f32.mrb[0].mxu0
        %v4675 = vadd.f32 %v4450, %v4674
        %v4676 = vpop.f32.mrb[0].mxu0
        %4677 = vmatprep.mubr.f32.mxu0 %v3523
        %4678 = vmatmul.mubr.f32.gmra.mrb[0].mxu0 %v3405
        %v4679 = vpop.f32.mrb[0].mxu0
        %v4680 = vadd.f32 %v4455, %v4679
        %v4681 = vpop.f32.mrb[0].mxu0
        %4682 = vmatprep.mubr.f32.mxu0 %v3525
        %4683 = vmatmul.mubr.f32.gmra.mrb[0].mxu0 %v3406
        %v4684 = vpop.f32.mrb[0].mxu0
        %v4685 = vadd.f32 %v4460, %v4684
        %v4686 = vpop.f32.mrb[0].mxu0
        %4687 = vmatprep.mubr.f32.mxu0 %v3528
        %4688 = vmatmul.mubr.f32.gmra.mrb[0].mxu0 %v3408
        %v4689 = vpop.f32.mrb[0].mxu0
        %v4690 = vadd.f32 %v4465, %v4689
        %v4691 = vpop.f32.mrb[0].mxu0
        %4692 = vmatprep.mubr.f32.mxu0 %v3530
        %4693 = vmatmul.mubr.f32.gmra.mrb[0].mxu0 %v3409
        %v4694 = vpop.f32.mrb[0].mxu0
        %v4695 = vadd.f32 %v4470, %v4694
        %v4696 = vpop.f32.mrb[0].mxu0
        %4697 = vmatprep.mubr.f32.mxu0 %v3533
        %4698 = vmatmul.mubr.f32.gmra.mrb[0].mxu0 %v3411
        %v4699 = vpop.f32.mrb[0].mxu0
        %v4700 = vadd.f32 %v4475, %v4699
        %v4701 = vpop.f32.mrb[0].mxu0
        %4702 = vmatprep.mubr.f32.mxu0 %v3535
        %4703 = vmatmul.mubr.f32.gmra.mrb[0].mxu0 %v3412
        %v4704 = vpop.f32.mrb[0].mxu0
        %v4705 = vadd.f32 %v4480, %v4704
        %v4706 = vpop.f32.mrb[0].mxu0
        %4707 = vmatprep.mubr.f32.mxu0 %v3538
        %4708 = vmatmul.mubr.f32.gmra.mrb[0].mxu0 %v3414
        %v4709 = vpop.f32.mrb[0].mxu0
        %v4710 = vadd.f32 %v4485, %v4709
        %v4711 = vpop.f32.mrb[0].mxu0
        %4712 = vmatprep.mubr.f32.mxu0 %v3540
        %4713 = vmatmul.mubr.f32.gmra.mrb[0].mxu0 %v3415
        %v4714 = vpop.f32.mrb[0].mxu0
        %v4715 = vadd.f32 %v4490, %v4714
        %v4716 = vpop.f32.mrb[0].mxu0
        %4717 = vmatprep.mubr.f32.mxu0 %v3543
        %4718 = vmatmul.mubr.f32.gmra.mrb[0].mxu0 %v3417
        %v4719 = vpop.f32.mrb[0].mxu0
        %v4720 = vadd.f32 %v4495, %v4719
        %v4721 = vpop.f32.mrb[0].mxu0
        %4722 = vmatprep.mubr.f32.mxu0 %v3545
        %4723 = vmatmul.mubr.f32.gmra.mrb[0].mxu0 %v3418
        %v4724 = vpop.f32.mrb[0].mxu0
        %v4725 = vadd.f32 %v4500, %v4724
        %v4726 = vpop.f32.mrb[0].mxu0
        %4727 = vmatprep.mubr.f32.mxu0 %v3548
        %4728 = vmatmul.mubr.f32.gmra.mrb[0].mxu0 %v3420
        %v4729 = vpop.f32.mrb[0].mxu0
        %v4730 = vadd.f32 %v4505, %v4729
        %v4731 = vpop.f32.mrb[0].mxu0
        %4732 = vmatprep.mubr.f32.mxu0 %v3550
        %4733 = vmatmul.mubr.f32.gmra.mrb[0].mxu0 %v3421
        %v4734 = vpop.f32.mrb[0].mxu0
        %v4735 = vadd.f32 %v4510, %v4734
        %v4736 = vpop.f32.mrb[0].mxu0
        %4737 = vmatprep.mubr.f32.mxu0 %v3553
        %4738 = vmatmul.mubr.f32.gmra.mrb[0].mxu0 %v3423
        %v4739 = vpop.f32.mrb[0].mxu0
        %v4740 = vadd.f32 %v4515, %v4739
        %v4741 = vpop.f32.mrb[0].mxu0
        %4742 = vmatprep.mubr.f32.mxu0 %v3555
        %4743 = vmatmul.mubr.f32.gmra.mrb[0].mxu0 %v3424
        %v4744 = vpop.f32.mrb[0].mxu0
        %v4745 = vadd.f32 %v4520, %v4744
        %v4746 = vpop.f32.mrb[0].mxu0
        %4747 = vmatprep.mubr.f32.mxu0 %v3558
        %4748 = vmatmul.mubr.f32.gmra.mrb[0].mxu0 %v3426
        %v4749 = vpop.f32.mrb[0].mxu0
        %v4750 = vadd.f32 %v4525, %v4749
        %v4751 = vpop.f32.mrb[0].mxu0
        %4752 = vmatprep.mubr.f32.mxu0 %v3560
        %4753 = vmatmul.mubr.f32.gmra.mrb[0].mxu0 %v3427
        %v4754 = vpop.f32.mrb[0].mxu0
        %v4755 = vadd.f32 %v4530, %v4754
        %v4756 = vpop.f32.mrb[0].mxu0
        %4757 = vmatprep.mubr.f32.mxu0 %v3563
        %4758 = vmatmul.mubr.f32.gmra.mrb[0].mxu0 %v3429
        %v4759 = vpop.f32.mrb[0].mxu0
        %v4760 = vadd.f32 %v4535, %v4759
        %v4761 = vpop.f32.mrb[0].mxu0
        %4762 = vmatprep.mubr.f32.mxu0 %v3565
        %4763 = vmatmul.mubr.f32.gmra.mrb[0].mxu0 %v3430
        %v4764 = vpop.f32.mrb[0].mxu0
        %v4765 = vadd.f32 %v4540, %v4764
        %v4766 = vpop.f32.mrb[0].mxu0
        %4767 = vmatprep.mubr.f32.mxu0 %v3715
        %4768 = vmatmul.mubr.f32.gmra.mrb[0].mxu0 %v3432
        %v4769 = vpop.f32.mrb[0].mxu0
        %v4770 = vadd.f32 %v4545, %v4769
        %v4771 = vpop.f32.mrb[0].mxu0
        %4772 = vmatprep.mubr.f32.mxu0 %v3717
        %4773 = vmatmul.mubr.f32.gmra.mrb[0].mxu0 %v3433
        %v4774 = vpop.f32.mrb[0].mxu0
        %v4775 = vadd.f32 %v4550, %v4774
        %v4776 = vpop.f32.mrb[0].mxu0
        %4777 = vmatprep.mubr.f32.mxu0 %v3732
        %4778 = vmatmul.mubr.f32.gmra.mrb[0].mxu0 %v3435
        %v4779 = vpop.f32.mrb[0].mxu0
        %v4780 = vadd.f32 %v4555, %v4779
        %v4781 = vpop.f32.mrb[0].mxu0
        %4782 = vmatprep.mubr.f32.mxu0 %v3734
        %4783 = vmatmul.mubr.f32.gmra.mrb[0].mxu0 %v3436
        %v4784 = vpop.f32.mrb[0].mxu0
        %v4785 = vadd.f32 %v4560, %v4784
        %v4786 = vpop.f32.mrb[0].mxu0
        %4787 = vdwg.mxu0
        %4788 = vmatprep.subr.mxu0 0.0
        %4789 = vmatpush1.msra.mxu0 %v3872
        %4790 = vmatprep.subr.mxu0 0.0
        %4791 = vmatpush1.msra.mxu0 %v3873
        %4792 = vmatprep.subr.mxu0 0.0
        %4793 = vmatpush1.msra.mxu0 %v3874
        %4794 = vmatprep.subr.mxu0 0.0
        %4795 = vmatpush1.msra.mxu0 %v3875
        %4796 = vmatprep.subr.mxu0 0.0
        %4797 = vmatpush1.msra.mxu0 %v3876
        %4798 = vmatprep.subr.mxu0 0.0
        %4799 = vmatpush1.msra.mxu0 %v3877
        %4800 = vmatprep.subr.mxu0 0.0
        %4801 = vmatpush1.msra.mxu0 %v3878
        %4802 = vmatprep.subr.mxu0 0.0
        %4803 = vmatpush1.msra.mxu0 %v3879
        %4804 = vmatprep.subr.mxu0 0.0
        %4805 = vmatpush1.msra.mxu0 %v3880
        %4806 = vmatprep.subr.mxu0 0.0
        %4807 = vmatpush1.msra.mxu0 %v3881
        %4808 = vmatprep.subr.mxu0 0.0
        %4809 = vmatpush1.msra.mxu0 %v3882
        %4810 = vmatprep.subr.mxu0 0.0
        %4811 = vmatpush1.msra.mxu0 %v3883
        %4812 = vmatprep.subr.mxu0 0.0
        %4813 = vmatpush1.msra.mxu0 %v3884
        %4814 = vmatprep.subr.mxu0 0.0
        %4815 = vmatpush1.msra.mxu0 %v3885
        %4816 = vmatprep.subr.mxu0 0.0
        %4817 = vmatpush1.msra.mxu0 %v3886
        %4818 = vmatprep.subr.mxu0 0.0
        %4819 = vmatpush1.msra.mxu0 %v3887
        %4820 = vmatprep.subr.mxu0 0.0
        %4821 = vmatpush1.msra.mxu0 0.0
        %4822 = vmatprep.subr.mxu0 0.0
        %4823 = vmatpush1.msra.mxu0 0.0
        %4824 = vmatprep.subr.mxu0 0.0
        %4825 = vmatpush1.msra.mxu0 0.0
        %4826 = vmatprep.subr.mxu0 0.0
        %4827 = vmatpush1.msra.mxu0 0.0
        %4828 = vmatprep.subr.mxu0 0.0
        %4829 = vmatpush1.msra.mxu0 0.0
        %4830 = vmatprep.subr.mxu0 0.0
        %4831 = vmatpush1.msra.mxu0 0.0
        %4832 = vmatprep.subr.mxu0 0.0
        %4833 = vmatpush1.msra.mxu0 0.0
        %4834 = vmatprep.subr.mxu0 0.0
        %4835 = vmatpush1.msra.mxu0 0.0
        %4836 = vmatprep.subr.mxu0 0.0
        %4837 = vmatpush1.msra.mxu0 0.0
        %4838 = vmatprep.subr.mxu0 0.0
        %4839 = vmatpush1.msra.mxu0 0.0
        %4840 = vmatprep.subr.mxu0 0.0
        %4841 = vmatpush1.msra.mxu0 0.0
        %4842 = vmatprep.subr.mxu0 0.0
        %4843 = vmatpush1.msra.mxu0 0.0
        %4844 = vmatprep.subr.mxu0 0.0
        %4845 = vmatpush1.msra.mxu0 0.0
        %4846 = vmatprep.subr.mxu0 0.0
        %4847 = vmatpush1.msra.mxu0 0.0
        %4848 = vmatprep.subr.mxu0 0.0
        %4849 = vmatpush1.msra.mxu0 0.0
        %4850 = vmatprep.subr.mxu0 0.0
        %4851 = vmatpush1.msra.mxu0 0.0
        %4852 = vmatprep.mubr.f32.mxu0 0.0
        %4853 = vmatmul.mubr.f32.gmra.mrb[0].mxu0 %v3610
        %v4854 = vpop.f32.mrb[0].mxu0
        %v4855 = vadd.f32 %v4630, %v4854
        %v4856 = vpop.f32.mrb[0].mxu0
        %4857 = vmatprep.mubr.f32.mxu0 0.0
        %4858 = vmatmul.mubr.f32.gmra.mrb[0].mxu0 %v3612
        %v4859 = vpop.f32.mrb[0].mxu0
        %v4860 = vadd.f32 %v4635, %v4859
        %v4861 = vpop.f32.mrb[0].mxu0
        %4862 = vmatprep.mubr.f32.mxu0 0.0
        %4863 = vmatmul.mubr.f32.gmra.mrb[0].mxu0 %v3615
        %v4864 = vpop.f32.mrb[0].mxu0
        %v4865 = vadd.f32 %v4640, %v4864
        %v4866 = vpop.f32.mrb[0].mxu0
        %4867 = vmatprep.mubr.f32.mxu0 0.0
        %4868 = vmatmul.mubr.f32.gmra.mrb[0].mxu0 %v3617
        %v4869 = vpop.f32.mrb[0].mxu0
        %v4870 = vadd.f32 %v4645, %v4869
        %v4871 = vpop.f32.mrb[0].mxu0
        %4872 = vmatprep.mubr.f32.mxu0 0.0
        %4873 = vmatmul.mubr.f32.gmra.mrb[0].mxu0 %v3620
        %v4874 = vpop.f32.mrb[0].mxu0
        %v4875 = vadd.f32 %v4650, %v4874
        %v4876 = vpop.f32.mrb[0].mxu0
        %4877 = vmatprep.mubr.f32.mxu0 0.0
        %4878 = vmatmul.mubr.f32.gmra.mrb[0].mxu0 %v3622
        %v4879 = vpop.f32.mrb[0].mxu0
        %v4880 = vadd.f32 %v4655, %v4879
        %v4881 = vpop.f32.mrb[0].mxu0
        %4882 = vmatprep.mubr.f32.mxu0 0.0
        %4883 = vmatmul.mubr.f32.gmra.mrb[0].mxu0 %v3625
        %v4884 = vpop.f32.mrb[0].mxu0
        %v4885 = vadd.f32 %v4660, %v4884
        %v4886 = vpop.f32.mrb[0].mxu0
        %4887 = vmatprep.mubr.f32.mxu0 0.0
        %4888 = vmatmul.mubr.f32.gmra.mrb[0].mxu0 %v3627
        %v4889 = vpop.f32.mrb[0].mxu0
        %v4890 = vadd.f32 %v4665, %v4889
        %v4891 = vpop.f32.mrb[0].mxu0
        %4892 = vmatprep.mubr.f32.mxu0 0.0
        %4893 = vmatmul.mubr.f32.gmra.mrb[0].mxu0 %v3630
        %v4894 = vpop.f32.mrb[0].mxu0
        %v4895 = vadd.f32 %v4670, %v4894
        %v4896 = vpop.f32.mrb[0].mxu0
        %4897 = vmatprep.mubr.f32.mxu0 0.0
        %4898 = vmatmul.mubr.f32.gmra.mrb[0].mxu0 %v3632
        %v4899 = vpop.f32.mrb[0].mxu0
        %v4900 = vadd.f32 %v4675, %v4899
        %v4901 = vpop.f32.mrb[0].mxu0
        %4902 = vmatprep.mubr.f32.mxu0 0.0
        %4903 = vmatmul.mubr.f32.gmra.mrb[0].mxu0 %v3635
        %v4904 = vpop.f32.mrb[0].mxu0
        %v4905 = vadd.f32 %v4680, %v4904
        %v4906 = vpop.f32.mrb[0].mxu0
        %4907 = vmatprep.mubr.f32.mxu0 0.0
        %4908 = vmatmul.mubr.f32.gmra.mrb[0].mxu0 %v3637
        %v4909 = vpop.f32.mrb[0].mxu0
        %v4910 = vadd.f32 %v4685, %v4909
        %v4911 = vpop.f32.mrb[0].mxu0
        %4912 = vmatprep.mubr.f32.mxu0 0.0
        %4913 = vmatmul.mubr.f32.gmra.mrb[0].mxu0 %v3640
        %v4914 = vpop.f32.mrb[0].mxu0
        %v4915 = vadd.f32 %v4690, %v4914
        %v4916 = vpop.f32.mrb[0].mxu0
        %4917 = vmatprep.mubr.f32.mxu0 0.0
        %4918 = vmatmul.mubr.f32.gmra.mrb[0].mxu0 %v3642
        %v4919 = vpop.f32.mrb[0].mxu0
        %v4920 = vadd.f32 %v4695, %v4919
        %v4921 = vpop.f32.mrb[0].mxu0
        %4922 = vmatprep.mubr.f32.mxu0 0.0
        %4923 = vmatmul.mubr.f32.gmra.mrb[0].mxu0 %v3645
        %v4924 = vpop.f32.mrb[0].mxu0
        %v4925 = vadd.f32 %v4700, %v4924
        %v4926 = vpop.f32.mrb[0].mxu0
        %4927 = vmatprep.mubr.f32.mxu0 0.0
        %4928 = vmatmul.mubr.f32.gmra.mrb[0].mxu0 %v3647
        %v4929 = vpop.f32.mrb[0].mxu0
        %v4930 = vadd.f32 %v4705, %v4929
        %v4931 = vpop.f32.mrb[0].mxu0
        %4932 = vmatprep.mubr.f32.mxu0 0.0
        %4933 = vmatmul.mubr.f32.gmra.mrb[0].mxu0 %v3650
        %v4934 = vpop.f32.mrb[0].mxu0
        %v4935 = vadd.f32 %v4710, %v4934
        %v4936 = vpop.f32.mrb[0].mxu0
        %4937 = vmatprep.mubr.f32.mxu0 0.0
        %4938 = vmatmul.mubr.f32.gmra.mrb[0].mxu0 %v3652
        %v4939 = vpop.f32.mrb[0].mxu0
        %v4940 = vadd.f32 %v4715, %v4939
        %v4941 = vpop.f32.mrb[0].mxu0
        %4942 = vmatprep.mubr.f32.mxu0 0.0
        %4943 = vmatmul.mubr.f32.gmra.mrb[0].mxu0 %v3655
        %v4944 = vpop.f32.mrb[0].mxu0
        %v4945 = vadd.f32 %v4720, %v4944
        %v4946 = vpop.f32.mrb[0].mxu0
        %4947 = vmatprep.mubr.f32.mxu0 0.0
        %4948 = vmatmul.mubr.f32.gmra.mrb[0].mxu0 %v3657
        %v4949 = vpop.f32.mrb[0].mxu0
        %v4950 = vadd.f32 %v4725, %v4949
        %v4951 = vpop.f32.mrb[0].mxu0
        %4952 = vmatprep.mubr.f32.mxu0 0.0
        %4953 = vmatmul.mubr.f32.gmra.mrb[0].mxu0 %v3660
        %v4954 = vpop.f32.mrb[0].mxu0
        %v4955 = vadd.f32 %v4730, %v4954
        %v4956 = vpop.f32.mrb[0].mxu0
        %4957 = vmatprep.mubr.f32.mxu0 0.0
        %4958 = vmatmul.mubr.f32.gmra.mrb[0].mxu0 %v3662
        %v4959 = vpop.f32.mrb[0].mxu0
        %v4960 = vadd.f32 %v4735, %v4959
        %v4961 = vpop.f32.mrb[0].mxu0
        %4962 = vmatprep.mubr.f32.mxu0 0.0
        %4963 = vmatmul.mubr.f32.gmra.mrb[0].mxu0 %v3665
        %v4964 = vpop.f32.mrb[0].mxu0
        %v4965 = vadd.f32 %v4740, %v4964
        %v4966 = vpop.f32.mrb[0].mxu0
        %4967 = vmatprep.mubr.f32.mxu0 0.0
        %4968 = vmatmul.mubr.f32.gmra.mrb[0].mxu0 %v3667
        %v4969 = vpop.f32.mrb[0].mxu0
        %v4970 = vadd.f32 %v4745, %v4969
        %v4971 = vpop.f32.mrb[0].mxu0
        %4972 = vmatprep.mubr.f32.mxu0 0.0
        %4973 = vmatmul.mubr.f32.gmra.mrb[0].mxu0 %v3670
        %v4974 = vpop.f32.mrb[0].mxu0
        %v4975 = vadd.f32 %v4750, %v4974
        %v4976 = vpop.f32.mrb[0].mxu0
        %4977 = vmatprep.mubr.f32.mxu0 0.0
        %4978 = vmatmul.mubr.f32.gmra.mrb[0].mxu0 %v3672
        %v4979 = vpop.f32.mrb[0].mxu0
        %v4980 = vadd.f32 %v4755, %v4979
        %v4981 = vpop.f32.mrb[0].mxu0
        %4982 = vmatprep.mubr.f32.mxu0 0.0
        %4983 = vmatmul.mubr.f32.gmra.mrb[0].mxu0 %v3675
        %v4984 = vpop.f32.mrb[0].mxu0
        %v4985 = vadd.f32 %v4760, %v4984
        %v4986 = vpop.f32.mrb[0].mxu0
        %4987 = vmatprep.mubr.f32.mxu0 0.0
        %4988 = vmatmul.mubr.f32.gmra.mrb[0].mxu0 %v3677
        %v4989 = vpop.f32.mrb[0].mxu0
        %v4990 = vadd.f32 %v4765, %v4989
        %v4991 = vpop.f32.mrb[0].mxu0
        %4992 = vmatprep.mubr.f32.mxu0 0.0
        %4993 = vmatmul.mubr.f32.gmra.mrb[0].mxu0 %v3722
        %v4994 = vpop.f32.mrb[0].mxu0
        %v4995 = vadd.f32 %v4770, %v4994
        %v4996 = vpop.f32.mrb[0].mxu0
        %4997 = vmatprep.mubr.f32.mxu0 0.0
        %4998 = vmatmul.mubr.f32.gmra.mrb[0].mxu0 %v3724
        %v4999 = vpop.f32.mrb[0].mxu0
        %v5000 = vadd.f32 %v4775, %v4999
        %v5001 = vpop.f32.mrb[0].mxu0
        %5002 = vmatprep.mubr.f32.mxu0 0.0
        %5003 = vmatmul.mubr.f32.gmra.mrb[0].mxu0 %v3739
        %v5004 = vpop.f32.mrb[0].mxu0
        %v5005 = vadd.f32 %v4780, %v5004
        %v5006 = vpop.f32.mrb[0].mxu0
        %5007 = vmatprep.mubr.f32.mxu0 0.0
        %5008 = vmatmul.mubr.f32.gmra.mrb[0].mxu0 %v3741
        %v5009 = vpop.f32.mrb[0].mxu0
        %v5010 = vadd.f32 %v4785, %v5009
        %v5011 = vpop.f32.mrb[0].mxu0
        %5012 = vdwg.mxu0
        %v5013 = vld [vmem:[%s5] sm:$0x1]
        %v5015 = vlaneseq
        %v5016 = vshrl.u32 %v5015, 7
        %v5017 = vsub.s32 0, %v5016
        %v5018 = vrot.slane %v5013, %v5017
        %v5020 = vmul.f32 %v4855, %v5018
        %v5021 = vmul.f32 %v4860, %v5018
        %v5022 = vmul.f32 %v4865, %v5018
        %v5023 = vmul.f32 %v4870, %v5018
        %v5024 = vmul.f32 %v4875, %v5018
        %v5025 = vmul.f32 %v4880, %v5018
        %v5026 = vmul.f32 %v4885, %v5018
        %v5027 = vmul.f32 %v4890, %v5018
        %v5028 = vmul.f32 %v4895, %v5018
        %v5029 = vmul.f32 %v4900, %v5018
        %v5030 = vmul.f32 %v4905, %v5018
        %v5031 = vmul.f32 %v4910, %v5018
        %v5032 = vmul.f32 %v4915, %v5018
        %v5033 = vmul.f32 %v4920, %v5018
        %v5034 = vmul.f32 %v4925, %v5018
        %v5035 = vmul.f32 %v4930, %v5018
        %v5036 = vmul.f32 %v4935, %v5018
        %v5037 = vmul.f32 %v4940, %v5018
        %v5038 = vmul.f32 %v4945, %v5018
        %v5039 = vmul.f32 %v4950, %v5018
        %v5040 = vmul.f32 %v4955, %v5018
        %v5041 = vmul.f32 %v4960, %v5018
        %v5042 = vmul.f32 %v4965, %v5018
        %v5043 = vmul.f32 %v4970, %v5018
        %v5044 = vmul.f32 %v4975, %v5018
        %v5045 = vmul.f32 %v4980, %v5018
        %v5046 = vmul.f32 %v4985, %v5018
        %v5047 = vmul.f32 %v4990, %v5018
        %v5048 = vmul.f32 %v4995, %v5018
        %v5049 = vmul.f32 %v5000, %v5018
        %v5050 = vmul.f32 %v5005, %v5018
        %v5051 = vmul.f32 %v5010, %v5018
        %v5052 = vld [vmem:[%s6] sm:$0x1]
        %v5054 = vlaneseq
        %v5055 = vshrl.u32 %v5054, 7
        %v5056 = vsub.s32 0, %v5055
        %v5057 = vrot.slane %v5052, %v5056
        %v5059 = vadd.f32 %v5020, %v5057
        %v5060 = vadd.f32 %v5021, %v5057
        %v5061 = vadd.f32 %v5022, %v5057
        %v5062 = vadd.f32 %v5023, %v5057
        %v5063 = vadd.f32 %v5024, %v5057
        %v5064 = vadd.f32 %v5025, %v5057
        %v5065 = vadd.f32 %v5026, %v5057
        %v5066 = vadd.f32 %v5027, %v5057
        %v5067 = vadd.f32 %v5028, %v5057
        %v5068 = vadd.f32 %v5029, %v5057
        %v5069 = vadd.f32 %v5030, %v5057
        %v5070 = vadd.f32 %v5031, %v5057
        %v5071 = vadd.f32 %v5032, %v5057
        %v5072 = vadd.f32 %v5033, %v5057
        %v5073 = vadd.f32 %v5034, %v5057
        %v5074 = vadd.f32 %v5035, %v5057
        %v5075 = vadd.f32 %v5036, %v5057
        %v5076 = vadd.f32 %v5037, %v5057
        %v5077 = vadd.f32 %v5038, %v5057
        %v5078 = vadd.f32 %v5039, %v5057
        %v5079 = vadd.f32 %v5040, %v5057
        %v5080 = vadd.f32 %v5041, %v5057
        %v5081 = vadd.f32 %v5042, %v5057
        %v5082 = vadd.f32 %v5043, %v5057
        %v5083 = vadd.f32 %v5044, %v5057
        %v5084 = vadd.f32 %v5045, %v5057
        %v5085 = vadd.f32 %v5046, %v5057
        %v5086 = vadd.f32 %v5047, %v5057
        %v5087 = vadd.f32 %v5048, %v5057
        %v5088 = vadd.f32 %v5049, %v5057
        %v5089 = vadd.f32 %v5050, %v5057
        %v5090 = vadd.f32 %v5051, %v5057
        %v5091 = vadd.f32 %v5059, %v735
        %v5092 = vadd.f32 %v5060, %v737
        %v5093 = vadd.f32 %v5061, %v742
        %v5094 = vadd.f32 %v5062, %v744
        %v5095 = vadd.f32 %v5063, %v749
        %v5096 = vadd.f32 %v5064, %v751
        %v5097 = vadd.f32 %v5065, %v756
        %v5098 = vadd.f32 %v5066, %v758
        %v5099 = vadd.f32 %v5067, %v763
        %v5100 = vadd.f32 %v5068, %v765
        %v5101 = vadd.f32 %v5069, %v770
        %v5102 = vadd.f32 %v5070, %v772
        %v5103 = vadd.f32 %v5071, %v777
        %v5104 = vadd.f32 %v5072, %v779
        %v5105 = vadd.f32 %v5073, %v784
        %v5106 = vadd.f32 %v5074, %v786
        %v5107 = vadd.f32 %v5075, %v791
        %v5108 = vadd.f32 %v5076, %v793
        %v5109 = vadd.f32 %v5077, %v798
        %v5110 = vadd.f32 %v5078, %v800
        %v5111 = vadd.f32 %v5079, %v805
        %v5112 = vadd.f32 %v5080, %v807
        %v5113 = vadd.f32 %v5081, %v812
        %v5114 = vadd.f32 %v5082, %v814
        %v5115 = vadd.f32 %v5083, %v819
        %v5116 = vadd.f32 %v5084, %v821
        %v5117 = vadd.f32 %v5085, %v826
        %v5118 = vadd.f32 %v5086, %v828
        %v5119 = vadd.f32 %v5087, %v833
        %v5120 = vadd.f32 %v5088, %v835
        %v5121 = vadd.f32 %v5089, %v840
        %v5122 = vadd.f32 %v5090, %v842
        %v5123 = vmax.f32 %v5091, 0.0
        %v5124 = vmax.f32 %v5092, 0.0
        %v5125 = vmax.f32 %v5093, 0.0
        %v5126 = vmax.f32 %v5094, 0.0
        %v5127 = vmax.f32 %v5095, 0.0
        %v5128 = vmax.f32 %v5096, 0.0
        %v5129 = vmax.f32 %v5097, 0.0
        %v5130 = vmax.f32 %v5098, 0.0
        %v5131 = vmax.f32 %v5099, 0.0
        %v5132 = vmax.f32 %v5100, 0.0
        %v5133 = vmax.f32 %v5101, 0.0
        %v5134 = vmax.f32 %v5102, 0.0
        %v5135 = vmax.f32 %v5103, 0.0
        %v5136 = vmax.f32 %v5104, 0.0
        %v5137 = vmax.f32 %v5105, 0.0
        %v5138 = vmax.f32 %v5106, 0.0
        %v5139 = vmax.f32 %v5107, 0.0
        %v5140 = vmax.f32 %v5108, 0.0
        %v5141 = vmax.f32 %v5109, 0.0
        %v5142 = vmax.f32 %v5110, 0.0
        %v5143 = vmax.f32 %v5111, 0.0
        %v5144 = vmax.f32 %v5112, 0.0
        %v5145 = vmax.f32 %v5113, 0.0
        %v5146 = vmax.f32 %v5114, 0.0
        %v5147 = vmax.f32 %v5115, 0.0
        %v5148 = vmax.f32 %v5116, 0.0
        %v5149 = vmax.f32 %v5117, 0.0
        %v5150 = vmax.f32 %v5118, 0.0
        %v5151 = vmax.f32 %v5119, 0.0
        %v5152 = vmax.f32 %v5120, 0.0
        %v5153 = vmax.f32 %v5121, 0.0
        %v5154 = vmax.f32 %v5122, 0.0
        %5155 = vst [vmem:[%s271] sm:$0xff] %v5123
        %5156 = vst [vmem:[%s271 + $0x8] sm:$0xff] %v5124
        %5157 = vst [vmem:[%s271 + $0x10] sm:$0xff] %v5125
        %5158 = vst [vmem:[%s271 + $0x18] sm:$0xff] %v5126
        %5159 = vst [vmem:[%s271 + $0x20] sm:$0xff] %v5127
        %5160 = vst [vmem:[%s271 + $0x28] sm:$0xff] %v5128
        %5161 = vst [vmem:[%s271 + $0x30] sm:$0xff] %v5129
        %5162 = vst [vmem:[%s271 + $0x38] sm:$0xff] %v5130
        %5163 = vst [vmem:[%s271 + $0x40] sm:$0xff] %v5131
        %5164 = vst [vmem:[%s271 + $0x48] sm:$0xff] %v5132
        %5165 = vst [vmem:[%s271 + $0x50] sm:$0xff] %v5133
        %5166 = vst [vmem:[%s271 + $0x58] sm:$0xff] %v5134
        %5167 = vst [vmem:[%s271 + $0x60] sm:$0xff] %v5135
        %5168 = vst [vmem:[%s271 + $0x68] sm:$0xff] %v5136
        %5169 = vst [vmem:[%s271 + $0x70] sm:$0xff] %v5137
        %5170 = vst [vmem:[%s271 + $0x78] sm:$0xff] %v5138
        %5171 = vst [vmem:[%s271 + $0x80] sm:$0xff] %v5139
        %5172 = vst [vmem:[%s271 + $0x88] sm:$0xff] %v5140
        %5173 = vst [vmem:[%s271 + $0x90] sm:$0xff] %v5141
        %5174 = vst [vmem:[%s271 + $0x98] sm:$0xff] %v5142
        %5175 = vst [vmem:[%s271 + $0xa0] sm:$0xff] %v5143
        %5176 = vst [vmem:[%s271 + $0xa8] sm:$0xff] %v5144
        %5177 = vst [vmem:[%s271 + $0xb0] sm:$0xff] %v5145
        %5178 = vst [vmem:[%s271 + $0xb8] sm:$0xff] %v5146
        %5179 = vst [vmem:[%s271 + $0xc0] sm:$0xff] %v5147
        %5180 = vst [vmem:[%s271 + $0xc8] sm:$0xff] %v5148
        %5181 = vst [vmem:[%s271 + $0xd0] sm:$0xff] %v5149
        %5182 = vst [vmem:[%s271 + $0xd8] sm:$0xff] %v5150
        %5183 = vst [vmem:[%s271 + $0xe0] sm:$0xff] %v5151
        %5184 = vst [vmem:[%s271 + $0xe8] sm:$0xff] %v5152
        %5185 = vst [vmem:[%s271 + $0xf0] sm:$0xff] %v5153
        %5186 = vst [vmem:[%s271 + $0xf8] sm:$0xff] %v5154
        %s5187 = sand.u32 %s181, 1
        %s5188 = scalar_lea.sflag [#allocation3], %s5187
        %s5189 = sand.u32 %s181, 1
        %s5190 = smul.addr %s5189, 256
        %s5191 = scalar_lea.vmem [#allocation2], %s5190
        // Predicated region
        $region49: #{tpu_custom_call.1} parent=47 // pred_check
          %p5192 = pneg %p191
        $region50: #{tpu_custom_call.1} parent=47 // pred_check_branch
          %5194 = sbr.rel (%p5192) target = $region52
        $region51: #{tpu_custom_call.1} parent=47 // pred_region
          %s5196 = ssub.s32 4096, 4096
          %5197 = vsyncadd %s5188, %s5196
          %s5198 = smul.addr %s21, 32
          %s5199 = smul.addr %s5198, 128
          %s5200 = scalar_lea.hbm %s7, %s5199
          %s5201 = sshll.u32 %s5191, 4
          %s5202 = int_to_ptr.vmem [resolvable:$true] %s5201
          %5207 = dma.vmem_to_hbm [thread:$0]  %s5202, 4096, %s5200, %s5188, 128, 128, 8
        $region52: #{tpu_custom_call.1} parent=47 // pred_fallthru
          _
      $region48: #{tpu_custom_call.1} parent=5 // pred_fallthru
        _
      %p5208 = scmp.le.s32.totalorder 2, %s16
      // Predicated region
      $region53: #{tpu_custom_call.1} parent=5 // pred_check
        %p5209 = pneg %p5208
      $region54: #{tpu_custom_call.1} parent=5 // pred_check_branch
        %5211 = sbr.rel (%p5209) target = $region56
      $region55: #{tpu_custom_call.1} parent=5 // pred_region
        %s5212 = ssub.s32 %s16, 2
        // Predicated region
        $region57: #{tpu_custom_call.1} parent=55 // pred_check
          %p5213 = pneg %p197
        $region58: #{tpu_custom_call.1} parent=55 // pred_check_branch
          %5215 = sbr.rel (%p5213) target = $region60
        $region59: #{tpu_custom_call.1} parent=55 // pred_region
          %s5216 = sand.u32 %s182, 1
          %s5217 = scalar_lea.sflag [#allocation3], %s5216
          %s5218 = sand.u32 %s182, 1
          %s5219 = smul.addr %s5218, 256
          %s5220 = scalar_lea.vmem [#allocation2], %s5219
          %5221 = dma.done %s5217, 4096
        $region60: #{tpu_custom_call.1} parent=55 // pred_fallthru
          _
      $region56: #{tpu_custom_call.1} parent=5 // pred_fallthru
        _
    $region6: #{tpu_custom_call.1} parent=1 // loop_footer
      %s20 = sadd.s32 1, %s16
    $region7: #{tpu_custom_call.1} parent=1 // loop_footer_branch
      %15 = sbr.rel target = $region3
    $region8: #{tpu_custom_call.1} parent=1 // loop_exit
      _
    %5222 = vsyncpa [#allocation3], 1
    %s5223 = scalar_lea.sflag [#allocation3], 1
    %5224 = vsyncpa %s5223, 1

</llo_original>
